<compile_context>
chip_gen: v6e
topology: v6e:2x2x1
jax: 0.10.0
libtpu: 0.0.40
codegen_flags: <defaults>
</compile_context>

<pallas_src>
import functools

import jax
import jax.numpy as jnp
from jax.experimental import pallas as pl
from jax.experimental.pallas import tpu as pltpu


# ---------------------------------------------------------------------------
# GRU gate math for one direction (PyTorch nn.GRU semantics, gate order r,z,n)
#   r = sig(Wir x + bir + Whr h + bhr)
#   z = sig(Wiz x + biz + Whz h + bhz)
#   n = tanh(Win x + bin + r * (Whn h + bhn))
#   h' = (1 - z) * n + z * h
# gi / gh already contain the respective biases.
# ---------------------------------------------------------------------------
def _gru_gate_update(gi, gh, h, H):
    r = jax.nn.sigmoid(gi[:, 0:H] + gh[:, 0:H])
    z = jax.nn.sigmoid(gi[:, H:2 * H] + gh[:, H:2 * H])
    n = jnp.tanh(gi[:, 2 * H:3 * H] + r * gh[:, 2 * H:3 * H])
    return (1.0 - z) * n + z * h


# ---------------------------------------------------------------------------
# Fused kernel: LayerNorm -> L x (bidirectional GRU layer) -> Linear(last t)
#
# Ref layout (all 2-D, time-major rows: row t*B + b == timestep t, batch b):
#   inputs : x (T*B, D), ln_g (1, D), ln_b (1, D),
#            per layer: wih (D_in, 6H) bf16   [cols 0:3H fwd | 3H:6H bwd]
#                       bih (1, 6H)    f32
#                       whh (2H, 6H)   bf16   block-diag  [[Whh_f^T, 0],[0, Whh_b^T]]
#                       bhh (1, 6H)    f32
#            fc_w (2H, C) bf16, fc_b (1, C) f32
#   output : (B, C) f32
#   scratch: gi_scr (T*B, 6H) f32, seq_scr (T*B, 2H) f32
# ---------------------------------------------------------------------------
def _fused_gru_bi_kernel(*refs, T, B, H, num_layers):
    n_in = 3 + 4 * num_layers + 2
    x_ref, ln_g_ref, ln_b_ref = refs[0], refs[1], refs[2]
    layer_refs = [refs[3 + 4 * l: 3 + 4 * (l + 1)] for l in range(num_layers)]
    fc_w_ref = refs[3 + 4 * num_layers]
    fc_b_ref = refs[3 + 4 * num_layers + 1]
    out_ref = refs[n_in]
    gi_scr = refs[n_in + 1]
    seq_scr = refs[n_in + 2]

    H3 = 3 * H

    # ---- LayerNorm over the feature dim (eps=1e-5, affine), fused in ----
    x = x_ref[...]                                           # (T*B, D) f32
    mu = jnp.mean(x, axis=-1, keepdims=True)
    var = jnp.mean(jnp.square(x - mu), axis=-1, keepdims=True)
    x_ln = (x - mu) * jax.lax.rsqrt(var + 1e-5) * ln_g_ref[...] + ln_b_ref[...]

    for l in range(num_layers):
        wih_ref, bih_ref, whh_ref, bhh_ref = layer_refs[l]

        # Layer input: normalized x for layer 0, previous layer's [fwd|bwd]
        # sequence (already in VMEM scratch) otherwise.
        inp = x_ln if l == 0 else seq_scr[...]               # (T*B, D_in) f32

        # ---- hoisted input projection: all timesteps, both dirs, ONE matmul
        gi_scr[...] = (
            jnp.dot(inp.astype(jnp.bfloat16), wih_ref[...],
                    preferred_element_type=jnp.float32)
            + bih_ref[...])                                  # (T*B, 6H) f32

        whh = whh_ref[...]                                   # (2H, 6H) bf16
        bhh = bhh_ref[...]                                   # (1, 6H)  f32

        # h0 = 0 for both directions (matches the module's torch.zeros h0).
        h_cat = jnp.zeros((B, 2 * H), jnp.float32)           # [h_fwd | h_bwd]

        # Fully unrolled time loop; fwd walks t = 0..T-1, bwd walks T-1..0.
        for s in range(T):
            t_f = s
            t_b = T - 1 - s

            # One MXU push for both directions (block-diagonal recurrent W).
            gh = (jnp.dot(h_cat.astype(jnp.bfloat16), whh,
                          preferred_element_type=jnp.float32) + bhh)  # (B, 6H)

            gi_f = gi_scr[t_f * B:(t_f + 1) * B, 0:H3]
            gi_b = gi_scr[t_b * B:(t_b + 1) * B, H3:2 * H3]

            h_f = _gru_gate_update(gi_f, gh[:, 0:H3], h_cat[:, 0:H], H)
            h_b = _gru_gate_update(gi_b, gh[:, H3:2 * H3], h_cat[:, H:2 * H], H)

            # Store this layer's output sequence ([fwd | bwd] per timestep).
            seq_scr[t_f * B:(t_f + 1) * B, 0:H] = h_f
            seq_scr[t_b * B:(t_b + 1) * B, H:2 * H] = h_b

            h_cat = jnp.concatenate([h_f, h_b], axis=1)

    # ---- final Linear applied to the last timestep (== out[:, -1, :]) ----
    last = seq_scr[(T - 1) * B: T * B, :]                    # (B, 2H)
    out_ref[...] = (
        jnp.dot(last.astype(jnp.bfloat16), fc_w_ref[...],
                preferred_element_type=jnp.float32)
        + fc_b_ref[...])


# ---------------------------------------------------------------------------
# Wrapper: pre-transpose / pre-combine weights once, launch ONE pallas_call.
# ---------------------------------------------------------------------------
def _prepare_params(params):
    """Build kernel-friendly, pre-transposed / combined parameter tensors."""
    mm_dtype = jnp.bfloat16     # MXU-native operand dtype (f32 accumulation)

    prepped = {
        "ln_g": params["ln_gamma"].reshape(1, -1).astype(jnp.float32),
        "ln_b": params["ln_beta"].reshape(1, -1).astype(jnp.float32),
        "layers": [],
    }
    for layer in params["gru"]:
        w_ih_f, w_hh_f, b_ih_f, b_hh_f = layer["fwd"]
        w_ih_b, w_hh_b, b_ih_b, b_hh_b = layer["bwd"]
        H = w_hh_f.shape[1]

        # (D_in, 6H): cols [0:3H] = fwd gates (r,z,n), [3H:6H] = bwd gates.
        wih = jnp.concatenate([w_ih_f.T, w_ih_b.T], axis=1).astype(mm_dtype)
        bih = jnp.concatenate([b_ih_f, b_ih_b]).reshape(1, -1).astype(jnp.float32)

        # Block-diagonal (2H, 6H): h_fwd hits Whh_f^T only, h_bwd hits Whh_b^T.
        zeros = jnp.zeros((H, 3 * H), jnp.float32)
        whh = jnp.concatenate(
            [jnp.concatenate([w_hh_f.T, zeros], axis=1),
             jnp.concatenate([zeros, w_hh_b.T], axis=1)], axis=0).astype(mm_dtype)
        bhh = jnp.concatenate([b_hh_f, b_hh_b]).reshape(1, -1).astype(jnp.float32)

        prepped["layers"].append((wih, bih, whh, bhh))

    prepped["fc_w"] = params["fc_w"].T.astype(mm_dtype)            # (2H, C)
    prepped["fc_b"] = params["fc_b"].reshape(1, -1).astype(jnp.float32)
    return prepped


def gru_bi_forward(x_btd, params):
    """x_btd: (B, T, input_size) float32 -> (B, num_classes) float32."""
    B, T, D = x_btd.shape
    prep = _prepare_params(params)
    H = params["gru"][0]["fwd"][1].shape[1]
    C = prep["fc_w"].shape[1]
    L = len(prep["layers"])

    # Time-major, flattened: row t*B + b == x[b, t, :].
    x_tm = jnp.transpose(x_btd, (1, 0, 2)).reshape(T * B, D).astype(jnp.float32)

    inputs = [x_tm, prep["ln_g"], prep["ln_b"]]
    for layer in prep["layers"]:
        inputs.extend(layer)
    inputs.extend([prep["fc_w"], prep["fc_b"]])

    kernel = functools.partial(_fused_gru_bi_kernel, T=T, B=B, H=H, num_layers=L)
    zmap = lambda i: (0, 0)   # grid=(1,), all operands are single full blocks

    return pl.pallas_call(
        kernel,
        out_shape=jax.ShapeDtypeStruct((B, C), jnp.float32),
        grid_spec=pltpu.PrefetchScalarGridSpec(
            num_scalar_prefetch=0,
            grid=(1,),
            in_specs=[pl.BlockSpec(a.shape, zmap) for a in inputs],
            out_specs=pl.BlockSpec((B, C), zmap),
            scratch_shapes=[
                pltpu.VMEM((T * B, 6 * H), jnp.float32),   # gi for both dirs
                pltpu.VMEM((T * B, 2 * H), jnp.float32),   # layer output seq
            ],
        ),
        compiler_params=pltpu.CompilerParams(
            dimension_semantics=("arbitrary",)),
    )(*inputs)


# ---------------------------------------------------------------------------
# Deterministic parameter construction (shapes follow nn.GRU / nn.Linear).
# ---------------------------------------------------------------------------
def make_params(key, input_size, hidden_size, num_layers, num_classes):
    k_ln, k_gru, k_fc = jax.random.split(key, 3)

    params = {}
    params["ln_gamma"] = 1.0 + 0.1 * jax.random.uniform(
        k_ln, (input_size,), minval=-1.0, maxval=1.0)
    params["ln_beta"] = 0.1 * jax.random.uniform(
        jax.random.fold_in(k_ln, 1), (input_size,), minval=-1.0, maxval=1.0)

    bound = 1.0 / jnp.sqrt(hidden_size)
    gru_layers = []
    kk = k_gru
    for l in range(num_layers):
        d_in = input_size if l == 0 else 2 * hidden_size
        layer = {}
        for dname in ("fwd", "bwd"):
            kk, k1, k2, k3, k4 = jax.random.split(kk, 5)
            w_ih = jax.random.uniform(k1, (3 * hidden_size, d_in),
                                      minval=-bound, maxval=bound)
            w_hh = jax.random.uniform(k2, (3 * hidden_size, hidden_size),
                                      minval=-bound, maxval=bound)
            b_ih = jax.random.uniform(k3, (3 * hidden_size,),
                                      minval=-bound, maxval=bound)
            b_hh = jax.random.uniform(k4, (3 * hidden_size,),
                                      minval=-bound, maxval=bound)
            layer[dname] = (w_ih, w_hh, b_ih, b_hh)
        gru_layers.append(layer)
    params["gru"] = gru_layers

    fc_bound = 1.0 / jnp.sqrt(2 * hidden_size)
    k_fw, k_fb = jax.random.split(k_fc)
    params["fc_w"] = jax.random.uniform(k_fw, (num_classes, 2 * hidden_size),
                                        minval=-fc_bound, maxval=fc_bound)
    params["fc_b"] = jax.random.uniform(k_fb, (num_classes,),
                                        minval=-fc_bound, maxval=fc_bound)
    return params


if __name__ == "__main__":
    # Shapes consistent with the module's forward: x is (batch, sequence, input_size).
    B, T = 2, 8
    input_size, hidden_size, num_layers, num_classes = 16, 32, 2, 5

    key = jax.random.PRNGKey(0)
    k_x, k_p = jax.random.split(key)
    x = jax.random.normal(k_x, (B, T, input_size), dtype=jnp.float32)
    params = make_params(k_p, input_size, hidden_size, num_layers, num_classes)

    out = jax.jit(gru_bi_forward)(x, params)
    out = jax.block_until_ready(out)
    assert out.shape == (B, num_classes)
    assert bool(jnp.all(jnp.isfinite(out)))
    print("KERNEL_OK")
</pallas_src>

<mosaic_0001>
module attributes {stable_mosaic.version = 11 : i64} {
  func.func @_fused_gru_bi_kernel(%arg0: i32, %arg1: memref<16x16xf32, #tpu.memory_space<vmem>>, %arg2: memref<1x16xf32, #tpu.memory_space<vmem>>, %arg3: memref<1x16xf32, #tpu.memory_space<vmem>>, %arg4: memref<16x192xbf16, #tpu.memory_space<vmem>>, %arg5: memref<1x192xf32, #tpu.memory_space<vmem>>, %arg6: memref<64x192xbf16, #tpu.memory_space<vmem>>, %arg7: memref<1x192xf32, #tpu.memory_space<vmem>>, %arg8: memref<64x192xbf16, #tpu.memory_space<vmem>>, %arg9: memref<1x192xf32, #tpu.memory_space<vmem>>, %arg10: memref<64x192xbf16, #tpu.memory_space<vmem>>, %arg11: memref<1x192xf32, #tpu.memory_space<vmem>>, %arg12: memref<64x5xbf16, #tpu.memory_space<vmem>>, %arg13: memref<1x5xf32, #tpu.memory_space<vmem>>, %arg14: memref<2x5xf32, #tpu.memory_space<vmem>>, %arg15: memref<16x192xf32, #tpu.memory_space<vmem>>, %arg16: memref<16x64xf32, #tpu.memory_space<vmem>>) attributes {dimension_semantics = [#tpu.dimension_semantics<arbitrary>], iteration_bounds = array<i64: 1>, scalar_prefetch = 0 : i64, scratch_operands = 2 : i64, tpu.core_type = #tpu.core_type<tc>, window_params = [{pipeline_mode = #tpu.pipeline_mode<synchronous>, transform_indices = @transform_0, window_bounds = array<i64: 16, 16>}, {pipeline_mode = #tpu.pipeline_mode<synchronous>, transform_indices = @transform_1, window_bounds = array<i64: 1, 16>}, {pipeline_mode = #tpu.pipeline_mode<synchronous>, transform_indices = @transform_2, window_bounds = array<i64: 1, 16>}, {pipeline_mode = #tpu.pipeline_mode<synchronous>, transform_indices = @transform_3, window_bounds = array<i64: 16, 192>}, {pipeline_mode = #tpu.pipeline_mode<synchronous>, transform_indices = @transform_4, window_bounds = array<i64: 1, 192>}, {pipeline_mode = #tpu.pipeline_mode<synchronous>, transform_indices = @transform_5, window_bounds = array<i64: 64, 192>}, {pipeline_mode = #tpu.pipeline_mode<synchronous>, transform_indices = @transform_6, window_bounds = array<i64: 1, 192>}, {pipeline_mode = #tpu.pipeline_mode<synchronous>, transform_indices = @transform_7, window_bounds = array<i64: 64, 192>}, {pipeline_mode = #tpu.pipeline_mode<synchronous>, transform_indices = @transform_8, window_bounds = array<i64: 1, 192>}, {pipeline_mode = #tpu.pipeline_mode<synchronous>, transform_indices = @transform_9, window_bounds = array<i64: 64, 192>}, {pipeline_mode = #tpu.pipeline_mode<synchronous>, transform_indices = @transform_10, window_bounds = array<i64: 1, 192>}, {pipeline_mode = #tpu.pipeline_mode<synchronous>, transform_indices = @transform_11, window_bounds = array<i64: 64, 5>}, {pipeline_mode = #tpu.pipeline_mode<synchronous>, transform_indices = @transform_12, window_bounds = array<i64: 1, 5>}, {pipeline_mode = #tpu.pipeline_mode<synchronous>, transform_indices = @transform_13, window_bounds = array<i64: 2, 5>}]} {
    %c0 = arith.constant 0 : index
    %c0_0 = arith.constant 0 : index
    %0 = vector.load %arg1[%c0, %c0_0] : memref<16x16xf32, #tpu.memory_space<vmem>>, vector<16x16xf32>
    %cst = arith.constant dense<0.000000e+00> : vector<16xf32>
    %1 = vector.multi_reduction <add>, %0, %cst [1] : vector<16x16xf32> to vector<16xf32>
    %2 = vector.shape_cast %1 : vector<16xf32> to vector<16x1xf32>
    %cst_1 = arith.constant 1.600000e+01 : f32
    %3 = vector.broadcast %cst_1 : f32 to vector<16x1xf32>
    %4 = arith.divf %2, %3 : vector<16x1xf32>
    %5 = vector.broadcast %4 : vector<16x1xf32> to vector<16x16xf32>
    %6 = arith.subf %0, %5 : vector<16x16xf32>
    %7 = arith.mulf %6, %6 : vector<16x16xf32>
    %cst_2 = arith.constant dense<0.000000e+00> : vector<16xf32>
    %8 = vector.multi_reduction <add>, %7, %cst_2 [1] : vector<16x16xf32> to vector<16xf32>
    %9 = vector.shape_cast %8 : vector<16xf32> to vector<16x1xf32>
    %cst_3 = arith.constant 1.600000e+01 : f32
    %10 = vector.broadcast %cst_3 : f32 to vector<16x1xf32>
    %11 = arith.divf %9, %10 : vector<16x1xf32>
    %12 = vector.broadcast %4 : vector<16x1xf32> to vector<16x16xf32>
    %13 = arith.subf %0, %12 : vector<16x16xf32>
    %cst_4 = arith.constant 9.99999974E-6 : f32
    %14 = vector.broadcast %cst_4 : f32 to vector<16x1xf32>
    %15 = arith.addf %11, %14 : vector<16x1xf32>
    %16 = math.rsqrt %15 : vector<16x1xf32>
    %17 = vector.broadcast %16 : vector<16x1xf32> to vector<16x16xf32>
    %18 = arith.mulf %13, %17 : vector<16x16xf32>
    %c0_5 = arith.constant 0 : index
    %c0_6 = arith.constant 0 : index
    %19 = vector.load %arg2[%c0_5, %c0_6] : memref<1x16xf32, #tpu.memory_space<vmem>>, vector<1x16xf32>
    %20 = vector.broadcast %19 : vector<1x16xf32> to vector<16x16xf32>
    %21 = arith.mulf %18, %20 : vector<16x16xf32>
    %c0_7 = arith.constant 0 : index
    %c0_8 = arith.constant 0 : index
    %22 = vector.load %arg3[%c0_7, %c0_8] : memref<1x16xf32, #tpu.memory_space<vmem>>, vector<1x16xf32>
    %23 = vector.broadcast %22 : vector<1x16xf32> to vector<16x16xf32>
    %24 = arith.addf %21, %23 : vector<16x16xf32>
    %25 = arith.truncf %24 : vector<16x16xf32> to vector<16x16xbf16>
    %c0_9 = arith.constant 0 : index
    %c0_10 = arith.constant 0 : index
    %26 = vector.load %arg4[%c0_9, %c0_10] : memref<16x192xbf16, #tpu.memory_space<vmem>>, vector<16x192xbf16>
    %cst_11 = arith.constant dense<0.000000e+00> : vector<16x192xf32>
    %27 = tpu.matmul %25, %26, %cst_11 {dimension_numbers = #tpu.dot_dimension_numbers<[1], [0], [0], [1], [0, 0, 1, 1], [], []>} : vector<16x16xbf16>, vector<16x192xbf16>, vector<16x192xf32> -> vector<16x192xf32>
    %c0_12 = arith.constant 0 : index
    %c0_13 = arith.constant 0 : index
    %28 = vector.load %arg5[%c0_12, %c0_13] : memref<1x192xf32, #tpu.memory_space<vmem>>, vector<1x192xf32>
    %29 = vector.broadcast %28 : vector<1x192xf32> to vector<16x192xf32>
    %30 = arith.addf %27, %29 : vector<16x192xf32>
    %c0_14 = arith.constant 0 : index
    %c0_15 = arith.constant 0 : index
    %31 = vector.load %arg15[%c0_14, %c0_15] : memref<16x192xf32, #tpu.memory_space<vmem>>, vector<16x192xf32>
    tpu.vector_store %arg15[%c0_14, %c0_15], %30 {strides = array<i32>} : memref<16x192xf32, #tpu.memory_space<vmem>>, vector<16x192xf32>,
    %c0_16 = arith.constant 0 : index
    %c0_17 = arith.constant 0 : index
    %32 = vector.load %arg6[%c0_16, %c0_17] : memref<64x192xbf16, #tpu.memory_space<vmem>>, vector<64x192xbf16>
    %c0_18 = arith.constant 0 : index
    %c0_19 = arith.constant 0 : index
    %33 = vector.load %arg7[%c0_18, %c0_19] : memref<1x192xf32, #tpu.memory_space<vmem>>, vector<1x192xf32>
    %cst_20 = arith.constant 0.000000e+00 : f32
    %34 = vector.broadcast %cst_20 : f32 to vector<2x64xf32>
    %35 = arith.truncf %34 : vector<2x64xf32> to vector<2x64xbf16>
    %cst_21 = arith.constant dense<0.000000e+00> : vector<2x192xf32>
    %36 = tpu.matmul %35, %32, %cst_21 {dimension_numbers = #tpu.dot_dimension_numbers<[1], [0], [0], [1], [0, 0, 1, 1], [], []>} : vector<2x64xbf16>, vector<64x192xbf16>, vector<2x192xf32> -> vector<2x192xf32>
    %37 = vector.broadcast %33 : vector<1x192xf32> to vector<2x192xf32>
    %38 = arith.addf %36, %37 : vector<2x192xf32>
    %c0_22 = arith.constant 0 : index
    %c0_23 = arith.constant 0 : index
    %39 = vector.load %arg15[%c0_22, %c0_23] : memref<16x192xf32, #tpu.memory_space<vmem>>, vector<2x96xf32>
    %c14 = arith.constant 14 : index
    %c96 = arith.constant 96 : index
    %40 = vector.load %arg15[%c14, %c96] : memref<16x192xf32, #tpu.memory_space<vmem>>, vector<2x96xf32>
    %41 = vector.extract_strided_slice %38 {offsets = [0, 0], sizes = [2, 96], strides = [1, 1]} : vector<2x192xf32> to vector<2x96xf32>
    %42 = vector.extract_strided_slice %34 {offsets = [0, 0], sizes = [2, 32], strides = [1, 1]} : vector<2x64xf32> to vector<2x32xf32>
    %43 = vector.extract_strided_slice %39 {offsets = [0, 0], sizes = [2, 32], strides = [1, 1]} : vector<2x96xf32> to vector<2x32xf32>
    %44 = vector.extract_strided_slice %41 {offsets = [0, 0], sizes = [2, 32], strides = [1, 1]} : vector<2x96xf32> to vector<2x32xf32>
    %45 = arith.addf %43, %44 : vector<2x32xf32>
    %46 = arith.negf %45 : vector<2x32xf32>
    %47 = math.exp %46 : vector<2x32xf32>
    %cst_24 = arith.constant 1.000000e+00 : f32
    %48 = vector.broadcast %cst_24 : f32 to vector<2x32xf32>
    %49 = arith.addf %48, %47 : vector<2x32xf32>
    %50 = arith.divf %48, %49 : vector<2x32xf32>
    %51 = vector.extract_strided_slice %39 {offsets = [0, 32], sizes = [2, 32], strides = [1, 1]} : vector<2x96xf32> to vector<2x32xf32>
    %52 = vector.extract_strided_slice %41 {offsets = [0, 32], sizes = [2, 32], strides = [1, 1]} : vector<2x96xf32> to vector<2x32xf32>
    %53 = arith.addf %51, %52 : vector<2x32xf32>
    %54 = arith.negf %53 : vector<2x32xf32>
    %55 = math.exp %54 : vector<2x32xf32>
    %cst_25 = arith.constant 1.000000e+00 : f32
    %56 = vector.broadcast %cst_25 : f32 to vector<2x32xf32>
    %57 = arith.addf %56, %55 : vector<2x32xf32>
    %58 = arith.divf %56, %57 : vector<2x32xf32>
    %59 = vector.extract_strided_slice %39 {offsets = [0, 64], sizes = [2, 32], strides = [1, 1]} : vector<2x96xf32> to vector<2x32xf32>
    %60 = vector.extract_strided_slice %41 {offsets = [0, 64], sizes = [2, 32], strides = [1, 1]} : vector<2x96xf32> to vector<2x32xf32>
    %61 = arith.mulf %50, %60 : vector<2x32xf32>
    %62 = arith.addf %59, %61 : vector<2x32xf32>
    %63 = math.tanh %62 : vector<2x32xf32>
    %cst_26 = arith.constant 1.000000e+00 : f32
    %64 = vector.broadcast %cst_26 : f32 to vector<2x32xf32>
    %65 = arith.subf %64, %58 : vector<2x32xf32>
    %66 = arith.mulf %65, %63 : vector<2x32xf32>
    %67 = arith.mulf %58, %42 : vector<2x32xf32>
    %68 = arith.addf %66, %67 : vector<2x32xf32>
    %69 = vector.extract_strided_slice %38 {offsets = [0, 96], sizes = [2, 96], strides = [1, 1]} : vector<2x192xf32> to vector<2x96xf32>
    %70 = vector.extract_strided_slice %34 {offsets = [0, 32], sizes = [2, 32], strides = [1, 1]} : vector<2x64xf32> to vector<2x32xf32>
    %71 = vector.extract_strided_slice %40 {offsets = [0, 0], sizes = [2, 32], strides = [1, 1]} : vector<2x96xf32> to vector<2x32xf32>
    %72 = vector.extract_strided_slice %69 {offsets = [0, 0], sizes = [2, 32], strides = [1, 1]} : vector<2x96xf32> to vector<2x32xf32>
    %73 = arith.addf %71, %72 : vector<2x32xf32>
    %74 = arith.negf %73 : vector<2x32xf32>
    %75 = math.exp %74 : vector<2x32xf32>
    %cst_27 = arith.constant 1.000000e+00 : f32
    %76 = vector.broadcast %cst_27 : f32 to vector<2x32xf32>
    %77 = arith.addf %76, %75 : vector<2x32xf32>
    %78 = arith.divf %76, %77 : vector<2x32xf32>
    %79 = vector.extract_strided_slice %40 {offsets = [0, 32], sizes = [2, 32], strides = [1, 1]} : vector<2x96xf32> to vector<2x32xf32>
    %80 = vector.extract_strided_slice %69 {offsets = [0, 32], sizes = [2, 32], strides = [1, 1]} : vector<2x96xf32> to vector<2x32xf32>
    %81 = arith.addf %79, %80 : vector<2x32xf32>
    %82 = arith.negf %81 : vector<2x32xf32>
    %83 = math.exp %82 : vector<2x32xf32>
    %cst_28 = arith.constant 1.000000e+00 : f32
    %84 = vector.broadcast %cst_28 : f32 to vector<2x32xf32>
    %85 = arith.addf %84, %83 : vector<2x32xf32>
    %86 = arith.divf %84, %85 : vector<2x32xf32>
    %87 = vector.extract_strided_slice %40 {offsets = [0, 64], sizes = [2, 32], strides = [1, 1]} : vector<2x96xf32> to vector<2x32xf32>
    %88 = vector.extract_strided_slice %69 {offsets = [0, 64], sizes = [2, 32], strides = [1, 1]} : vector<2x96xf32> to vector<2x32xf32>
    %89 = arith.mulf %78, %88 : vector<2x32xf32>
    %90 = arith.addf %87, %89 : vector<2x32xf32>
    %91 = math.tanh %90 : vector<2x32xf32>
    %cst_29 = arith.constant 1.000000e+00 : f32
    %92 = vector.broadcast %cst_29 : f32 to vector<2x32xf32>
    %93 = arith.subf %92, %86 : vector<2x32xf32>
    %94 = arith.mulf %93, %91 : vector<2x32xf32>
    %95 = arith.mulf %86, %70 : vector<2x32xf32>
    %96 = arith.addf %94, %95 : vector<2x32xf32>
    %c0_30 = arith.constant 0 : index
    %c0_31 = arith.constant 0 : index
    %97 = vector.load %arg16[%c0_30, %c0_31] : memref<16x64xf32, #tpu.memory_space<vmem>>, vector<2x32xf32>
    tpu.vector_store %arg16[%c0_30, %c0_31], %68 {strides = array<i32>} : memref<16x64xf32, #tpu.memory_space<vmem>>, vector<2x32xf32>,
    %c14_32 = arith.constant 14 : index
    %c32 = arith.constant 32 : index
    %98 = vector.load %arg16[%c14_32, %c32] : memref<16x64xf32, #tpu.memory_space<vmem>>, vector<2x32xf32>
    tpu.vector_store %arg16[%c14_32, %c32], %96 {strides = array<i32>} : memref<16x64xf32, #tpu.memory_space<vmem>>, vector<2x32xf32>,
    %99 = tpu.concatenate %68, %96 in 1 : vector<2x32xf32>, vector<2x32xf32> -> vector<2x64xf32>
    %100 = arith.truncf %99 : vector<2x64xf32> to vector<2x64xbf16>
    %cst_33 = arith.constant dense<0.000000e+00> : vector<2x192xf32>
    %101 = tpu.matmul %100, %32, %cst_33 {dimension_numbers = #tpu.dot_dimension_numbers<[1], [0], [0], [1], [0, 0, 1, 1], [], []>} : vector<2x64xbf16>, vector<64x192xbf16>, vector<2x192xf32> -> vector<2x192xf32>
    %102 = vector.broadcast %33 : vector<1x192xf32> to vector<2x192xf32>
    %103 = arith.addf %101, %102 : vector<2x192xf32>
    %c2 = arith.constant 2 : index
    %c0_34 = arith.constant 0 : index
    %104 = vector.load %arg15[%c2, %c0_34] : memref<16x192xf32, #tpu.memory_space<vmem>>, vector<2x96xf32>
    %c12 = arith.constant 12 : index
    %c96_35 = arith.constant 96 : index
    %105 = vector.load %arg15[%c12, %c96_35] : memref<16x192xf32, #tpu.memory_space<vmem>>, vector<2x96xf32>
    %106 = vector.extract_strided_slice %103 {offsets = [0, 0], sizes = [2, 96], strides = [1, 1]} : vector<2x192xf32> to vector<2x96xf32>
    %107 = vector.extract_strided_slice %99 {offsets = [0, 0], sizes = [2, 32], strides = [1, 1]} : vector<2x64xf32> to vector<2x32xf32>
    %108 = vector.extract_strided_slice %104 {offsets = [0, 0], sizes = [2, 32], strides = [1, 1]} : vector<2x96xf32> to vector<2x32xf32>
    %109 = vector.extract_strided_slice %106 {offsets = [0, 0], sizes = [2, 32], strides = [1, 1]} : vector<2x96xf32> to vector<2x32xf32>
    %110 = arith.addf %108, %109 : vector<2x32xf32>
    %111 = arith.negf %110 : vector<2x32xf32>
    %112 = math.exp %111 : vector<2x32xf32>
    %cst_36 = arith.constant 1.000000e+00 : f32
    %113 = vector.broadcast %cst_36 : f32 to vector<2x32xf32>
    %114 = arith.addf %113, %112 : vector<2x32xf32>
    %115 = arith.divf %113, %114 : vector<2x32xf32>
    %116 = vector.extract_strided_slice %104 {offsets = [0, 32], sizes = [2, 32], strides = [1, 1]} : vector<2x96xf32> to vector<2x32xf32>
    %117 = vector.extract_strided_slice %106 {offsets = [0, 32], sizes = [2, 32], strides = [1, 1]} : vector<2x96xf32> to vector<2x32xf32>
    %118 = arith.addf %116, %117 : vector<2x32xf32>
    %119 = arith.negf %118 : vector<2x32xf32>
    %120 = math.exp %119 : vector<2x32xf32>
    %cst_37 = arith.constant 1.000000e+00 : f32
    %121 = vector.broadcast %cst_37 : f32 to vector<2x32xf32>
    %122 = arith.addf %121, %120 : vector<2x32xf32>
    %123 = arith.divf %121, %122 : vector<2x32xf32>
    %124 = vector.extract_strided_slice %104 {offsets = [0, 64], sizes = [2, 32], strides = [1, 1]} : vector<2x96xf32> to vector<2x32xf32>
    %125 = vector.extract_strided_slice %106 {offsets = [0, 64], sizes = [2, 32], strides = [1, 1]} : vector<2x96xf32> to vector<2x32xf32>
    %126 = arith.mulf %115, %125 : vector<2x32xf32>
    %127 = arith.addf %124, %126 : vector<2x32xf32>
    %128 = math.tanh %127 : vector<2x32xf32>
    %cst_38 = arith.constant 1.000000e+00 : f32
    %129 = vector.broadcast %cst_38 : f32 to vector<2x32xf32>
    %130 = arith.subf %129, %123 : vector<2x32xf32>
    %131 = arith.mulf %130, %128 : vector<2x32xf32>
    %132 = arith.mulf %123, %107 : vector<2x32xf32>
    %133 = arith.addf %131, %132 : vector<2x32xf32>
    %134 = vector.extract_strided_slice %103 {offsets = [0, 96], sizes = [2, 96], strides = [1, 1]} : vector<2x192xf32> to vector<2x96xf32>
    %135 = vector.extract_strided_slice %99 {offsets = [0, 32], sizes = [2, 32], strides = [1, 1]} : vector<2x64xf32> to vector<2x32xf32>
    %136 = vector.extract_strided_slice %105 {offsets = [0, 0], sizes = [2, 32], strides = [1, 1]} : vector<2x96xf32> to vector<2x32xf32>
    %137 = vector.extract_strided_slice %134 {offsets = [0, 0], sizes = [2, 32], strides = [1, 1]} : vector<2x96xf32> to vector<2x32xf32>
    %138 = arith.addf %136, %137 : vector<2x32xf32>
    %139 = arith.negf %138 : vector<2x32xf32>
    %140 = math.exp %139 : vector<2x32xf32>
    %cst_39 = arith.constant 1.000000e+00 : f32
    %141 = vector.broadcast %cst_39 : f32 to vector<2x32xf32>
    %142 = arith.addf %141, %140 : vector<2x32xf32>
    %143 = arith.divf %141, %142 : vector<2x32xf32>
    %144 = vector.extract_strided_slice %105 {offsets = [0, 32], sizes = [2, 32], strides = [1, 1]} : vector<2x96xf32> to vector<2x32xf32>
    %145 = vector.extract_strided_slice %134 {offsets = [0, 32], sizes = [2, 32], strides = [1, 1]} : vector<2x96xf32> to vector<2x32xf32>
    %146 = arith.addf %144, %145 : vector<2x32xf32>
    %147 = arith.negf %146 : vector<2x32xf32>
    %148 = math.exp %147 : vector<2x32xf32>
    %cst_40 = arith.constant 1.000000e+00 : f32
    %149 = vector.broadcast %cst_40 : f32 to vector<2x32xf32>
    %150 = arith.addf %149, %148 : vector<2x32xf32>
    %151 = arith.divf %149, %150 : vector<2x32xf32>
    %152 = vector.extract_strided_slice %105 {offsets = [0, 64], sizes = [2, 32], strides = [1, 1]} : vector<2x96xf32> to vector<2x32xf32>
    %153 = vector.extract_strided_slice %134 {offsets = [0, 64], sizes = [2, 32], strides = [1, 1]} : vector<2x96xf32> to vector<2x32xf32>
    %154 = arith.mulf %143, %153 : vector<2x32xf32>
    %155 = arith.addf %152, %154 : vector<2x32xf32>
    %156 = math.tanh %155 : vector<2x32xf32>
    %cst_41 = arith.constant 1.000000e+00 : f32
    %157 = vector.broadcast %cst_41 : f32 to vector<2x32xf32>
    %158 = arith.subf %157, %151 : vector<2x32xf32>
    %159 = arith.mulf %158, %156 : vector<2x32xf32>
    %160 = arith.mulf %151, %135 : vector<2x32xf32>
    %161 = arith.addf %159, %160 : vector<2x32xf32>
    %c2_42 = arith.constant 2 : index
    %c0_43 = arith.constant 0 : index
    %162 = vector.load %arg16[%c2_42, %c0_43] : memref<16x64xf32, #tpu.memory_space<vmem>>, vector<2x32xf32>
    tpu.vector_store %arg16[%c2_42, %c0_43], %133 {strides = array<i32>} : memref<16x64xf32, #tpu.memory_space<vmem>>, vector<2x32xf32>,
    %c12_44 = arith.constant 12 : index
    %c32_45 = arith.constant 32 : index
    %163 = vector.load %arg16[%c12_44, %c32_45] : memref<16x64xf32, #tpu.memory_space<vmem>>, vector<2x32xf32>
    tpu.vector_store %arg16[%c12_44, %c32_45], %161 {strides = array<i32>} : memref<16x64xf32, #tpu.memory_space<vmem>>, vector<2x32xf32>,
    %164 = tpu.concatenate %133, %161 in 1 : vector<2x32xf32>, vector<2x32xf32> -> vector<2x64xf32>
    %165 = arith.truncf %164 : vector<2x64xf32> to vector<2x64xbf16>
    %cst_46 = arith.constant dense<0.000000e+00> : vector<2x192xf32>
    %166 = tpu.matmul %165, %32, %cst_46 {dimension_numbers = #tpu.dot_dimension_numbers<[1], [0], [0], [1], [0, 0, 1, 1], [], []>} : vector<2x64xbf16>, vector<64x192xbf16>, vector<2x192xf32> -> vector<2x192xf32>
    %167 = vector.broadcast %33 : vector<1x192xf32> to vector<2x192xf32>
    %168 = arith.addf %166, %167 : vector<2x192xf32>
    %c4 = arith.constant 4 : index
    %c0_47 = arith.constant 0 : index
    %169 = vector.load %arg15[%c4, %c0_47] : memref<16x192xf32, #tpu.memory_space<vmem>>, vector<2x96xf32>
    %c10 = arith.constant 10 : index
    %c96_48 = arith.constant 96 : index
    %170 = vector.load %arg15[%c10, %c96_48] : memref<16x192xf32, #tpu.memory_space<vmem>>, vector<2x96xf32>
    %171 = vector.extract_strided_slice %168 {offsets = [0, 0], sizes = [2, 96], strides = [1, 1]} : vector<2x192xf32> to vector<2x96xf32>
    %172 = vector.extract_strided_slice %164 {offsets = [0, 0], sizes = [2, 32], strides = [1, 1]} : vector<2x64xf32> to vector<2x32xf32>
    %173 = vector.extract_strided_slice %169 {offsets = [0, 0], sizes = [2, 32], strides = [1, 1]} : vector<2x96xf32> to vector<2x32xf32>
    %174 = vector.extract_strided_slice %171 {offsets = [0, 0], sizes = [2, 32], strides = [1, 1]} : vector<2x96xf32> to vector<2x32xf32>
    %175 = arith.addf %173, %174 : vector<2x32xf32>
    %176 = arith.negf %175 : vector<2x32xf32>
    %177 = math.exp %176 : vector<2x32xf32>
    %cst_49 = arith.constant 1.000000e+00 : f32
    %178 = vector.broadcast %cst_49 : f32 to vector<2x32xf32>
    %179 = arith.addf %178, %177 : vector<2x32xf32>
    %180 = arith.divf %178, %179 : vector<2x32xf32>
    %181 = vector.extract_strided_slice %169 {offsets = [0, 32], sizes = [2, 32], strides = [1, 1]} : vector<2x96xf32> to vector<2x32xf32>
    %182 = vector.extract_strided_slice %171 {offsets = [0, 32], sizes = [2, 32], strides = [1, 1]} : vector<2x96xf32> to vector<2x32xf32>
    %183 = arith.addf %181, %182 : vector<2x32xf32>
    %184 = arith.negf %183 : vector<2x32xf32>
    %185 = math.exp %184 : vector<2x32xf32>
    %cst_50 = arith.constant 1.000000e+00 : f32
    %186 = vector.broadcast %cst_50 : f32 to vector<2x32xf32>
    %187 = arith.addf %186, %185 : vector<2x32xf32>
    %188 = arith.divf %186, %187 : vector<2x32xf32>
    %189 = vector.extract_strided_slice %169 {offsets = [0, 64], sizes = [2, 32], strides = [1, 1]} : vector<2x96xf32> to vector<2x32xf32>
    %190 = vector.extract_strided_slice %171 {offsets = [0, 64], sizes = [2, 32], strides = [1, 1]} : vector<2x96xf32> to vector<2x32xf32>
    %191 = arith.mulf %180, %190 : vector<2x32xf32>
    %192 = arith.addf %189, %191 : vector<2x32xf32>
    %193 = math.tanh %192 : vector<2x32xf32>
    %cst_51 = arith.constant 1.000000e+00 : f32
    %194 = vector.broadcast %cst_51 : f32 to vector<2x32xf32>
    %195 = arith.subf %194, %188 : vector<2x32xf32>
    %196 = arith.mulf %195, %193 : vector<2x32xf32>
    %197 = arith.mulf %188, %172 : vector<2x32xf32>
    %198 = arith.addf %196, %197 : vector<2x32xf32>
    %199 = vector.extract_strided_slice %168 {offsets = [0, 96], sizes = [2, 96], strides = [1, 1]} : vector<2x192xf32> to vector<2x96xf32>
    %200 = vector.extract_strided_slice %164 {offsets = [0, 32], sizes = [2, 32], strides = [1, 1]} : vector<2x64xf32> to vector<2x32xf32>
    %201 = vector.extract_strided_slice %170 {offsets = [0, 0], sizes = [2, 32], strides = [1, 1]} : vector<2x96xf32> to vector<2x32xf32>
    %202 = vector.extract_strided_slice %199 {offsets = [0, 0], sizes = [2, 32], strides = [1, 1]} : vector<2x96xf32> to vector<2x32xf32>
    %203 = arith.addf %201, %202 : vector<2x32xf32>
    %204 = arith.negf %203 : vector<2x32xf32>
    %205 = math.exp %204 : vector<2x32xf32>
    %cst_52 = arith.constant 1.000000e+00 : f32
    %206 = vector.broadcast %cst_52 : f32 to vector<2x32xf32>
    %207 = arith.addf %206, %205 : vector<2x32xf32>
    %208 = arith.divf %206, %207 : vector<2x32xf32>
    %209 = vector.extract_strided_slice %170 {offsets = [0, 32], sizes = [2, 32], strides = [1, 1]} : vector<2x96xf32> to vector<2x32xf32>
    %210 = vector.extract_strided_slice %199 {offsets = [0, 32], sizes = [2, 32], strides = [1, 1]} : vector<2x96xf32> to vector<2x32xf32>
    %211 = arith.addf %209, %210 : vector<2x32xf32>
    %212 = arith.negf %211 : vector<2x32xf32>
    %213 = math.exp %212 : vector<2x32xf32>
    %cst_53 = arith.constant 1.000000e+00 : f32
    %214 = vector.broadcast %cst_53 : f32 to vector<2x32xf32>
    %215 = arith.addf %214, %213 : vector<2x32xf32>
    %216 = arith.divf %214, %215 : vector<2x32xf32>
    %217 = vector.extract_strided_slice %170 {offsets = [0, 64], sizes = [2, 32], strides = [1, 1]} : vector<2x96xf32> to vector<2x32xf32>
    %218 = vector.extract_strided_slice %199 {offsets = [0, 64], sizes = [2, 32], strides = [1, 1]} : vector<2x96xf32> to vector<2x32xf32>
    %219 = arith.mulf %208, %218 : vector<2x32xf32>
    %220 = arith.addf %217, %219 : vector<2x32xf32>
    %221 = math.tanh %220 : vector<2x32xf32>
    %cst_54 = arith.constant 1.000000e+00 : f32
    %222 = vector.broadcast %cst_54 : f32 to vector<2x32xf32>
    %223 = arith.subf %222, %216 : vector<2x32xf32>
    %224 = arith.mulf %223, %221 : vector<2x32xf32>
    %225 = arith.mulf %216, %200 : vector<2x32xf32>
    %226 = arith.addf %224, %225 : vector<2x32xf32>
    %c4_55 = arith.constant 4 : index
    %c0_56 = arith.constant 0 : index
    %227 = vector.load %arg16[%c4_55, %c0_56] : memref<16x64xf32, #tpu.memory_space<vmem>>, vector<2x32xf32>
    tpu.vector_store %arg16[%c4_55, %c0_56], %198 {strides = array<i32>} : memref<16x64xf32, #tpu.memory_space<vmem>>, vector<2x32xf32>,
    %c10_57 = arith.constant 10 : index
    %c32_58 = arith.constant 32 : index
    %228 = vector.load %arg16[%c10_57, %c32_58] : memref<16x64xf32, #tpu.memory_space<vmem>>, vector<2x32xf32>
    tpu.vector_store %arg16[%c10_57, %c32_58], %226 {strides = array<i32>} : memref<16x64xf32, #tpu.memory_space<vmem>>, vector<2x32xf32>,
    %229 = tpu.concatenate %198, %226 in 1 : vector<2x32xf32>, vector<2x32xf32> -> vector<2x64xf32>
    %230 = arith.truncf %229 : vector<2x64xf32> to vector<2x64xbf16>
    %cst_59 = arith.constant dense<0.000000e+00> : vector<2x192xf32>
    %231 = tpu.matmul %230, %32, %cst_59 {dimension_numbers = #tpu.dot_dimension_numbers<[1], [0], [0], [1], [0, 0, 1, 1], [], []>} : vector<2x64xbf16>, vector<64x192xbf16>, vector<2x192xf32> -> vector<2x192xf32>
    %232 = vector.broadcast %33 : vector<1x192xf32> to vector<2x192xf32>
    %233 = arith.addf %231, %232 : vector<2x192xf32>
    %c6 = arith.constant 6 : index
    %c0_60 = arith.constant 0 : index
    %234 = vector.load %arg15[%c6, %c0_60] : memref<16x192xf32, #tpu.memory_space<vmem>>, vector<2x96xf32>
    %c8 = arith.constant 8 : index
    %c96_61 = arith.constant 96 : index
    %235 = vector.load %arg15[%c8, %c96_61] : memref<16x192xf32, #tpu.memory_space<vmem>>, vector<2x96xf32>
    %236 = vector.extract_strided_slice %233 {offsets = [0, 0], sizes = [2, 96], strides = [1, 1]} : vector<2x192xf32> to vector<2x96xf32>
    %237 = vector.extract_strided_slice %229 {offsets = [0, 0], sizes = [2, 32], strides = [1, 1]} : vector<2x64xf32> to vector<2x32xf32>
    %238 = vector.extract_strided_slice %234 {offsets = [0, 0], sizes = [2, 32], strides = [1, 1]} : vector<2x96xf32> to vector<2x32xf32>
    %239 = vector.extract_strided_slice %236 {offsets = [0, 0], sizes = [2, 32], strides = [1, 1]} : vector<2x96xf32> to vector<2x32xf32>
    %240 = arith.addf %238, %239 : vector<2x32xf32>
    %241 = arith.negf %240 : vector<2x32xf32>
    %242 = math.exp %241 : vector<2x32xf32>
    %cst_62 = arith.constant 1.000000e+00 : f32
    %243 = vector.broadcast %cst_62 : f32 to vector<2x32xf32>
    %244 = arith.addf %243, %242 : vector<2x32xf32>
    %245 = arith.divf %243, %244 : vector<2x32xf32>
    %246 = vector.extract_strided_slice %234 {offsets = [0, 32], sizes = [2, 32], strides = [1, 1]} : vector<2x96xf32> to vector<2x32xf32>
    %247 = vector.extract_strided_slice %236 {offsets = [0, 32], sizes = [2, 32], strides = [1, 1]} : vector<2x96xf32> to vector<2x32xf32>
    %248 = arith.addf %246, %247 : vector<2x32xf32>
    %249 = arith.negf %248 : vector<2x32xf32>
    %250 = math.exp %249 : vector<2x32xf32>
    %cst_63 = arith.constant 1.000000e+00 : f32
    %251 = vector.broadcast %cst_63 : f32 to vector<2x32xf32>
    %252 = arith.addf %251, %250 : vector<2x32xf32>
    %253 = arith.divf %251, %252 : vector<2x32xf32>
    %254 = vector.extract_strided_slice %234 {offsets = [0, 64], sizes = [2, 32], strides = [1, 1]} : vector<2x96xf32> to vector<2x32xf32>
    %255 = vector.extract_strided_slice %236 {offsets = [0, 64], sizes = [2, 32], strides = [1, 1]} : vector<2x96xf32> to vector<2x32xf32>
    %256 = arith.mulf %245, %255 : vector<2x32xf32>
    %257 = arith.addf %254, %256 : vector<2x32xf32>
    %258 = math.tanh %257 : vector<2x32xf32>
    %cst_64 = arith.constant 1.000000e+00 : f32
    %259 = vector.broadcast %cst_64 : f32 to vector<2x32xf32>
    %260 = arith.subf %259, %253 : vector<2x32xf32>
    %261 = arith.mulf %260, %258 : vector<2x32xf32>
    %262 = arith.mulf %253, %237 : vector<2x32xf32>
    %263 = arith.addf %261, %262 : vector<2x32xf32>
    %264 = vector.extract_strided_slice %233 {offsets = [0, 96], sizes = [2, 96], strides = [1, 1]} : vector<2x192xf32> to vector<2x96xf32>
    %265 = vector.extract_strided_slice %229 {offsets = [0, 32], sizes = [2, 32], strides = [1, 1]} : vector<2x64xf32> to vector<2x32xf32>
    %266 = vector.extract_strided_slice %235 {offsets = [0, 0], sizes = [2, 32], strides = [1, 1]} : vector<2x96xf32> to vector<2x32xf32>
    %267 = vector.extract_strided_slice %264 {offsets = [0, 0], sizes = [2, 32], strides = [1, 1]} : vector<2x96xf32> to vector<2x32xf32>
    %268 = arith.addf %266, %267 : vector<2x32xf32>
    %269 = arith.negf %268 : vector<2x32xf32>
    %270 = math.exp %269 : vector<2x32xf32>
    %cst_65 = arith.constant 1.000000e+00 : f32
    %271 = vector.broadcast %cst_65 : f32 to vector<2x32xf32>
    %272 = arith.addf %271, %270 : vector<2x32xf32>
    %273 = arith.divf %271, %272 : vector<2x32xf32>
    %274 = vector.extract_strided_slice %235 {offsets = [0, 32], sizes = [2, 32], strides = [1, 1]} : vector<2x96xf32> to vector<2x32xf32>
    %275 = vector.extract_strided_slice %264 {offsets = [0, 32], sizes = [2, 32], strides = [1, 1]} : vector<2x96xf32> to vector<2x32xf32>
    %276 = arith.addf %274, %275 : vector<2x32xf32>
    %277 = arith.negf %276 : vector<2x32xf32>
    %278 = math.exp %277 : vector<2x32xf32>
    %cst_66 = arith.constant 1.000000e+00 : f32
    %279 = vector.broadcast %cst_66 : f32 to vector<2x32xf32>
    %280 = arith.addf %279, %278 : vector<2x32xf32>
    %281 = arith.divf %279, %280 : vector<2x32xf32>
    %282 = vector.extract_strided_slice %235 {offsets = [0, 64], sizes = [2, 32], strides = [1, 1]} : vector<2x96xf32> to vector<2x32xf32>
    %283 = vector.extract_strided_slice %264 {offsets = [0, 64], sizes = [2, 32], strides = [1, 1]} : vector<2x96xf32> to vector<2x32xf32>
    %284 = arith.mulf %273, %283 : vector<2x32xf32>
    %285 = arith.addf %282, %284 : vector<2x32xf32>
    %286 = math.tanh %285 : vector<2x32xf32>
    %cst_67 = arith.constant 1.000000e+00 : f32
    %287 = vector.broadcast %cst_67 : f32 to vector<2x32xf32>
    %288 = arith.subf %287, %281 : vector<2x32xf32>
    %289 = arith.mulf %288, %286 : vector<2x32xf32>
    %290 = arith.mulf %281, %265 : vector<2x32xf32>
    %291 = arith.addf %289, %290 : vector<2x32xf32>
    %c6_68 = arith.constant 6 : index
    %c0_69 = arith.constant 0 : index
    %292 = vector.load %arg16[%c6_68, %c0_69] : memref<16x64xf32, #tpu.memory_space<vmem>>, vector<2x32xf32>
    tpu.vector_store %arg16[%c6_68, %c0_69], %263 {strides = array<i32>} : memref<16x64xf32, #tpu.memory_space<vmem>>, vector<2x32xf32>,
    %c8_70 = arith.constant 8 : index
    %c32_71 = arith.constant 32 : index
    %293 = vector.load %arg16[%c8_70, %c32_71] : memref<16x64xf32, #tpu.memory_space<vmem>>, vector<2x32xf32>
    tpu.vector_store %arg16[%c8_70, %c32_71], %291 {strides = array<i32>} : memref<16x64xf32, #tpu.memory_space<vmem>>, vector<2x32xf32>,
    %294 = tpu.concatenate %263, %291 in 1 : vector<2x32xf32>, vector<2x32xf32> -> vector<2x64xf32>
    %295 = arith.truncf %294 : vector<2x64xf32> to vector<2x64xbf16>
    %cst_72 = arith.constant dense<0.000000e+00> : vector<2x192xf32>
    %296 = tpu.matmul %295, %32, %cst_72 {dimension_numbers = #tpu.dot_dimension_numbers<[1], [0], [0], [1], [0, 0, 1, 1], [], []>} : vector<2x64xbf16>, vector<64x192xbf16>, vector<2x192xf32> -> vector<2x192xf32>
    %297 = vector.broadcast %33 : vector<1x192xf32> to vector<2x192xf32>
    %298 = arith.addf %296, %297 : vector<2x192xf32>
    %c8_73 = arith.constant 8 : index
    %c0_74 = arith.constant 0 : index
    %299 = vector.load %arg15[%c8_73, %c0_74] : memref<16x192xf32, #tpu.memory_space<vmem>>, vector<2x96xf32>
    %c6_75 = arith.constant 6 : index
    %c96_76 = arith.constant 96 : index
    %300 = vector.load %arg15[%c6_75, %c96_76] : memref<16x192xf32, #tpu.memory_space<vmem>>, vector<2x96xf32>
    %301 = vector.extract_strided_slice %298 {offsets = [0, 0], sizes = [2, 96], strides = [1, 1]} : vector<2x192xf32> to vector<2x96xf32>
    %302 = vector.extract_strided_slice %294 {offsets = [0, 0], sizes = [2, 32], strides = [1, 1]} : vector<2x64xf32> to vector<2x32xf32>
    %303 = vector.extract_strided_slice %299 {offsets = [0, 0], sizes = [2, 32], strides = [1, 1]} : vector<2x96xf32> to vector<2x32xf32>
    %304 = vector.extract_strided_slice %301 {offsets = [0, 0], sizes = [2, 32], strides = [1, 1]} : vector<2x96xf32> to vector<2x32xf32>
    %305 = arith.addf %303, %304 : vector<2x32xf32>
    %306 = arith.negf %305 : vector<2x32xf32>
    %307 = math.exp %306 : vector<2x32xf32>
    %cst_77 = arith.constant 1.000000e+00 : f32
    %308 = vector.broadcast %cst_77 : f32 to vector<2x32xf32>
    %309 = arith.addf %308, %307 : vector<2x32xf32>
    %310 = arith.divf %308, %309 : vector<2x32xf32>
    %311 = vector.extract_strided_slice %299 {offsets = [0, 32], sizes = [2, 32], strides = [1, 1]} : vector<2x96xf32> to vector<2x32xf32>
    %312 = vector.extract_strided_slice %301 {offsets = [0, 32], sizes = [2, 32], strides = [1, 1]} : vector<2x96xf32> to vector<2x32xf32>
    %313 = arith.addf %311, %312 : vector<2x32xf32>
    %314 = arith.negf %313 : vector<2x32xf32>
    %315 = math.exp %314 : vector<2x32xf32>
    %cst_78 = arith.constant 1.000000e+00 : f32
    %316 = vector.broadcast %cst_78 : f32 to vector<2x32xf32>
    %317 = arith.addf %316, %315 : vector<2x32xf32>
    %318 = arith.divf %316, %317 : vector<2x32xf32>
    %319 = vector.extract_strided_slice %299 {offsets = [0, 64], sizes = [2, 32], strides = [1, 1]} : vector<2x96xf32> to vector<2x32xf32>
    %320 = vector.extract_strided_slice %301 {offsets = [0, 64], sizes = [2, 32], strides = [1, 1]} : vector<2x96xf32> to vector<2x32xf32>
    %321 = arith.mulf %310, %320 : vector<2x32xf32>
    %322 = arith.addf %319, %321 : vector<2x32xf32>
    %323 = math.tanh %322 : vector<2x32xf32>
    %cst_79 = arith.constant 1.000000e+00 : f32
    %324 = vector.broadcast %cst_79 : f32 to vector<2x32xf32>
    %325 = arith.subf %324, %318 : vector<2x32xf32>
    %326 = arith.mulf %325, %323 : vector<2x32xf32>
    %327 = arith.mulf %318, %302 : vector<2x32xf32>
    %328 = arith.addf %326, %327 : vector<2x32xf32>
    %329 = vector.extract_strided_slice %298 {offsets = [0, 96], sizes = [2, 96], strides = [1, 1]} : vector<2x192xf32> to vector<2x96xf32>
    %330 = vector.extract_strided_slice %294 {offsets = [0, 32], sizes = [2, 32], strides = [1, 1]} : vector<2x64xf32> to vector<2x32xf32>
    %331 = vector.extract_strided_slice %300 {offsets = [0, 0], sizes = [2, 32], strides = [1, 1]} : vector<2x96xf32> to vector<2x32xf32>
    %332 = vector.extract_strided_slice %329 {offsets = [0, 0], sizes = [2, 32], strides = [1, 1]} : vector<2x96xf32> to vector<2x32xf32>
    %333 = arith.addf %331, %332 : vector<2x32xf32>
    %334 = arith.negf %333 : vector<2x32xf32>
    %335 = math.exp %334 : vector<2x32xf32>
    %cst_80 = arith.constant 1.000000e+00 : f32
    %336 = vector.broadcast %cst_80 : f32 to vector<2x32xf32>
    %337 = arith.addf %336, %335 : vector<2x32xf32>
    %338 = arith.divf %336, %337 : vector<2x32xf32>
    %339 = vector.extract_strided_slice %300 {offsets = [0, 32], sizes = [2, 32], strides = [1, 1]} : vector<2x96xf32> to vector<2x32xf32>
    %340 = vector.extract_strided_slice %329 {offsets = [0, 32], sizes = [2, 32], strides = [1, 1]} : vector<2x96xf32> to vector<2x32xf32>
    %341 = arith.addf %339, %340 : vector<2x32xf32>
    %342 = arith.negf %341 : vector<2x32xf32>
    %343 = math.exp %342 : vector<2x32xf32>
    %cst_81 = arith.constant 1.000000e+00 : f32
    %344 = vector.broadcast %cst_81 : f32 to vector<2x32xf32>
    %345 = arith.addf %344, %343 : vector<2x32xf32>
    %346 = arith.divf %344, %345 : vector<2x32xf32>
    %347 = vector.extract_strided_slice %300 {offsets = [0, 64], sizes = [2, 32], strides = [1, 1]} : vector<2x96xf32> to vector<2x32xf32>
    %348 = vector.extract_strided_slice %329 {offsets = [0, 64], sizes = [2, 32], strides = [1, 1]} : vector<2x96xf32> to vector<2x32xf32>
    %349 = arith.mulf %338, %348 : vector<2x32xf32>
    %350 = arith.addf %347, %349 : vector<2x32xf32>
    %351 = math.tanh %350 : vector<2x32xf32>
    %cst_82 = arith.constant 1.000000e+00 : f32
    %352 = vector.broadcast %cst_82 : f32 to vector<2x32xf32>
    %353 = arith.subf %352, %346 : vector<2x32xf32>
    %354 = arith.mulf %353, %351 : vector<2x32xf32>
    %355 = arith.mulf %346, %330 : vector<2x32xf32>
    %356 = arith.addf %354, %355 : vector<2x32xf32>
    %c8_83 = arith.constant 8 : index
    %c0_84 = arith.constant 0 : index
    %357 = vector.load %arg16[%c8_83, %c0_84] : memref<16x64xf32, #tpu.memory_space<vmem>>, vector<2x32xf32>
    tpu.vector_store %arg16[%c8_83, %c0_84], %328 {strides = array<i32>} : memref<16x64xf32, #tpu.memory_space<vmem>>, vector<2x32xf32>,
    %c6_85 = arith.constant 6 : index
    %c32_86 = arith.constant 32 : index
    %358 = vector.load %arg16[%c6_85, %c32_86] : memref<16x64xf32, #tpu.memory_space<vmem>>, vector<2x32xf32>
    tpu.vector_store %arg16[%c6_85, %c32_86], %356 {strides = array<i32>} : memref<16x64xf32, #tpu.memory_space<vmem>>, vector<2x32xf32>,
    %359 = tpu.concatenate %328, %356 in 1 : vector<2x32xf32>, vector<2x32xf32> -> vector<2x64xf32>
    %360 = arith.truncf %359 : vector<2x64xf32> to vector<2x64xbf16>
    %cst_87 = arith.constant dense<0.000000e+00> : vector<2x192xf32>
    %361 = tpu.matmul %360, %32, %cst_87 {dimension_numbers = #tpu.dot_dimension_numbers<[1], [0], [0], [1], [0, 0, 1, 1], [], []>} : vector<2x64xbf16>, vector<64x192xbf16>, vector<2x192xf32> -> vector<2x192xf32>
    %362 = vector.broadcast %33 : vector<1x192xf32> to vector<2x192xf32>
    %363 = arith.addf %361, %362 : vector<2x192xf32>
    %c10_88 = arith.constant 10 : index
    %c0_89 = arith.constant 0 : index
    %364 = vector.load %arg15[%c10_88, %c0_89] : memref<16x192xf32, #tpu.memory_space<vmem>>, vector<2x96xf32>
    %c4_90 = arith.constant 4 : index
    %c96_91 = arith.constant 96 : index
    %365 = vector.load %arg15[%c4_90, %c96_91] : memref<16x192xf32, #tpu.memory_space<vmem>>, vector<2x96xf32>
    %366 = vector.extract_strided_slice %363 {offsets = [0, 0], sizes = [2, 96], strides = [1, 1]} : vector<2x192xf32> to vector<2x96xf32>
    %367 = vector.extract_strided_slice %359 {offsets = [0, 0], sizes = [2, 32], strides = [1, 1]} : vector<2x64xf32> to vector<2x32xf32>
    %368 = vector.extract_strided_slice %364 {offsets = [0, 0], sizes = [2, 32], strides = [1, 1]} : vector<2x96xf32> to vector<2x32xf32>
    %369 = vector.extract_strided_slice %366 {offsets = [0, 0], sizes = [2, 32], strides = [1, 1]} : vector<2x96xf32> to vector<2x32xf32>
    %370 = arith.addf %368, %369 : vector<2x32xf32>
    %371 = arith.negf %370 : vector<2x32xf32>
    %372 = math.exp %371 : vector<2x32xf32>
    %cst_92 = arith.constant 1.000000e+00 : f32
    %373 = vector.broadcast %cst_92 : f32 to vector<2x32xf32>
    %374 = arith.addf %373, %372 : vector<2x32xf32>
    %375 = arith.divf %373, %374 : vector<2x32xf32>
    %376 = vector.extract_strided_slice %364 {offsets = [0, 32], sizes = [2, 32], strides = [1, 1]} : vector<2x96xf32> to vector<2x32xf32>
    %377 = vector.extract_strided_slice %366 {offsets = [0, 32], sizes = [2, 32], strides = [1, 1]} : vector<2x96xf32> to vector<2x32xf32>
    %378 = arith.addf %376, %377 : vector<2x32xf32>
    %379 = arith.negf %378 : vector<2x32xf32>
    %380 = math.exp %379 : vector<2x32xf32>
    %cst_93 = arith.constant 1.000000e+00 : f32
    %381 = vector.broadcast %cst_93 : f32 to vector<2x32xf32>
    %382 = arith.addf %381, %380 : vector<2x32xf32>
    %383 = arith.divf %381, %382 : vector<2x32xf32>
    %384 = vector.extract_strided_slice %364 {offsets = [0, 64], sizes = [2, 32], strides = [1, 1]} : vector<2x96xf32> to vector<2x32xf32>
    %385 = vector.extract_strided_slice %366 {offsets = [0, 64], sizes = [2, 32], strides = [1, 1]} : vector<2x96xf32> to vector<2x32xf32>
    %386 = arith.mulf %375, %385 : vector<2x32xf32>
    %387 = arith.addf %384, %386 : vector<2x32xf32>
    %388 = math.tanh %387 : vector<2x32xf32>
    %cst_94 = arith.constant 1.000000e+00 : f32
    %389 = vector.broadcast %cst_94 : f32 to vector<2x32xf32>
    %390 = arith.subf %389, %383 : vector<2x32xf32>
    %391 = arith.mulf %390, %388 : vector<2x32xf32>
    %392 = arith.mulf %383, %367 : vector<2x32xf32>
    %393 = arith.addf %391, %392 : vector<2x32xf32>
    %394 = vector.extract_strided_slice %363 {offsets = [0, 96], sizes = [2, 96], strides = [1, 1]} : vector<2x192xf32> to vector<2x96xf32>
    %395 = vector.extract_strided_slice %359 {offsets = [0, 32], sizes = [2, 32], strides = [1, 1]} : vector<2x64xf32> to vector<2x32xf32>
    %396 = vector.extract_strided_slice %365 {offsets = [0, 0], sizes = [2, 32], strides = [1, 1]} : vector<2x96xf32> to vector<2x32xf32>
    %397 = vector.extract_strided_slice %394 {offsets = [0, 0], sizes = [2, 32], strides = [1, 1]} : vector<2x96xf32> to vector<2x32xf32>
    %398 = arith.addf %396, %397 : vector<2x32xf32>
    %399 = arith.negf %398 : vector<2x32xf32>
    %400 = math.exp %399 : vector<2x32xf32>
    %cst_95 = arith.constant 1.000000e+00 : f32
    %401 = vector.broadcast %cst_95 : f32 to vector<2x32xf32>
    %402 = arith.addf %401, %400 : vector<2x32xf32>
    %403 = arith.divf %401, %402 : vector<2x32xf32>
    %404 = vector.extract_strided_slice %365 {offsets = [0, 32], sizes = [2, 32], strides = [1, 1]} : vector<2x96xf32> to vector<2x32xf32>
    %405 = vector.extract_strided_slice %394 {offsets = [0, 32], sizes = [2, 32], strides = [1, 1]} : vector<2x96xf32> to vector<2x32xf32>
    %406 = arith.addf %404, %405 : vector<2x32xf32>
    %407 = arith.negf %406 : vector<2x32xf32>
    %408 = math.exp %407 : vector<2x32xf32>
    %cst_96 = arith.constant 1.000000e+00 : f32
    %409 = vector.broadcast %cst_96 : f32 to vector<2x32xf32>
    %410 = arith.addf %409, %408 : vector<2x32xf32>
    %411 = arith.divf %409, %410 : vector<2x32xf32>
    %412 = vector.extract_strided_slice %365 {offsets = [0, 64], sizes = [2, 32], strides = [1, 1]} : vector<2x96xf32> to vector<2x32xf32>
    %413 = vector.extract_strided_slice %394 {offsets = [0, 64], sizes = [2, 32], strides = [1, 1]} : vector<2x96xf32> to vector<2x32xf32>
    %414 = arith.mulf %403, %413 : vector<2x32xf32>
    %415 = arith.addf %412, %414 : vector<2x32xf32>
    %416 = math.tanh %415 : vector<2x32xf32>
    %cst_97 = arith.constant 1.000000e+00 : f32
    %417 = vector.broadcast %cst_97 : f32 to vector<2x32xf32>
    %418 = arith.subf %417, %411 : vector<2x32xf32>
    %419 = arith.mulf %418, %416 : vector<2x32xf32>
    %420 = arith.mulf %411, %395 : vector<2x32xf32>
    %421 = arith.addf %419, %420 : vector<2x32xf32>
    %c10_98 = arith.constant 10 : index
    %c0_99 = arith.constant 0 : index
    %422 = vector.load %arg16[%c10_98, %c0_99] : memref<16x64xf32, #tpu.memory_space<vmem>>, vector<2x32xf32>
    tpu.vector_store %arg16[%c10_98, %c0_99], %393 {strides = array<i32>} : memref<16x64xf32, #tpu.memory_space<vmem>>, vector<2x32xf32>,
    %c4_100 = arith.constant 4 : index
    %c32_101 = arith.constant 32 : index
    %423 = vector.load %arg16[%c4_100, %c32_101] : memref<16x64xf32, #tpu.memory_space<vmem>>, vector<2x32xf32>
    tpu.vector_store %arg16[%c4_100, %c32_101], %421 {strides = array<i32>} : memref<16x64xf32, #tpu.memory_space<vmem>>, vector<2x32xf32>,
    %424 = tpu.concatenate %393, %421 in 1 : vector<2x32xf32>, vector<2x32xf32> -> vector<2x64xf32>
    %425 = arith.truncf %424 : vector<2x64xf32> to vector<2x64xbf16>
    %cst_102 = arith.constant dense<0.000000e+00> : vector<2x192xf32>
    %426 = tpu.matmul %425, %32, %cst_102 {dimension_numbers = #tpu.dot_dimension_numbers<[1], [0], [0], [1], [0, 0, 1, 1], [], []>} : vector<2x64xbf16>, vector<64x192xbf16>, vector<2x192xf32> -> vector<2x192xf32>
    %427 = vector.broadcast %33 : vector<1x192xf32> to vector<2x192xf32>
    %428 = arith.addf %426, %427 : vector<2x192xf32>
    %c12_103 = arith.constant 12 : index
    %c0_104 = arith.constant 0 : index
    %429 = vector.load %arg15[%c12_103, %c0_104] : memref<16x192xf32, #tpu.memory_space<vmem>>, vector<2x96xf32>
    %c2_105 = arith.constant 2 : index
    %c96_106 = arith.constant 96 : index
    %430 = vector.load %arg15[%c2_105, %c96_106] : memref<16x192xf32, #tpu.memory_space<vmem>>, vector<2x96xf32>
    %431 = vector.extract_strided_slice %428 {offsets = [0, 0], sizes = [2, 96], strides = [1, 1]} : vector<2x192xf32> to vector<2x96xf32>
    %432 = vector.extract_strided_slice %424 {offsets = [0, 0], sizes = [2, 32], strides = [1, 1]} : vector<2x64xf32> to vector<2x32xf32>
    %433 = vector.extract_strided_slice %429 {offsets = [0, 0], sizes = [2, 32], strides = [1, 1]} : vector<2x96xf32> to vector<2x32xf32>
    %434 = vector.extract_strided_slice %431 {offsets = [0, 0], sizes = [2, 32], strides = [1, 1]} : vector<2x96xf32> to vector<2x32xf32>
    %435 = arith.addf %433, %434 : vector<2x32xf32>
    %436 = arith.negf %435 : vector<2x32xf32>
    %437 = math.exp %436 : vector<2x32xf32>
    %cst_107 = arith.constant 1.000000e+00 : f32
    %438 = vector.broadcast %cst_107 : f32 to vector<2x32xf32>
    %439 = arith.addf %438, %437 : vector<2x32xf32>
    %440 = arith.divf %438, %439 : vector<2x32xf32>
    %441 = vector.extract_strided_slice %429 {offsets = [0, 32], sizes = [2, 32], strides = [1, 1]} : vector<2x96xf32> to vector<2x32xf32>
    %442 = vector.extract_strided_slice %431 {offsets = [0, 32], sizes = [2, 32], strides = [1, 1]} : vector<2x96xf32> to vector<2x32xf32>
    %443 = arith.addf %441, %442 : vector<2x32xf32>
    %444 = arith.negf %443 : vector<2x32xf32>
    %445 = math.exp %444 : vector<2x32xf32>
    %cst_108 = arith.constant 1.000000e+00 : f32
    %446 = vector.broadcast %cst_108 : f32 to vector<2x32xf32>
    %447 = arith.addf %446, %445 : vector<2x32xf32>
    %448 = arith.divf %446, %447 : vector<2x32xf32>
    %449 = vector.extract_strided_slice %429 {offsets = [0, 64], sizes = [2, 32], strides = [1, 1]} : vector<2x96xf32> to vector<2x32xf32>
    %450 = vector.extract_strided_slice %431 {offsets = [0, 64], sizes = [2, 32], strides = [1, 1]} : vector<2x96xf32> to vector<2x32xf32>
    %451 = arith.mulf %440, %450 : vector<2x32xf32>
    %452 = arith.addf %449, %451 : vector<2x32xf32>
    %453 = math.tanh %452 : vector<2x32xf32>
    %cst_109 = arith.constant 1.000000e+00 : f32
    %454 = vector.broadcast %cst_109 : f32 to vector<2x32xf32>
    %455 = arith.subf %454, %448 : vector<2x32xf32>
    %456 = arith.mulf %455, %453 : vector<2x32xf32>
    %457 = arith.mulf %448, %432 : vector<2x32xf32>
    %458 = arith.addf %456, %457 : vector<2x32xf32>
    %459 = vector.extract_strided_slice %428 {offsets = [0, 96], sizes = [2, 96], strides = [1, 1]} : vector<2x192xf32> to vector<2x96xf32>
    %460 = vector.extract_strided_slice %424 {offsets = [0, 32], sizes = [2, 32], strides = [1, 1]} : vector<2x64xf32> to vector<2x32xf32>
    %461 = vector.extract_strided_slice %430 {offsets = [0, 0], sizes = [2, 32], strides = [1, 1]} : vector<2x96xf32> to vector<2x32xf32>
    %462 = vector.extract_strided_slice %459 {offsets = [0, 0], sizes = [2, 32], strides = [1, 1]} : vector<2x96xf32> to vector<2x32xf32>
    %463 = arith.addf %461, %462 : vector<2x32xf32>
    %464 = arith.negf %463 : vector<2x32xf32>
    %465 = math.exp %464 : vector<2x32xf32>
    %cst_110 = arith.constant 1.000000e+00 : f32
    %466 = vector.broadcast %cst_110 : f32 to vector<2x32xf32>
    %467 = arith.addf %466, %465 : vector<2x32xf32>
    %468 = arith.divf %466, %467 : vector<2x32xf32>
    %469 = vector.extract_strided_slice %430 {offsets = [0, 32], sizes = [2, 32], strides = [1, 1]} : vector<2x96xf32> to vector<2x32xf32>
    %470 = vector.extract_strided_slice %459 {offsets = [0, 32], sizes = [2, 32], strides = [1, 1]} : vector<2x96xf32> to vector<2x32xf32>
    %471 = arith.addf %469, %470 : vector<2x32xf32>
    %472 = arith.negf %471 : vector<2x32xf32>
    %473 = math.exp %472 : vector<2x32xf32>
    %cst_111 = arith.constant 1.000000e+00 : f32
    %474 = vector.broadcast %cst_111 : f32 to vector<2x32xf32>
    %475 = arith.addf %474, %473 : vector<2x32xf32>
    %476 = arith.divf %474, %475 : vector<2x32xf32>
    %477 = vector.extract_strided_slice %430 {offsets = [0, 64], sizes = [2, 32], strides = [1, 1]} : vector<2x96xf32> to vector<2x32xf32>
    %478 = vector.extract_strided_slice %459 {offsets = [0, 64], sizes = [2, 32], strides = [1, 1]} : vector<2x96xf32> to vector<2x32xf32>
    %479 = arith.mulf %468, %478 : vector<2x32xf32>
    %480 = arith.addf %477, %479 : vector<2x32xf32>
    %481 = math.tanh %480 : vector<2x32xf32>
    %cst_112 = arith.constant 1.000000e+00 : f32
    %482 = vector.broadcast %cst_112 : f32 to vector<2x32xf32>
    %483 = arith.subf %482, %476 : vector<2x32xf32>
    %484 = arith.mulf %483, %481 : vector<2x32xf32>
    %485 = arith.mulf %476, %460 : vector<2x32xf32>
    %486 = arith.addf %484, %485 : vector<2x32xf32>
    %c12_113 = arith.constant 12 : index
    %c0_114 = arith.constant 0 : index
    %487 = vector.load %arg16[%c12_113, %c0_114] : memref<16x64xf32, #tpu.memory_space<vmem>>, vector<2x32xf32>
    tpu.vector_store %arg16[%c12_113, %c0_114], %458 {strides = array<i32>} : memref<16x64xf32, #tpu.memory_space<vmem>>, vector<2x32xf32>,
    %c2_115 = arith.constant 2 : index
    %c32_116 = arith.constant 32 : index
    %488 = vector.load %arg16[%c2_115, %c32_116] : memref<16x64xf32, #tpu.memory_space<vmem>>, vector<2x32xf32>
    tpu.vector_store %arg16[%c2_115, %c32_116], %486 {strides = array<i32>} : memref<16x64xf32, #tpu.memory_space<vmem>>, vector<2x32xf32>,
    %489 = tpu.concatenate %458, %486 in 1 : vector<2x32xf32>, vector<2x32xf32> -> vector<2x64xf32>
    %490 = arith.truncf %489 : vector<2x64xf32> to vector<2x64xbf16>
    %cst_117 = arith.constant dense<0.000000e+00> : vector<2x192xf32>
    %491 = tpu.matmul %490, %32, %cst_117 {dimension_numbers = #tpu.dot_dimension_numbers<[1], [0], [0], [1], [0, 0, 1, 1], [], []>} : vector<2x64xbf16>, vector<64x192xbf16>, vector<2x192xf32> -> vector<2x192xf32>
    %492 = vector.broadcast %33 : vector<1x192xf32> to vector<2x192xf32>
    %493 = arith.addf %491, %492 : vector<2x192xf32>
    %c14_118 = arith.constant 14 : index
    %c0_119 = arith.constant 0 : index
    %494 = vector.load %arg15[%c14_118, %c0_119] : memref<16x192xf32, #tpu.memory_space<vmem>>, vector<2x96xf32>
    %c0_120 = arith.constant 0 : index
    %c96_121 = arith.constant 96 : index
    %495 = vector.load %arg15[%c0_120, %c96_121] : memref<16x192xf32, #tpu.memory_space<vmem>>, vector<2x96xf32>
    %496 = vector.extract_strided_slice %493 {offsets = [0, 0], sizes = [2, 96], strides = [1, 1]} : vector<2x192xf32> to vector<2x96xf32>
    %497 = vector.extract_strided_slice %489 {offsets = [0, 0], sizes = [2, 32], strides = [1, 1]} : vector<2x64xf32> to vector<2x32xf32>
    %498 = vector.extract_strided_slice %494 {offsets = [0, 0], sizes = [2, 32], strides = [1, 1]} : vector<2x96xf32> to vector<2x32xf32>
    %499 = vector.extract_strided_slice %496 {offsets = [0, 0], sizes = [2, 32], strides = [1, 1]} : vector<2x96xf32> to vector<2x32xf32>
    %500 = arith.addf %498, %499 : vector<2x32xf32>
    %501 = arith.negf %500 : vector<2x32xf32>
    %502 = math.exp %501 : vector<2x32xf32>
    %cst_122 = arith.constant 1.000000e+00 : f32
    %503 = vector.broadcast %cst_122 : f32 to vector<2x32xf32>
    %504 = arith.addf %503, %502 : vector<2x32xf32>
    %505 = arith.divf %503, %504 : vector<2x32xf32>
    %506 = vector.extract_strided_slice %494 {offsets = [0, 32], sizes = [2, 32], strides = [1, 1]} : vector<2x96xf32> to vector<2x32xf32>
    %507 = vector.extract_strided_slice %496 {offsets = [0, 32], sizes = [2, 32], strides = [1, 1]} : vector<2x96xf32> to vector<2x32xf32>
    %508 = arith.addf %506, %507 : vector<2x32xf32>
    %509 = arith.negf %508 : vector<2x32xf32>
    %510 = math.exp %509 : vector<2x32xf32>
    %cst_123 = arith.constant 1.000000e+00 : f32
    %511 = vector.broadcast %cst_123 : f32 to vector<2x32xf32>
    %512 = arith.addf %511, %510 : vector<2x32xf32>
    %513 = arith.divf %511, %512 : vector<2x32xf32>
    %514 = vector.extract_strided_slice %494 {offsets = [0, 64], sizes = [2, 32], strides = [1, 1]} : vector<2x96xf32> to vector<2x32xf32>
    %515 = vector.extract_strided_slice %496 {offsets = [0, 64], sizes = [2, 32], strides = [1, 1]} : vector<2x96xf32> to vector<2x32xf32>
    %516 = arith.mulf %505, %515 : vector<2x32xf32>
    %517 = arith.addf %514, %516 : vector<2x32xf32>
    %518 = math.tanh %517 : vector<2x32xf32>
    %cst_124 = arith.constant 1.000000e+00 : f32
    %519 = vector.broadcast %cst_124 : f32 to vector<2x32xf32>
    %520 = arith.subf %519, %513 : vector<2x32xf32>
    %521 = arith.mulf %520, %518 : vector<2x32xf32>
    %522 = arith.mulf %513, %497 : vector<2x32xf32>
    %523 = arith.addf %521, %522 : vector<2x32xf32>
    %524 = vector.extract_strided_slice %493 {offsets = [0, 96], sizes = [2, 96], strides = [1, 1]} : vector<2x192xf32> to vector<2x96xf32>
    %525 = vector.extract_strided_slice %489 {offsets = [0, 32], sizes = [2, 32], strides = [1, 1]} : vector<2x64xf32> to vector<2x32xf32>
    %526 = vector.extract_strided_slice %495 {offsets = [0, 0], sizes = [2, 32], strides = [1, 1]} : vector<2x96xf32> to vector<2x32xf32>
    %527 = vector.extract_strided_slice %524 {offsets = [0, 0], sizes = [2, 32], strides = [1, 1]} : vector<2x96xf32> to vector<2x32xf32>
    %528 = arith.addf %526, %527 : vector<2x32xf32>
    %529 = arith.negf %528 : vector<2x32xf32>
    %530 = math.exp %529 : vector<2x32xf32>
    %cst_125 = arith.constant 1.000000e+00 : f32
    %531 = vector.broadcast %cst_125 : f32 to vector<2x32xf32>
    %532 = arith.addf %531, %530 : vector<2x32xf32>
    %533 = arith.divf %531, %532 : vector<2x32xf32>
    %534 = vector.extract_strided_slice %495 {offsets = [0, 32], sizes = [2, 32], strides = [1, 1]} : vector<2x96xf32> to vector<2x32xf32>
    %535 = vector.extract_strided_slice %524 {offsets = [0, 32], sizes = [2, 32], strides = [1, 1]} : vector<2x96xf32> to vector<2x32xf32>
    %536 = arith.addf %534, %535 : vector<2x32xf32>
    %537 = arith.negf %536 : vector<2x32xf32>
    %538 = math.exp %537 : vector<2x32xf32>
    %cst_126 = arith.constant 1.000000e+00 : f32
    %539 = vector.broadcast %cst_126 : f32 to vector<2x32xf32>
    %540 = arith.addf %539, %538 : vector<2x32xf32>
    %541 = arith.divf %539, %540 : vector<2x32xf32>
    %542 = vector.extract_strided_slice %495 {offsets = [0, 64], sizes = [2, 32], strides = [1, 1]} : vector<2x96xf32> to vector<2x32xf32>
    %543 = vector.extract_strided_slice %524 {offsets = [0, 64], sizes = [2, 32], strides = [1, 1]} : vector<2x96xf32> to vector<2x32xf32>
    %544 = arith.mulf %533, %543 : vector<2x32xf32>
    %545 = arith.addf %542, %544 : vector<2x32xf32>
    %546 = math.tanh %545 : vector<2x32xf32>
    %cst_127 = arith.constant 1.000000e+00 : f32
    %547 = vector.broadcast %cst_127 : f32 to vector<2x32xf32>
    %548 = arith.subf %547, %541 : vector<2x32xf32>
    %549 = arith.mulf %548, %546 : vector<2x32xf32>
    %550 = arith.mulf %541, %525 : vector<2x32xf32>
    %551 = arith.addf %549, %550 : vector<2x32xf32>
    %c14_128 = arith.constant 14 : index
    %c0_129 = arith.constant 0 : index
    %552 = vector.load %arg16[%c14_128, %c0_129] : memref<16x64xf32, #tpu.memory_space<vmem>>, vector<2x32xf32>
    tpu.vector_store %arg16[%c14_128, %c0_129], %523 {strides = array<i32>} : memref<16x64xf32, #tpu.memory_space<vmem>>, vector<2x32xf32>,
    %c0_130 = arith.constant 0 : index
    %c32_131 = arith.constant 32 : index
    %553 = vector.load %arg16[%c0_130, %c32_131] : memref<16x64xf32, #tpu.memory_space<vmem>>, vector<2x32xf32>
    tpu.vector_store %arg16[%c0_130, %c32_131], %551 {strides = array<i32>} : memref<16x64xf32, #tpu.memory_space<vmem>>, vector<2x32xf32>,
    %c0_132 = arith.constant 0 : index
    %c0_133 = arith.constant 0 : index
    %554 = vector.load %arg16[%c0_132, %c0_133] : memref<16x64xf32, #tpu.memory_space<vmem>>, vector<16x64xf32>
    %555 = arith.truncf %554 : vector<16x64xf32> to vector<16x64xbf16>
    %c0_134 = arith.constant 0 : index
    %c0_135 = arith.constant 0 : index
    %556 = vector.load %arg8[%c0_134, %c0_135] : memref<64x192xbf16, #tpu.memory_space<vmem>>, vector<64x192xbf16>
    %cst_136 = arith.constant dense<0.000000e+00> : vector<16x192xf32>
    %557 = tpu.matmul %555, %556, %cst_136 {dimension_numbers = #tpu.dot_dimension_numbers<[1], [0], [0], [1], [0, 0, 1, 1], [], []>} : vector<16x64xbf16>, vector<64x192xbf16>, vector<16x192xf32> -> vector<16x192xf32>
    %c0_137 = arith.constant 0 : index
    %c0_138 = arith.constant 0 : index
    %558 = vector.load %arg9[%c0_137, %c0_138] : memref<1x192xf32, #tpu.memory_space<vmem>>, vector<1x192xf32>
    %559 = vector.broadcast %558 : vector<1x192xf32> to vector<16x192xf32>
    %560 = arith.addf %557, %559 : vector<16x192xf32>
    %c0_139 = arith.constant 0 : index
    %c0_140 = arith.constant 0 : index
    %561 = vector.load %arg15[%c0_139, %c0_140] : memref<16x192xf32, #tpu.memory_space<vmem>>, vector<16x192xf32>
    tpu.vector_store %arg15[%c0_139, %c0_140], %560 {strides = array<i32>} : memref<16x192xf32, #tpu.memory_space<vmem>>, vector<16x192xf32>,
    %c0_141 = arith.constant 0 : index
    %c0_142 = arith.constant 0 : index
    %562 = vector.load %arg10[%c0_141, %c0_142] : memref<64x192xbf16, #tpu.memory_space<vmem>>, vector<64x192xbf16>
    %c0_143 = arith.constant 0 : index
    %c0_144 = arith.constant 0 : index
    %563 = vector.load %arg11[%c0_143, %c0_144] : memref<1x192xf32, #tpu.memory_space<vmem>>, vector<1x192xf32>
    %cst_145 = arith.constant 0.000000e+00 : f32
    %564 = vector.broadcast %cst_145 : f32 to vector<2x64xf32>
    %565 = arith.truncf %564 : vector<2x64xf32> to vector<2x64xbf16>
    %cst_146 = arith.constant dense<0.000000e+00> : vector<2x192xf32>
    %566 = tpu.matmul %565, %562, %cst_146 {dimension_numbers = #tpu.dot_dimension_numbers<[1], [0], [0], [1], [0, 0, 1, 1], [], []>} : vector<2x64xbf16>, vector<64x192xbf16>, vector<2x192xf32> -> vector<2x192xf32>
    %567 = vector.broadcast %563 : vector<1x192xf32> to vector<2x192xf32>
    %568 = arith.addf %566, %567 : vector<2x192xf32>
    %c0_147 = arith.constant 0 : index
    %c0_148 = arith.constant 0 : index
    %569 = vector.load %arg15[%c0_147, %c0_148] : memref<16x192xf32, #tpu.memory_space<vmem>>, vector<2x96xf32>
    %c14_149 = arith.constant 14 : index
    %c96_150 = arith.constant 96 : index
    %570 = vector.load %arg15[%c14_149, %c96_150] : memref<16x192xf32, #tpu.memory_space<vmem>>, vector<2x96xf32>
    %571 = vector.extract_strided_slice %568 {offsets = [0, 0], sizes = [2, 96], strides = [1, 1]} : vector<2x192xf32> to vector<2x96xf32>
    %572 = vector.extract_strided_slice %564 {offsets = [0, 0], sizes = [2, 32], strides = [1, 1]} : vector<2x64xf32> to vector<2x32xf32>
    %573 = vector.extract_strided_slice %569 {offsets = [0, 0], sizes = [2, 32], strides = [1, 1]} : vector<2x96xf32> to vector<2x32xf32>
    %574 = vector.extract_strided_slice %571 {offsets = [0, 0], sizes = [2, 32], strides = [1, 1]} : vector<2x96xf32> to vector<2x32xf32>
    %575 = arith.addf %573, %574 : vector<2x32xf32>
    %576 = arith.negf %575 : vector<2x32xf32>
    %577 = math.exp %576 : vector<2x32xf32>
    %cst_151 = arith.constant 1.000000e+00 : f32
    %578 = vector.broadcast %cst_151 : f32 to vector<2x32xf32>
    %579 = arith.addf %578, %577 : vector<2x32xf32>
    %580 = arith.divf %578, %579 : vector<2x32xf32>
    %581 = vector.extract_strided_slice %569 {offsets = [0, 32], sizes = [2, 32], strides = [1, 1]} : vector<2x96xf32> to vector<2x32xf32>
    %582 = vector.extract_strided_slice %571 {offsets = [0, 32], sizes = [2, 32], strides = [1, 1]} : vector<2x96xf32> to vector<2x32xf32>
    %583 = arith.addf %581, %582 : vector<2x32xf32>
    %584 = arith.negf %583 : vector<2x32xf32>
    %585 = math.exp %584 : vector<2x32xf32>
    %cst_152 = arith.constant 1.000000e+00 : f32
    %586 = vector.broadcast %cst_152 : f32 to vector<2x32xf32>
    %587 = arith.addf %586, %585 : vector<2x32xf32>
    %588 = arith.divf %586, %587 : vector<2x32xf32>
    %589 = vector.extract_strided_slice %569 {offsets = [0, 64], sizes = [2, 32], strides = [1, 1]} : vector<2x96xf32> to vector<2x32xf32>
    %590 = vector.extract_strided_slice %571 {offsets = [0, 64], sizes = [2, 32], strides = [1, 1]} : vector<2x96xf32> to vector<2x32xf32>
    %591 = arith.mulf %580, %590 : vector<2x32xf32>
    %592 = arith.addf %589, %591 : vector<2x32xf32>
    %593 = math.tanh %592 : vector<2x32xf32>
    %cst_153 = arith.constant 1.000000e+00 : f32
    %594 = vector.broadcast %cst_153 : f32 to vector<2x32xf32>
    %595 = arith.subf %594, %588 : vector<2x32xf32>
    %596 = arith.mulf %595, %593 : vector<2x32xf32>
    %597 = arith.mulf %588, %572 : vector<2x32xf32>
    %598 = arith.addf %596, %597 : vector<2x32xf32>
    %599 = vector.extract_strided_slice %568 {offsets = [0, 96], sizes = [2, 96], strides = [1, 1]} : vector<2x192xf32> to vector<2x96xf32>
    %600 = vector.extract_strided_slice %564 {offsets = [0, 32], sizes = [2, 32], strides = [1, 1]} : vector<2x64xf32> to vector<2x32xf32>
    %601 = vector.extract_strided_slice %570 {offsets = [0, 0], sizes = [2, 32], strides = [1, 1]} : vector<2x96xf32> to vector<2x32xf32>
    %602 = vector.extract_strided_slice %599 {offsets = [0, 0], sizes = [2, 32], strides = [1, 1]} : vector<2x96xf32> to vector<2x32xf32>
    %603 = arith.addf %601, %602 : vector<2x32xf32>
    %604 = arith.negf %603 : vector<2x32xf32>
    %605 = math.exp %604 : vector<2x32xf32>
    %cst_154 = arith.constant 1.000000e+00 : f32
    %606 = vector.broadcast %cst_154 : f32 to vector<2x32xf32>
    %607 = arith.addf %606, %605 : vector<2x32xf32>
    %608 = arith.divf %606, %607 : vector<2x32xf32>
    %609 = vector.extract_strided_slice %570 {offsets = [0, 32], sizes = [2, 32], strides = [1, 1]} : vector<2x96xf32> to vector<2x32xf32>
    %610 = vector.extract_strided_slice %599 {offsets = [0, 32], sizes = [2, 32], strides = [1, 1]} : vector<2x96xf32> to vector<2x32xf32>
    %611 = arith.addf %609, %610 : vector<2x32xf32>
    %612 = arith.negf %611 : vector<2x32xf32>
    %613 = math.exp %612 : vector<2x32xf32>
    %cst_155 = arith.constant 1.000000e+00 : f32
    %614 = vector.broadcast %cst_155 : f32 to vector<2x32xf32>
    %615 = arith.addf %614, %613 : vector<2x32xf32>
    %616 = arith.divf %614, %615 : vector<2x32xf32>
    %617 = vector.extract_strided_slice %570 {offsets = [0, 64], sizes = [2, 32], strides = [1, 1]} : vector<2x96xf32> to vector<2x32xf32>
    %618 = vector.extract_strided_slice %599 {offsets = [0, 64], sizes = [2, 32], strides = [1, 1]} : vector<2x96xf32> to vector<2x32xf32>
    %619 = arith.mulf %608, %618 : vector<2x32xf32>
    %620 = arith.addf %617, %619 : vector<2x32xf32>
    %621 = math.tanh %620 : vector<2x32xf32>
    %cst_156 = arith.constant 1.000000e+00 : f32
    %622 = vector.broadcast %cst_156 : f32 to vector<2x32xf32>
    %623 = arith.subf %622, %616 : vector<2x32xf32>
    %624 = arith.mulf %623, %621 : vector<2x32xf32>
    %625 = arith.mulf %616, %600 : vector<2x32xf32>
    %626 = arith.addf %624, %625 : vector<2x32xf32>
    %c0_157 = arith.constant 0 : index
    %c0_158 = arith.constant 0 : index
    %627 = vector.load %arg16[%c0_157, %c0_158] : memref<16x64xf32, #tpu.memory_space<vmem>>, vector<2x32xf32>
    tpu.vector_store %arg16[%c0_157, %c0_158], %598 {strides = array<i32>} : memref<16x64xf32, #tpu.memory_space<vmem>>, vector<2x32xf32>,
    %c14_159 = arith.constant 14 : index
    %c32_160 = arith.constant 32 : index
    %628 = vector.load %arg16[%c14_159, %c32_160] : memref<16x64xf32, #tpu.memory_space<vmem>>, vector<2x32xf32>
    tpu.vector_store %arg16[%c14_159, %c32_160], %626 {strides = array<i32>} : memref<16x64xf32, #tpu.memory_space<vmem>>, vector<2x32xf32>,
    %629 = tpu.concatenate %598, %626 in 1 : vector<2x32xf32>, vector<2x32xf32> -> vector<2x64xf32>
    %630 = arith.truncf %629 : vector<2x64xf32> to vector<2x64xbf16>
    %cst_161 = arith.constant dense<0.000000e+00> : vector<2x192xf32>
    %631 = tpu.matmul %630, %562, %cst_161 {dimension_numbers = #tpu.dot_dimension_numbers<[1], [0], [0], [1], [0, 0, 1, 1], [], []>} : vector<2x64xbf16>, vector<64x192xbf16>, vector<2x192xf32> -> vector<2x192xf32>
    %632 = vector.broadcast %563 : vector<1x192xf32> to vector<2x192xf32>
    %633 = arith.addf %631, %632 : vector<2x192xf32>
    %c2_162 = arith.constant 2 : index
    %c0_163 = arith.constant 0 : index
    %634 = vector.load %arg15[%c2_162, %c0_163] : memref<16x192xf32, #tpu.memory_space<vmem>>, vector<2x96xf32>
    %c12_164 = arith.constant 12 : index
    %c96_165 = arith.constant 96 : index
    %635 = vector.load %arg15[%c12_164, %c96_165] : memref<16x192xf32, #tpu.memory_space<vmem>>, vector<2x96xf32>
    %636 = vector.extract_strided_slice %633 {offsets = [0, 0], sizes = [2, 96], strides = [1, 1]} : vector<2x192xf32> to vector<2x96xf32>
    %637 = vector.extract_strided_slice %629 {offsets = [0, 0], sizes = [2, 32], strides = [1, 1]} : vector<2x64xf32> to vector<2x32xf32>
    %638 = vector.extract_strided_slice %634 {offsets = [0, 0], sizes = [2, 32], strides = [1, 1]} : vector<2x96xf32> to vector<2x32xf32>
    %639 = vector.extract_strided_slice %636 {offsets = [0, 0], sizes = [2, 32], strides = [1, 1]} : vector<2x96xf32> to vector<2x32xf32>
    %640 = arith.addf %638, %639 : vector<2x32xf32>
    %641 = arith.negf %640 : vector<2x32xf32>
    %642 = math.exp %641 : vector<2x32xf32>
    %cst_166 = arith.constant 1.000000e+00 : f32
    %643 = vector.broadcast %cst_166 : f32 to vector<2x32xf32>
    %644 = arith.addf %643, %642 : vector<2x32xf32>
    %645 = arith.divf %643, %644 : vector<2x32xf32>
    %646 = vector.extract_strided_slice %634 {offsets = [0, 32], sizes = [2, 32], strides = [1, 1]} : vector<2x96xf32> to vector<2x32xf32>
    %647 = vector.extract_strided_slice %636 {offsets = [0, 32], sizes = [2, 32], strides = [1, 1]} : vector<2x96xf32> to vector<2x32xf32>
    %648 = arith.addf %646, %647 : vector<2x32xf32>
    %649 = arith.negf %648 : vector<2x32xf32>
    %650 = math.exp %649 : vector<2x32xf32>
    %cst_167 = arith.constant 1.000000e+00 : f32
    %651 = vector.broadcast %cst_167 : f32 to vector<2x32xf32>
    %652 = arith.addf %651, %650 : vector<2x32xf32>
    %653 = arith.divf %651, %652 : vector<2x32xf32>
    %654 = vector.extract_strided_slice %634 {offsets = [0, 64], sizes = [2, 32], strides = [1, 1]} : vector<2x96xf32> to vector<2x32xf32>
    %655 = vector.extract_strided_slice %636 {offsets = [0, 64], sizes = [2, 32], strides = [1, 1]} : vector<2x96xf32> to vector<2x32xf32>
    %656 = arith.mulf %645, %655 : vector<2x32xf32>
    %657 = arith.addf %654, %656 : vector<2x32xf32>
    %658 = math.tanh %657 : vector<2x32xf32>
    %cst_168 = arith.constant 1.000000e+00 : f32
    %659 = vector.broadcast %cst_168 : f32 to vector<2x32xf32>
    %660 = arith.subf %659, %653 : vector<2x32xf32>
    %661 = arith.mulf %660, %658 : vector<2x32xf32>
    %662 = arith.mulf %653, %637 : vector<2x32xf32>
    %663 = arith.addf %661, %662 : vector<2x32xf32>
    %664 = vector.extract_strided_slice %633 {offsets = [0, 96], sizes = [2, 96], strides = [1, 1]} : vector<2x192xf32> to vector<2x96xf32>
    %665 = vector.extract_strided_slice %629 {offsets = [0, 32], sizes = [2, 32], strides = [1, 1]} : vector<2x64xf32> to vector<2x32xf32>
    %666 = vector.extract_strided_slice %635 {offsets = [0, 0], sizes = [2, 32], strides = [1, 1]} : vector<2x96xf32> to vector<2x32xf32>
    %667 = vector.extract_strided_slice %664 {offsets = [0, 0], sizes = [2, 32], strides = [1, 1]} : vector<2x96xf32> to vector<2x32xf32>
    %668 = arith.addf %666, %667 : vector<2x32xf32>
    %669 = arith.negf %668 : vector<2x32xf32>
    %670 = math.exp %669 : vector<2x32xf32>
    %cst_169 = arith.constant 1.000000e+00 : f32
    %671 = vector.broadcast %cst_169 : f32 to vector<2x32xf32>
    %672 = arith.addf %671, %670 : vector<2x32xf32>
    %673 = arith.divf %671, %672 : vector<2x32xf32>
    %674 = vector.extract_strided_slice %635 {offsets = [0, 32], sizes = [2, 32], strides = [1, 1]} : vector<2x96xf32> to vector<2x32xf32>
    %675 = vector.extract_strided_slice %664 {offsets = [0, 32], sizes = [2, 32], strides = [1, 1]} : vector<2x96xf32> to vector<2x32xf32>
    %676 = arith.addf %674, %675 : vector<2x32xf32>
    %677 = arith.negf %676 : vector<2x32xf32>
    %678 = math.exp %677 : vector<2x32xf32>
    %cst_170 = arith.constant 1.000000e+00 : f32
    %679 = vector.broadcast %cst_170 : f32 to vector<2x32xf32>
    %680 = arith.addf %679, %678 : vector<2x32xf32>
    %681 = arith.divf %679, %680 : vector<2x32xf32>
    %682 = vector.extract_strided_slice %635 {offsets = [0, 64], sizes = [2, 32], strides = [1, 1]} : vector<2x96xf32> to vector<2x32xf32>
    %683 = vector.extract_strided_slice %664 {offsets = [0, 64], sizes = [2, 32], strides = [1, 1]} : vector<2x96xf32> to vector<2x32xf32>
    %684 = arith.mulf %673, %683 : vector<2x32xf32>
    %685 = arith.addf %682, %684 : vector<2x32xf32>
    %686 = math.tanh %685 : vector<2x32xf32>
    %cst_171 = arith.constant 1.000000e+00 : f32
    %687 = vector.broadcast %cst_171 : f32 to vector<2x32xf32>
    %688 = arith.subf %687, %681 : vector<2x32xf32>
    %689 = arith.mulf %688, %686 : vector<2x32xf32>
    %690 = arith.mulf %681, %665 : vector<2x32xf32>
    %691 = arith.addf %689, %690 : vector<2x32xf32>
    %c2_172 = arith.constant 2 : index
    %c0_173 = arith.constant 0 : index
    %692 = vector.load %arg16[%c2_172, %c0_173] : memref<16x64xf32, #tpu.memory_space<vmem>>, vector<2x32xf32>
    tpu.vector_store %arg16[%c2_172, %c0_173], %663 {strides = array<i32>} : memref<16x64xf32, #tpu.memory_space<vmem>>, vector<2x32xf32>,
    %c12_174 = arith.constant 12 : index
    %c32_175 = arith.constant 32 : index
    %693 = vector.load %arg16[%c12_174, %c32_175] : memref<16x64xf32, #tpu.memory_space<vmem>>, vector<2x32xf32>
    tpu.vector_store %arg16[%c12_174, %c32_175], %691 {strides = array<i32>} : memref<16x64xf32, #tpu.memory_space<vmem>>, vector<2x32xf32>,
    %694 = tpu.concatenate %663, %691 in 1 : vector<2x32xf32>, vector<2x32xf32> -> vector<2x64xf32>
    %695 = arith.truncf %694 : vector<2x64xf32> to vector<2x64xbf16>
    %cst_176 = arith.constant dense<0.000000e+00> : vector<2x192xf32>
    %696 = tpu.matmul %695, %562, %cst_176 {dimension_numbers = #tpu.dot_dimension_numbers<[1], [0], [0], [1], [0, 0, 1, 1], [], []>} : vector<2x64xbf16>, vector<64x192xbf16>, vector<2x192xf32> -> vector<2x192xf32>
    %697 = vector.broadcast %563 : vector<1x192xf32> to vector<2x192xf32>
    %698 = arith.addf %696, %697 : vector<2x192xf32>
    %c4_177 = arith.constant 4 : index
    %c0_178 = arith.constant 0 : index
    %699 = vector.load %arg15[%c4_177, %c0_178] : memref<16x192xf32, #tpu.memory_space<vmem>>, vector<2x96xf32>
    %c10_179 = arith.constant 10 : index
    %c96_180 = arith.constant 96 : index
    %700 = vector.load %arg15[%c10_179, %c96_180] : memref<16x192xf32, #tpu.memory_space<vmem>>, vector<2x96xf32>
    %701 = vector.extract_strided_slice %698 {offsets = [0, 0], sizes = [2, 96], strides = [1, 1]} : vector<2x192xf32> to vector<2x96xf32>
    %702 = vector.extract_strided_slice %694 {offsets = [0, 0], sizes = [2, 32], strides = [1, 1]} : vector<2x64xf32> to vector<2x32xf32>
    %703 = vector.extract_strided_slice %699 {offsets = [0, 0], sizes = [2, 32], strides = [1, 1]} : vector<2x96xf32> to vector<2x32xf32>
    %704 = vector.extract_strided_slice %701 {offsets = [0, 0], sizes = [2, 32], strides = [1, 1]} : vector<2x96xf32> to vector<2x32xf32>
    %705 = arith.addf %703, %704 : vector<2x32xf32>
    %706 = arith.negf %705 : vector<2x32xf32>
    %707 = math.exp %706 : vector<2x32xf32>
    %cst_181 = arith.constant 1.000000e+00 : f32
    %708 = vector.broadcast %cst_181 : f32 to vector<2x32xf32>
    %709 = arith.addf %708, %707 : vector<2x32xf32>
    %710 = arith.divf %708, %709 : vector<2x32xf32>
    %711 = vector.extract_strided_slice %699 {offsets = [0, 32], sizes = [2, 32], strides = [1, 1]} : vector<2x96xf32> to vector<2x32xf32>
    %712 = vector.extract_strided_slice %701 {offsets = [0, 32], sizes = [2, 32], strides = [1, 1]} : vector<2x96xf32> to vector<2x32xf32>
    %713 = arith.addf %711, %712 : vector<2x32xf32>
    %714 = arith.negf %713 : vector<2x32xf32>
    %715 = math.exp %714 : vector<2x32xf32>
    %cst_182 = arith.constant 1.000000e+00 : f32
    %716 = vector.broadcast %cst_182 : f32 to vector<2x32xf32>
    %717 = arith.addf %716, %715 : vector<2x32xf32>
    %718 = arith.divf %716, %717 : vector<2x32xf32>
    %719 = vector.extract_strided_slice %699 {offsets = [0, 64], sizes = [2, 32], strides = [1, 1]} : vector<2x96xf32> to vector<2x32xf32>
    %720 = vector.extract_strided_slice %701 {offsets = [0, 64], sizes = [2, 32], strides = [1, 1]} : vector<2x96xf32> to vector<2x32xf32>
    %721 = arith.mulf %710, %720 : vector<2x32xf32>
    %722 = arith.addf %719, %721 : vector<2x32xf32>
    %723 = math.tanh %722 : vector<2x32xf32>
    %cst_183 = arith.constant 1.000000e+00 : f32
    %724 = vector.broadcast %cst_183 : f32 to vector<2x32xf32>
    %725 = arith.subf %724, %718 : vector<2x32xf32>
    %726 = arith.mulf %725, %723 : vector<2x32xf32>
    %727 = arith.mulf %718, %702 : vector<2x32xf32>
    %728 = arith.addf %726, %727 : vector<2x32xf32>
    %729 = vector.extract_strided_slice %698 {offsets = [0, 96], sizes = [2, 96], strides = [1, 1]} : vector<2x192xf32> to vector<2x96xf32>
    %730 = vector.extract_strided_slice %694 {offsets = [0, 32], sizes = [2, 32], strides = [1, 1]} : vector<2x64xf32> to vector<2x32xf32>
    %731 = vector.extract_strided_slice %700 {offsets = [0, 0], sizes = [2, 32], strides = [1, 1]} : vector<2x96xf32> to vector<2x32xf32>
    %732 = vector.extract_strided_slice %729 {offsets = [0, 0], sizes = [2, 32], strides = [1, 1]} : vector<2x96xf32> to vector<2x32xf32>
    %733 = arith.addf %731, %732 : vector<2x32xf32>
    %734 = arith.negf %733 : vector<2x32xf32>
    %735 = math.exp %734 : vector<2x32xf32>
    %cst_184 = arith.constant 1.000000e+00 : f32
    %736 = vector.broadcast %cst_184 : f32 to vector<2x32xf32>
    %737 = arith.addf %736, %735 : vector<2x32xf32>
    %738 = arith.divf %736, %737 : vector<2x32xf32>
    %739 = vector.extract_strided_slice %700 {offsets = [0, 32], sizes = [2, 32], strides = [1, 1]} : vector<2x96xf32> to vector<2x32xf32>
    %740 = vector.extract_strided_slice %729 {offsets = [0, 32], sizes = [2, 32], strides = [1, 1]} : vector<2x96xf32> to vector<2x32xf32>
    %741 = arith.addf %739, %740 : vector<2x32xf32>
    %742 = arith.negf %741 : vector<2x32xf32>
    %743 = math.exp %742 : vector<2x32xf32>
    %cst_185 = arith.constant 1.000000e+00 : f32
    %744 = vector.broadcast %cst_185 : f32 to vector<2x32xf32>
    %745 = arith.addf %744, %743 : vector<2x32xf32>
    %746 = arith.divf %744, %745 : vector<2x32xf32>
    %747 = vector.extract_strided_slice %700 {offsets = [0, 64], sizes = [2, 32], strides = [1, 1]} : vector<2x96xf32> to vector<2x32xf32>
    %748 = vector.extract_strided_slice %729 {offsets = [0, 64], sizes = [2, 32], strides = [1, 1]} : vector<2x96xf32> to vector<2x32xf32>
    %749 = arith.mulf %738, %748 : vector<2x32xf32>
    %750 = arith.addf %747, %749 : vector<2x32xf32>
    %751 = math.tanh %750 : vector<2x32xf32>
    %cst_186 = arith.constant 1.000000e+00 : f32
    %752 = vector.broadcast %cst_186 : f32 to vector<2x32xf32>
    %753 = arith.subf %752, %746 : vector<2x32xf32>
    %754 = arith.mulf %753, %751 : vector<2x32xf32>
    %755 = arith.mulf %746, %730 : vector<2x32xf32>
    %756 = arith.addf %754, %755 : vector<2x32xf32>
    %c4_187 = arith.constant 4 : index
    %c0_188 = arith.constant 0 : index
    %757 = vector.load %arg16[%c4_187, %c0_188] : memref<16x64xf32, #tpu.memory_space<vmem>>, vector<2x32xf32>
    tpu.vector_store %arg16[%c4_187, %c0_188], %728 {strides = array<i32>} : memref<16x64xf32, #tpu.memory_space<vmem>>, vector<2x32xf32>,
    %c10_189 = arith.constant 10 : index
    %c32_190 = arith.constant 32 : index
    %758 = vector.load %arg16[%c10_189, %c32_190] : memref<16x64xf32, #tpu.memory_space<vmem>>, vector<2x32xf32>
    tpu.vector_store %arg16[%c10_189, %c32_190], %756 {strides = array<i32>} : memref<16x64xf32, #tpu.memory_space<vmem>>, vector<2x32xf32>,
    %759 = tpu.concatenate %728, %756 in 1 : vector<2x32xf32>, vector<2x32xf32> -> vector<2x64xf32>
    %760 = arith.truncf %759 : vector<2x64xf32> to vector<2x64xbf16>
    %cst_191 = arith.constant dense<0.000000e+00> : vector<2x192xf32>
    %761 = tpu.matmul %760, %562, %cst_191 {dimension_numbers = #tpu.dot_dimension_numbers<[1], [0], [0], [1], [0, 0, 1, 1], [], []>} : vector<2x64xbf16>, vector<64x192xbf16>, vector<2x192xf32> -> vector<2x192xf32>
    %762 = vector.broadcast %563 : vector<1x192xf32> to vector<2x192xf32>
    %763 = arith.addf %761, %762 : vector<2x192xf32>
    %c6_192 = arith.constant 6 : index
    %c0_193 = arith.constant 0 : index
    %764 = vector.load %arg15[%c6_192, %c0_193] : memref<16x192xf32, #tpu.memory_space<vmem>>, vector<2x96xf32>
    %c8_194 = arith.constant 8 : index
    %c96_195 = arith.constant 96 : index
    %765 = vector.load %arg15[%c8_194, %c96_195] : memref<16x192xf32, #tpu.memory_space<vmem>>, vector<2x96xf32>
    %766 = vector.extract_strided_slice %763 {offsets = [0, 0], sizes = [2, 96], strides = [1, 1]} : vector<2x192xf32> to vector<2x96xf32>
    %767 = vector.extract_strided_slice %759 {offsets = [0, 0], sizes = [2, 32], strides = [1, 1]} : vector<2x64xf32> to vector<2x32xf32>
    %768 = vector.extract_strided_slice %764 {offsets = [0, 0], sizes = [2, 32], strides = [1, 1]} : vector<2x96xf32> to vector<2x32xf32>
    %769 = vector.extract_strided_slice %766 {offsets = [0, 0], sizes = [2, 32], strides = [1, 1]} : vector<2x96xf32> to vector<2x32xf32>
    %770 = arith.addf %768, %769 : vector<2x32xf32>
    %771 = arith.negf %770 : vector<2x32xf32>
    %772 = math.exp %771 : vector<2x32xf32>
    %cst_196 = arith.constant 1.000000e+00 : f32
    %773 = vector.broadcast %cst_196 : f32 to vector<2x32xf32>
    %774 = arith.addf %773, %772 : vector<2x32xf32>
    %775 = arith.divf %773, %774 : vector<2x32xf32>
    %776 = vector.extract_strided_slice %764 {offsets = [0, 32], sizes = [2, 32], strides = [1, 1]} : vector<2x96xf32> to vector<2x32xf32>
    %777 = vector.extract_strided_slice %766 {offsets = [0, 32], sizes = [2, 32], strides = [1, 1]} : vector<2x96xf32> to vector<2x32xf32>
    %778 = arith.addf %776, %777 : vector<2x32xf32>
    %779 = arith.negf %778 : vector<2x32xf32>
    %780 = math.exp %779 : vector<2x32xf32>
    %cst_197 = arith.constant 1.000000e+00 : f32
    %781 = vector.broadcast %cst_197 : f32 to vector<2x32xf32>
    %782 = arith.addf %781, %780 : vector<2x32xf32>
    %783 = arith.divf %781, %782 : vector<2x32xf32>
    %784 = vector.extract_strided_slice %764 {offsets = [0, 64], sizes = [2, 32], strides = [1, 1]} : vector<2x96xf32> to vector<2x32xf32>
    %785 = vector.extract_strided_slice %766 {offsets = [0, 64], sizes = [2, 32], strides = [1, 1]} : vector<2x96xf32> to vector<2x32xf32>
    %786 = arith.mulf %775, %785 : vector<2x32xf32>
    %787 = arith.addf %784, %786 : vector<2x32xf32>
    %788 = math.tanh %787 : vector<2x32xf32>
    %cst_198 = arith.constant 1.000000e+00 : f32
    %789 = vector.broadcast %cst_198 : f32 to vector<2x32xf32>
    %790 = arith.subf %789, %783 : vector<2x32xf32>
    %791 = arith.mulf %790, %788 : vector<2x32xf32>
    %792 = arith.mulf %783, %767 : vector<2x32xf32>
    %793 = arith.addf %791, %792 : vector<2x32xf32>
    %794 = vector.extract_strided_slice %763 {offsets = [0, 96], sizes = [2, 96], strides = [1, 1]} : vector<2x192xf32> to vector<2x96xf32>
    %795 = vector.extract_strided_slice %759 {offsets = [0, 32], sizes = [2, 32], strides = [1, 1]} : vector<2x64xf32> to vector<2x32xf32>
    %796 = vector.extract_strided_slice %765 {offsets = [0, 0], sizes = [2, 32], strides = [1, 1]} : vector<2x96xf32> to vector<2x32xf32>
    %797 = vector.extract_strided_slice %794 {offsets = [0, 0], sizes = [2, 32], strides = [1, 1]} : vector<2x96xf32> to vector<2x32xf32>
    %798 = arith.addf %796, %797 : vector<2x32xf32>
    %799 = arith.negf %798 : vector<2x32xf32>
    %800 = math.exp %799 : vector<2x32xf32>
    %cst_199 = arith.constant 1.000000e+00 : f32
    %801 = vector.broadcast %cst_199 : f32 to vector<2x32xf32>
    %802 = arith.addf %801, %800 : vector<2x32xf32>
    %803 = arith.divf %801, %802 : vector<2x32xf32>
    %804 = vector.extract_strided_slice %765 {offsets = [0, 32], sizes = [2, 32], strides = [1, 1]} : vector<2x96xf32> to vector<2x32xf32>
    %805 = vector.extract_strided_slice %794 {offsets = [0, 32], sizes = [2, 32], strides = [1, 1]} : vector<2x96xf32> to vector<2x32xf32>
    %806 = arith.addf %804, %805 : vector<2x32xf32>
    %807 = arith.negf %806 : vector<2x32xf32>
    %808 = math.exp %807 : vector<2x32xf32>
    %cst_200 = arith.constant 1.000000e+00 : f32
    %809 = vector.broadcast %cst_200 : f32 to vector<2x32xf32>
    %810 = arith.addf %809, %808 : vector<2x32xf32>
    %811 = arith.divf %809, %810 : vector<2x32xf32>
    %812 = vector.extract_strided_slice %765 {offsets = [0, 64], sizes = [2, 32], strides = [1, 1]} : vector<2x96xf32> to vector<2x32xf32>
    %813 = vector.extract_strided_slice %794 {offsets = [0, 64], sizes = [2, 32], strides = [1, 1]} : vector<2x96xf32> to vector<2x32xf32>
    %814 = arith.mulf %803, %813 : vector<2x32xf32>
    %815 = arith.addf %812, %814 : vector<2x32xf32>
    %816 = math.tanh %815 : vector<2x32xf32>
    %cst_201 = arith.constant 1.000000e+00 : f32
    %817 = vector.broadcast %cst_201 : f32 to vector<2x32xf32>
    %818 = arith.subf %817, %811 : vector<2x32xf32>
    %819 = arith.mulf %818, %816 : vector<2x32xf32>
    %820 = arith.mulf %811, %795 : vector<2x32xf32>
    %821 = arith.addf %819, %820 : vector<2x32xf32>
    %c6_202 = arith.constant 6 : index
    %c0_203 = arith.constant 0 : index
    %822 = vector.load %arg16[%c6_202, %c0_203] : memref<16x64xf32, #tpu.memory_space<vmem>>, vector<2x32xf32>
    tpu.vector_store %arg16[%c6_202, %c0_203], %793 {strides = array<i32>} : memref<16x64xf32, #tpu.memory_space<vmem>>, vector<2x32xf32>,
    %c8_204 = arith.constant 8 : index
    %c32_205 = arith.constant 32 : index
    %823 = vector.load %arg16[%c8_204, %c32_205] : memref<16x64xf32, #tpu.memory_space<vmem>>, vector<2x32xf32>
    tpu.vector_store %arg16[%c8_204, %c32_205], %821 {strides = array<i32>} : memref<16x64xf32, #tpu.memory_space<vmem>>, vector<2x32xf32>,
    %824 = tpu.concatenate %793, %821 in 1 : vector<2x32xf32>, vector<2x32xf32> -> vector<2x64xf32>
    %825 = arith.truncf %824 : vector<2x64xf32> to vector<2x64xbf16>
    %cst_206 = arith.constant dense<0.000000e+00> : vector<2x192xf32>
    %826 = tpu.matmul %825, %562, %cst_206 {dimension_numbers = #tpu.dot_dimension_numbers<[1], [0], [0], [1], [0, 0, 1, 1], [], []>} : vector<2x64xbf16>, vector<64x192xbf16>, vector<2x192xf32> -> vector<2x192xf32>
    %827 = vector.broadcast %563 : vector<1x192xf32> to vector<2x192xf32>
    %828 = arith.addf %826, %827 : vector<2x192xf32>
    %c8_207 = arith.constant 8 : index
    %c0_208 = arith.constant 0 : index
    %829 = vector.load %arg15[%c8_207, %c0_208] : memref<16x192xf32, #tpu.memory_space<vmem>>, vector<2x96xf32>
    %c6_209 = arith.constant 6 : index
    %c96_210 = arith.constant 96 : index
    %830 = vector.load %arg15[%c6_209, %c96_210] : memref<16x192xf32, #tpu.memory_space<vmem>>, vector<2x96xf32>
    %831 = vector.extract_strided_slice %828 {offsets = [0, 0], sizes = [2, 96], strides = [1, 1]} : vector<2x192xf32> to vector<2x96xf32>
    %832 = vector.extract_strided_slice %824 {offsets = [0, 0], sizes = [2, 32], strides = [1, 1]} : vector<2x64xf32> to vector<2x32xf32>
    %833 = vector.extract_strided_slice %829 {offsets = [0, 0], sizes = [2, 32], strides = [1, 1]} : vector<2x96xf32> to vector<2x32xf32>
    %834 = vector.extract_strided_slice %831 {offsets = [0, 0], sizes = [2, 32], strides = [1, 1]} : vector<2x96xf32> to vector<2x32xf32>
    %835 = arith.addf %833, %834 : vector<2x32xf32>
    %836 = arith.negf %835 : vector<2x32xf32>
    %837 = math.exp %836 : vector<2x32xf32>
    %cst_211 = arith.constant 1.000000e+00 : f32
    %838 = vector.broadcast %cst_211 : f32 to vector<2x32xf32>
    %839 = arith.addf %838, %837 : vector<2x32xf32>
    %840 = arith.divf %838, %839 : vector<2x32xf32>
    %841 = vector.extract_strided_slice %829 {offsets = [0, 32], sizes = [2, 32], strides = [1, 1]} : vector<2x96xf32> to vector<2x32xf32>
    %842 = vector.extract_strided_slice %831 {offsets = [0, 32], sizes = [2, 32], strides = [1, 1]} : vector<2x96xf32> to vector<2x32xf32>
    %843 = arith.addf %841, %842 : vector<2x32xf32>
    %844 = arith.negf %843 : vector<2x32xf32>
    %845 = math.exp %844 : vector<2x32xf32>
    %cst_212 = arith.constant 1.000000e+00 : f32
    %846 = vector.broadcast %cst_212 : f32 to vector<2x32xf32>
    %847 = arith.addf %846, %845 : vector<2x32xf32>
    %848 = arith.divf %846, %847 : vector<2x32xf32>
    %849 = vector.extract_strided_slice %829 {offsets = [0, 64], sizes = [2, 32], strides = [1, 1]} : vector<2x96xf32> to vector<2x32xf32>
    %850 = vector.extract_strided_slice %831 {offsets = [0, 64], sizes = [2, 32], strides = [1, 1]} : vector<2x96xf32> to vector<2x32xf32>
    %851 = arith.mulf %840, %850 : vector<2x32xf32>
    %852 = arith.addf %849, %851 : vector<2x32xf32>
    %853 = math.tanh %852 : vector<2x32xf32>
    %cst_213 = arith.constant 1.000000e+00 : f32
    %854 = vector.broadcast %cst_213 : f32 to vector<2x32xf32>
    %855 = arith.subf %854, %848 : vector<2x32xf32>
    %856 = arith.mulf %855, %853 : vector<2x32xf32>
    %857 = arith.mulf %848, %832 : vector<2x32xf32>
    %858 = arith.addf %856, %857 : vector<2x32xf32>
    %859 = vector.extract_strided_slice %828 {offsets = [0, 96], sizes = [2, 96], strides = [1, 1]} : vector<2x192xf32> to vector<2x96xf32>
    %860 = vector.extract_strided_slice %824 {offsets = [0, 32], sizes = [2, 32], strides = [1, 1]} : vector<2x64xf32> to vector<2x32xf32>
    %861 = vector.extract_strided_slice %830 {offsets = [0, 0], sizes = [2, 32], strides = [1, 1]} : vector<2x96xf32> to vector<2x32xf32>
    %862 = vector.extract_strided_slice %859 {offsets = [0, 0], sizes = [2, 32], strides = [1, 1]} : vector<2x96xf32> to vector<2x32xf32>
    %863 = arith.addf %861, %862 : vector<2x32xf32>
    %864 = arith.negf %863 : vector<2x32xf32>
    %865 = math.exp %864 : vector<2x32xf32>
    %cst_214 = arith.constant 1.000000e+00 : f32
    %866 = vector.broadcast %cst_214 : f32 to vector<2x32xf32>
    %867 = arith.addf %866, %865 : vector<2x32xf32>
    %868 = arith.divf %866, %867 : vector<2x32xf32>
    %869 = vector.extract_strided_slice %830 {offsets = [0, 32], sizes = [2, 32], strides = [1, 1]} : vector<2x96xf32> to vector<2x32xf32>
    %870 = vector.extract_strided_slice %859 {offsets = [0, 32], sizes = [2, 32], strides = [1, 1]} : vector<2x96xf32> to vector<2x32xf32>
    %871 = arith.addf %869, %870 : vector<2x32xf32>
    %872 = arith.negf %871 : vector<2x32xf32>
    %873 = math.exp %872 : vector<2x32xf32>
    %cst_215 = arith.constant 1.000000e+00 : f32
    %874 = vector.broadcast %cst_215 : f32 to vector<2x32xf32>
    %875 = arith.addf %874, %873 : vector<2x32xf32>
    %876 = arith.divf %874, %875 : vector<2x32xf32>
    %877 = vector.extract_strided_slice %830 {offsets = [0, 64], sizes = [2, 32], strides = [1, 1]} : vector<2x96xf32> to vector<2x32xf32>
    %878 = vector.extract_strided_slice %859 {offsets = [0, 64], sizes = [2, 32], strides = [1, 1]} : vector<2x96xf32> to vector<2x32xf32>
    %879 = arith.mulf %868, %878 : vector<2x32xf32>
    %880 = arith.addf %877, %879 : vector<2x32xf32>
    %881 = math.tanh %880 : vector<2x32xf32>
    %cst_216 = arith.constant 1.000000e+00 : f32
    %882 = vector.broadcast %cst_216 : f32 to vector<2x32xf32>
    %883 = arith.subf %882, %876 : vector<2x32xf32>
    %884 = arith.mulf %883, %881 : vector<2x32xf32>
    %885 = arith.mulf %876, %860 : vector<2x32xf32>
    %886 = arith.addf %884, %885 : vector<2x32xf32>
    %c8_217 = arith.constant 8 : index
    %c0_218 = arith.constant 0 : index
    %887 = vector.load %arg16[%c8_217, %c0_218] : memref<16x64xf32, #tpu.memory_space<vmem>>, vector<2x32xf32>
    tpu.vector_store %arg16[%c8_217, %c0_218], %858 {strides = array<i32>} : memref<16x64xf32, #tpu.memory_space<vmem>>, vector<2x32xf32>,
    %c6_219 = arith.constant 6 : index
    %c32_220 = arith.constant 32 : index
    %888 = vector.load %arg16[%c6_219, %c32_220] : memref<16x64xf32, #tpu.memory_space<vmem>>, vector<2x32xf32>
    tpu.vector_store %arg16[%c6_219, %c32_220], %886 {strides = array<i32>} : memref<16x64xf32, #tpu.memory_space<vmem>>, vector<2x32xf32>,
    %889 = tpu.concatenate %858, %886 in 1 : vector<2x32xf32>, vector<2x32xf32> -> vector<2x64xf32>
    %890 = arith.truncf %889 : vector<2x64xf32> to vector<2x64xbf16>
    %cst_221 = arith.constant dense<0.000000e+00> : vector<2x192xf32>
    %891 = tpu.matmul %890, %562, %cst_221 {dimension_numbers = #tpu.dot_dimension_numbers<[1], [0], [0], [1], [0, 0, 1, 1], [], []>} : vector<2x64xbf16>, vector<64x192xbf16>, vector<2x192xf32> -> vector<2x192xf32>
    %892 = vector.broadcast %563 : vector<1x192xf32> to vector<2x192xf32>
    %893 = arith.addf %891, %892 : vector<2x192xf32>
    %c10_222 = arith.constant 10 : index
    %c0_223 = arith.constant 0 : index
    %894 = vector.load %arg15[%c10_222, %c0_223] : memref<16x192xf32, #tpu.memory_space<vmem>>, vector<2x96xf32>
    %c4_224 = arith.constant 4 : index
    %c96_225 = arith.constant 96 : index
    %895 = vector.load %arg15[%c4_224, %c96_225] : memref<16x192xf32, #tpu.memory_space<vmem>>, vector<2x96xf32>
    %896 = vector.extract_strided_slice %893 {offsets = [0, 0], sizes = [2, 96], strides = [1, 1]} : vector<2x192xf32> to vector<2x96xf32>
    %897 = vector.extract_strided_slice %889 {offsets = [0, 0], sizes = [2, 32], strides = [1, 1]} : vector<2x64xf32> to vector<2x32xf32>
    %898 = vector.extract_strided_slice %894 {offsets = [0, 0], sizes = [2, 32], strides = [1, 1]} : vector<2x96xf32> to vector<2x32xf32>
    %899 = vector.extract_strided_slice %896 {offsets = [0, 0], sizes = [2, 32], strides = [1, 1]} : vector<2x96xf32> to vector<2x32xf32>
    %900 = arith.addf %898, %899 : vector<2x32xf32>
    %901 = arith.negf %900 : vector<2x32xf32>
    %902 = math.exp %901 : vector<2x32xf32>
    %cst_226 = arith.constant 1.000000e+00 : f32
    %903 = vector.broadcast %cst_226 : f32 to vector<2x32xf32>
    %904 = arith.addf %903, %902 : vector<2x32xf32>
    %905 = arith.divf %903, %904 : vector<2x32xf32>
    %906 = vector.extract_strided_slice %894 {offsets = [0, 32], sizes = [2, 32], strides = [1, 1]} : vector<2x96xf32> to vector<2x32xf32>
    %907 = vector.extract_strided_slice %896 {offsets = [0, 32], sizes = [2, 32], strides = [1, 1]} : vector<2x96xf32> to vector<2x32xf32>
    %908 = arith.addf %906, %907 : vector<2x32xf32>
    %909 = arith.negf %908 : vector<2x32xf32>
    %910 = math.exp %909 : vector<2x32xf32>
    %cst_227 = arith.constant 1.000000e+00 : f32
    %911 = vector.broadcast %cst_227 : f32 to vector<2x32xf32>
    %912 = arith.addf %911, %910 : vector<2x32xf32>
    %913 = arith.divf %911, %912 : vector<2x32xf32>
    %914 = vector.extract_strided_slice %894 {offsets = [0, 64], sizes = [2, 32], strides = [1, 1]} : vector<2x96xf32> to vector<2x32xf32>
    %915 = vector.extract_strided_slice %896 {offsets = [0, 64], sizes = [2, 32], strides = [1, 1]} : vector<2x96xf32> to vector<2x32xf32>
    %916 = arith.mulf %905, %915 : vector<2x32xf32>
    %917 = arith.addf %914, %916 : vector<2x32xf32>
    %918 = math.tanh %917 : vector<2x32xf32>
    %cst_228 = arith.constant 1.000000e+00 : f32
    %919 = vector.broadcast %cst_228 : f32 to vector<2x32xf32>
    %920 = arith.subf %919, %913 : vector<2x32xf32>
    %921 = arith.mulf %920, %918 : vector<2x32xf32>
    %922 = arith.mulf %913, %897 : vector<2x32xf32>
    %923 = arith.addf %921, %922 : vector<2x32xf32>
    %924 = vector.extract_strided_slice %893 {offsets = [0, 96], sizes = [2, 96], strides = [1, 1]} : vector<2x192xf32> to vector<2x96xf32>
    %925 = vector.extract_strided_slice %889 {offsets = [0, 32], sizes = [2, 32], strides = [1, 1]} : vector<2x64xf32> to vector<2x32xf32>
    %926 = vector.extract_strided_slice %895 {offsets = [0, 0], sizes = [2, 32], strides = [1, 1]} : vector<2x96xf32> to vector<2x32xf32>
    %927 = vector.extract_strided_slice %924 {offsets = [0, 0], sizes = [2, 32], strides = [1, 1]} : vector<2x96xf32> to vector<2x32xf32>
    %928 = arith.addf %926, %927 : vector<2x32xf32>
    %929 = arith.negf %928 : vector<2x32xf32>
    %930 = math.exp %929 : vector<2x32xf32>
    %cst_229 = arith.constant 1.000000e+00 : f32
    %931 = vector.broadcast %cst_229 : f32 to vector<2x32xf32>
    %932 = arith.addf %931, %930 : vector<2x32xf32>
    %933 = arith.divf %931, %932 : vector<2x32xf32>
    %934 = vector.extract_strided_slice %895 {offsets = [0, 32], sizes = [2, 32], strides = [1, 1]} : vector<2x96xf32> to vector<2x32xf32>
    %935 = vector.extract_strided_slice %924 {offsets = [0, 32], sizes = [2, 32], strides = [1, 1]} : vector<2x96xf32> to vector<2x32xf32>
    %936 = arith.addf %934, %935 : vector<2x32xf32>
    %937 = arith.negf %936 : vector<2x32xf32>
    %938 = math.exp %937 : vector<2x32xf32>
    %cst_230 = arith.constant 1.000000e+00 : f32
    %939 = vector.broadcast %cst_230 : f32 to vector<2x32xf32>
    %940 = arith.addf %939, %938 : vector<2x32xf32>
    %941 = arith.divf %939, %940 : vector<2x32xf32>
    %942 = vector.extract_strided_slice %895 {offsets = [0, 64], sizes = [2, 32], strides = [1, 1]} : vector<2x96xf32> to vector<2x32xf32>
    %943 = vector.extract_strided_slice %924 {offsets = [0, 64], sizes = [2, 32], strides = [1, 1]} : vector<2x96xf32> to vector<2x32xf32>
    %944 = arith.mulf %933, %943 : vector<2x32xf32>
    %945 = arith.addf %942, %944 : vector<2x32xf32>
    %946 = math.tanh %945 : vector<2x32xf32>
    %cst_231 = arith.constant 1.000000e+00 : f32
    %947 = vector.broadcast %cst_231 : f32 to vector<2x32xf32>
    %948 = arith.subf %947, %941 : vector<2x32xf32>
    %949 = arith.mulf %948, %946 : vector<2x32xf32>
    %950 = arith.mulf %941, %925 : vector<2x32xf32>
    %951 = arith.addf %949, %950 : vector<2x32xf32>
    %c10_232 = arith.constant 10 : index
    %c0_233 = arith.constant 0 : index
    %952 = vector.load %arg16[%c10_232, %c0_233] : memref<16x64xf32, #tpu.memory_space<vmem>>, vector<2x32xf32>
    tpu.vector_store %arg16[%c10_232, %c0_233], %923 {strides = array<i32>} : memref<16x64xf32, #tpu.memory_space<vmem>>, vector<2x32xf32>,
    %c4_234 = arith.constant 4 : index
    %c32_235 = arith.constant 32 : index
    %953 = vector.load %arg16[%c4_234, %c32_235] : memref<16x64xf32, #tpu.memory_space<vmem>>, vector<2x32xf32>
    tpu.vector_store %arg16[%c4_234, %c32_235], %951 {strides = array<i32>} : memref<16x64xf32, #tpu.memory_space<vmem>>, vector<2x32xf32>,
    %954 = tpu.concatenate %923, %951 in 1 : vector<2x32xf32>, vector<2x32xf32> -> vector<2x64xf32>
    %955 = arith.truncf %954 : vector<2x64xf32> to vector<2x64xbf16>
    %cst_236 = arith.constant dense<0.000000e+00> : vector<2x192xf32>
    %956 = tpu.matmul %955, %562, %cst_236 {dimension_numbers = #tpu.dot_dimension_numbers<[1], [0], [0], [1], [0, 0, 1, 1], [], []>} : vector<2x64xbf16>, vector<64x192xbf16>, vector<2x192xf32> -> vector<2x192xf32>
    %957 = vector.broadcast %563 : vector<1x192xf32> to vector<2x192xf32>
    %958 = arith.addf %956, %957 : vector<2x192xf32>
    %c12_237 = arith.constant 12 : index
    %c0_238 = arith.constant 0 : index
    %959 = vector.load %arg15[%c12_237, %c0_238] : memref<16x192xf32, #tpu.memory_space<vmem>>, vector<2x96xf32>
    %c2_239 = arith.constant 2 : index
    %c96_240 = arith.constant 96 : index
    %960 = vector.load %arg15[%c2_239, %c96_240] : memref<16x192xf32, #tpu.memory_space<vmem>>, vector<2x96xf32>
    %961 = vector.extract_strided_slice %958 {offsets = [0, 0], sizes = [2, 96], strides = [1, 1]} : vector<2x192xf32> to vector<2x96xf32>
    %962 = vector.extract_strided_slice %954 {offsets = [0, 0], sizes = [2, 32], strides = [1, 1]} : vector<2x64xf32> to vector<2x32xf32>
    %963 = vector.extract_strided_slice %959 {offsets = [0, 0], sizes = [2, 32], strides = [1, 1]} : vector<2x96xf32> to vector<2x32xf32>
    %964 = vector.extract_strided_slice %961 {offsets = [0, 0], sizes = [2, 32], strides = [1, 1]} : vector<2x96xf32> to vector<2x32xf32>
    %965 = arith.addf %963, %964 : vector<2x32xf32>
    %966 = arith.negf %965 : vector<2x32xf32>
    %967 = math.exp %966 : vector<2x32xf32>
    %cst_241 = arith.constant 1.000000e+00 : f32
    %968 = vector.broadcast %cst_241 : f32 to vector<2x32xf32>
    %969 = arith.addf %968, %967 : vector<2x32xf32>
    %970 = arith.divf %968, %969 : vector<2x32xf32>
    %971 = vector.extract_strided_slice %959 {offsets = [0, 32], sizes = [2, 32], strides = [1, 1]} : vector<2x96xf32> to vector<2x32xf32>
    %972 = vector.extract_strided_slice %961 {offsets = [0, 32], sizes = [2, 32], strides = [1, 1]} : vector<2x96xf32> to vector<2x32xf32>
    %973 = arith.addf %971, %972 : vector<2x32xf32>
    %974 = arith.negf %973 : vector<2x32xf32>
    %975 = math.exp %974 : vector<2x32xf32>
    %cst_242 = arith.constant 1.000000e+00 : f32
    %976 = vector.broadcast %cst_242 : f32 to vector<2x32xf32>
    %977 = arith.addf %976, %975 : vector<2x32xf32>
    %978 = arith.divf %976, %977 : vector<2x32xf32>
    %979 = vector.extract_strided_slice %959 {offsets = [0, 64], sizes = [2, 32], strides = [1, 1]} : vector<2x96xf32> to vector<2x32xf32>
    %980 = vector.extract_strided_slice %961 {offsets = [0, 64], sizes = [2, 32], strides = [1, 1]} : vector<2x96xf32> to vector<2x32xf32>
    %981 = arith.mulf %970, %980 : vector<2x32xf32>
    %982 = arith.addf %979, %981 : vector<2x32xf32>
    %983 = math.tanh %982 : vector<2x32xf32>
    %cst_243 = arith.constant 1.000000e+00 : f32
    %984 = vector.broadcast %cst_243 : f32 to vector<2x32xf32>
    %985 = arith.subf %984, %978 : vector<2x32xf32>
    %986 = arith.mulf %985, %983 : vector<2x32xf32>
    %987 = arith.mulf %978, %962 : vector<2x32xf32>
    %988 = arith.addf %986, %987 : vector<2x32xf32>
    %989 = vector.extract_strided_slice %958 {offsets = [0, 96], sizes = [2, 96], strides = [1, 1]} : vector<2x192xf32> to vector<2x96xf32>
    %990 = vector.extract_strided_slice %954 {offsets = [0, 32], sizes = [2, 32], strides = [1, 1]} : vector<2x64xf32> to vector<2x32xf32>
    %991 = vector.extract_strided_slice %960 {offsets = [0, 0], sizes = [2, 32], strides = [1, 1]} : vector<2x96xf32> to vector<2x32xf32>
    %992 = vector.extract_strided_slice %989 {offsets = [0, 0], sizes = [2, 32], strides = [1, 1]} : vector<2x96xf32> to vector<2x32xf32>
    %993 = arith.addf %991, %992 : vector<2x32xf32>
    %994 = arith.negf %993 : vector<2x32xf32>
    %995 = math.exp %994 : vector<2x32xf32>
    %cst_244 = arith.constant 1.000000e+00 : f32
    %996 = vector.broadcast %cst_244 : f32 to vector<2x32xf32>
    %997 = arith.addf %996, %995 : vector<2x32xf32>
    %998 = arith.divf %996, %997 : vector<2x32xf32>
    %999 = vector.extract_strided_slice %960 {offsets = [0, 32], sizes = [2, 32], strides = [1, 1]} : vector<2x96xf32> to vector<2x32xf32>
    %1000 = vector.extract_strided_slice %989 {offsets = [0, 32], sizes = [2, 32], strides = [1, 1]} : vector<2x96xf32> to vector<2x32xf32>
    %1001 = arith.addf %999, %1000 : vector<2x32xf32>
    %1002 = arith.negf %1001 : vector<2x32xf32>
    %1003 = math.exp %1002 : vector<2x32xf32>
    %cst_245 = arith.constant 1.000000e+00 : f32
    %1004 = vector.broadcast %cst_245 : f32 to vector<2x32xf32>
    %1005 = arith.addf %1004, %1003 : vector<2x32xf32>
    %1006 = arith.divf %1004, %1005 : vector<2x32xf32>
    %1007 = vector.extract_strided_slice %960 {offsets = [0, 64], sizes = [2, 32], strides = [1, 1]} : vector<2x96xf32> to vector<2x32xf32>
    %1008 = vector.extract_strided_slice %989 {offsets = [0, 64], sizes = [2, 32], strides = [1, 1]} : vector<2x96xf32> to vector<2x32xf32>
    %1009 = arith.mulf %998, %1008 : vector<2x32xf32>
    %1010 = arith.addf %1007, %1009 : vector<2x32xf32>
    %1011 = math.tanh %1010 : vector<2x32xf32>
    %cst_246 = arith.constant 1.000000e+00 : f32
    %1012 = vector.broadcast %cst_246 : f32 to vector<2x32xf32>
    %1013 = arith.subf %1012, %1006 : vector<2x32xf32>
    %1014 = arith.mulf %1013, %1011 : vector<2x32xf32>
    %1015 = arith.mulf %1006, %990 : vector<2x32xf32>
    %1016 = arith.addf %1014, %1015 : vector<2x32xf32>
    %c12_247 = arith.constant 12 : index
    %c0_248 = arith.constant 0 : index
    %1017 = vector.load %arg16[%c12_247, %c0_248] : memref<16x64xf32, #tpu.memory_space<vmem>>, vector<2x32xf32>
    tpu.vector_store %arg16[%c12_247, %c0_248], %988 {strides = array<i32>} : memref<16x64xf32, #tpu.memory_space<vmem>>, vector<2x32xf32>,
    %c2_249 = arith.constant 2 : index
    %c32_250 = arith.constant 32 : index
    %1018 = vector.load %arg16[%c2_249, %c32_250] : memref<16x64xf32, #tpu.memory_space<vmem>>, vector<2x32xf32>
    tpu.vector_store %arg16[%c2_249, %c32_250], %1016 {strides = array<i32>} : memref<16x64xf32, #tpu.memory_space<vmem>>, vector<2x32xf32>,
    %1019 = tpu.concatenate %988, %1016 in 1 : vector<2x32xf32>, vector<2x32xf32> -> vector<2x64xf32>
    %1020 = arith.truncf %1019 : vector<2x64xf32> to vector<2x64xbf16>
    %cst_251 = arith.constant dense<0.000000e+00> : vector<2x192xf32>
    %1021 = tpu.matmul %1020, %562, %cst_251 {dimension_numbers = #tpu.dot_dimension_numbers<[1], [0], [0], [1], [0, 0, 1, 1], [], []>} : vector<2x64xbf16>, vector<64x192xbf16>, vector<2x192xf32> -> vector<2x192xf32>
    %1022 = vector.broadcast %563 : vector<1x192xf32> to vector<2x192xf32>
    %1023 = arith.addf %1021, %1022 : vector<2x192xf32>
    %c14_252 = arith.constant 14 : index
    %c0_253 = arith.constant 0 : index
    %1024 = vector.load %arg15[%c14_252, %c0_253] : memref<16x192xf32, #tpu.memory_space<vmem>>, vector<2x96xf32>
    %c0_254 = arith.constant 0 : index
    %c96_255 = arith.constant 96 : index
    %1025 = vector.load %arg15[%c0_254, %c96_255] : memref<16x192xf32, #tpu.memory_space<vmem>>, vector<2x96xf32>
    %1026 = vector.extract_strided_slice %1023 {offsets = [0, 0], sizes = [2, 96], strides = [1, 1]} : vector<2x192xf32> to vector<2x96xf32>
    %1027 = vector.extract_strided_slice %1019 {offsets = [0, 0], sizes = [2, 32], strides = [1, 1]} : vector<2x64xf32> to vector<2x32xf32>
    %1028 = vector.extract_strided_slice %1024 {offsets = [0, 0], sizes = [2, 32], strides = [1, 1]} : vector<2x96xf32> to vector<2x32xf32>
    %1029 = vector.extract_strided_slice %1026 {offsets = [0, 0], sizes = [2, 32], strides = [1, 1]} : vector<2x96xf32> to vector<2x32xf32>
    %1030 = arith.addf %1028, %1029 : vector<2x32xf32>
    %1031 = arith.negf %1030 : vector<2x32xf32>
    %1032 = math.exp %1031 : vector<2x32xf32>
    %cst_256 = arith.constant 1.000000e+00 : f32
    %1033 = vector.broadcast %cst_256 : f32 to vector<2x32xf32>
    %1034 = arith.addf %1033, %1032 : vector<2x32xf32>
    %1035 = arith.divf %1033, %1034 : vector<2x32xf32>
    %1036 = vector.extract_strided_slice %1024 {offsets = [0, 32], sizes = [2, 32], strides = [1, 1]} : vector<2x96xf32> to vector<2x32xf32>
    %1037 = vector.extract_strided_slice %1026 {offsets = [0, 32], sizes = [2, 32], strides = [1, 1]} : vector<2x96xf32> to vector<2x32xf32>
    %1038 = arith.addf %1036, %1037 : vector<2x32xf32>
    %1039 = arith.negf %1038 : vector<2x32xf32>
    %1040 = math.exp %1039 : vector<2x32xf32>
    %cst_257 = arith.constant 1.000000e+00 : f32
    %1041 = vector.broadcast %cst_257 : f32 to vector<2x32xf32>
    %1042 = arith.addf %1041, %1040 : vector<2x32xf32>
    %1043 = arith.divf %1041, %1042 : vector<2x32xf32>
    %1044 = vector.extract_strided_slice %1024 {offsets = [0, 64], sizes = [2, 32], strides = [1, 1]} : vector<2x96xf32> to vector<2x32xf32>
    %1045 = vector.extract_strided_slice %1026 {offsets = [0, 64], sizes = [2, 32], strides = [1, 1]} : vector<2x96xf32> to vector<2x32xf32>
    %1046 = arith.mulf %1035, %1045 : vector<2x32xf32>
    %1047 = arith.addf %1044, %1046 : vector<2x32xf32>
    %1048 = math.tanh %1047 : vector<2x32xf32>
    %cst_258 = arith.constant 1.000000e+00 : f32
    %1049 = vector.broadcast %cst_258 : f32 to vector<2x32xf32>
    %1050 = arith.subf %1049, %1043 : vector<2x32xf32>
    %1051 = arith.mulf %1050, %1048 : vector<2x32xf32>
    %1052 = arith.mulf %1043, %1027 : vector<2x32xf32>
    %1053 = arith.addf %1051, %1052 : vector<2x32xf32>
    %1054 = vector.extract_strided_slice %1023 {offsets = [0, 96], sizes = [2, 96], strides = [1, 1]} : vector<2x192xf32> to vector<2x96xf32>
    %1055 = vector.extract_strided_slice %1019 {offsets = [0, 32], sizes = [2, 32], strides = [1, 1]} : vector<2x64xf32> to vector<2x32xf32>
    %1056 = vector.extract_strided_slice %1025 {offsets = [0, 0], sizes = [2, 32], strides = [1, 1]} : vector<2x96xf32> to vector<2x32xf32>
    %1057 = vector.extract_strided_slice %1054 {offsets = [0, 0], sizes = [2, 32], strides = [1, 1]} : vector<2x96xf32> to vector<2x32xf32>
    %1058 = arith.addf %1056, %1057 : vector<2x32xf32>
    %1059 = arith.negf %1058 : vector<2x32xf32>
    %1060 = math.exp %1059 : vector<2x32xf32>
    %cst_259 = arith.constant 1.000000e+00 : f32
    %1061 = vector.broadcast %cst_259 : f32 to vector<2x32xf32>
    %1062 = arith.addf %1061, %1060 : vector<2x32xf32>
    %1063 = arith.divf %1061, %1062 : vector<2x32xf32>
    %1064 = vector.extract_strided_slice %1025 {offsets = [0, 32], sizes = [2, 32], strides = [1, 1]} : vector<2x96xf32> to vector<2x32xf32>
    %1065 = vector.extract_strided_slice %1054 {offsets = [0, 32], sizes = [2, 32], strides = [1, 1]} : vector<2x96xf32> to vector<2x32xf32>
    %1066 = arith.addf %1064, %1065 : vector<2x32xf32>
    %1067 = arith.negf %1066 : vector<2x32xf32>
    %1068 = math.exp %1067 : vector<2x32xf32>
    %cst_260 = arith.constant 1.000000e+00 : f32
    %1069 = vector.broadcast %cst_260 : f32 to vector<2x32xf32>
    %1070 = arith.addf %1069, %1068 : vector<2x32xf32>
    %1071 = arith.divf %1069, %1070 : vector<2x32xf32>
    %1072 = vector.extract_strided_slice %1025 {offsets = [0, 64], sizes = [2, 32], strides = [1, 1]} : vector<2x96xf32> to vector<2x32xf32>
    %1073 = vector.extract_strided_slice %1054 {offsets = [0, 64], sizes = [2, 32], strides = [1, 1]} : vector<2x96xf32> to vector<2x32xf32>
    %1074 = arith.mulf %1063, %1073 : vector<2x32xf32>
    %1075 = arith.addf %1072, %1074 : vector<2x32xf32>
    %1076 = math.tanh %1075 : vector<2x32xf32>
    %cst_261 = arith.constant 1.000000e+00 : f32
    %1077 = vector.broadcast %cst_261 : f32 to vector<2x32xf32>
    %1078 = arith.subf %1077, %1071 : vector<2x32xf32>
    %1079 = arith.mulf %1078, %1076 : vector<2x32xf32>
    %1080 = arith.mulf %1071, %1055 : vector<2x32xf32>
    %1081 = arith.addf %1079, %1080 : vector<2x32xf32>
    %c14_262 = arith.constant 14 : index
    %c0_263 = arith.constant 0 : index
    %1082 = vector.load %arg16[%c14_262, %c0_263] : memref<16x64xf32, #tpu.memory_space<vmem>>, vector<2x32xf32>
    tpu.vector_store %arg16[%c14_262, %c0_263], %1053 {strides = array<i32>} : memref<16x64xf32, #tpu.memory_space<vmem>>, vector<2x32xf32>,
    %c0_264 = arith.constant 0 : index
    %c32_265 = arith.constant 32 : index
    %1083 = vector.load %arg16[%c0_264, %c32_265] : memref<16x64xf32, #tpu.memory_space<vmem>>, vector<2x32xf32>
    tpu.vector_store %arg16[%c0_264, %c32_265], %1081 {strides = array<i32>} : memref<16x64xf32, #tpu.memory_space<vmem>>, vector<2x32xf32>,
    %c14_266 = arith.constant 14 : index
    %c0_267 = arith.constant 0 : index
    %1084 = vector.load %arg16[%c14_266, %c0_267] : memref<16x64xf32, #tpu.memory_space<vmem>>, vector<2x64xf32>
    %1085 = arith.truncf %1084 : vector<2x64xf32> to vector<2x64xbf16>
    %c0_268 = arith.constant 0 : index
    %c0_269 = arith.constant 0 : index
    %1086 = vector.load %arg12[%c0_268, %c0_269] : memref<64x5xbf16, #tpu.memory_space<vmem>>, vector<64x5xbf16>
    %cst_270 = arith.constant dense<0.000000e+00> : vector<2x5xf32>
    %1087 = tpu.matmul %1085, %1086, %cst_270 {dimension_numbers = #tpu.dot_dimension_numbers<[1], [0], [0], [1], [0, 0, 1, 1], [], []>} : vector<2x64xbf16>, vector<64x5xbf16>, vector<2x5xf32> -> vector<2x5xf32>
    %c0_271 = arith.constant 0 : index
    %c0_272 = arith.constant 0 : index
    %1088 = vector.load %arg13[%c0_271, %c0_272] : memref<1x5xf32, #tpu.memory_space<vmem>>, vector<1x5xf32>
    %1089 = vector.broadcast %1088 : vector<1x5xf32> to vector<2x5xf32>
    %1090 = arith.addf %1087, %1089 : vector<2x5xf32>
    %c0_273 = arith.constant 0 : index
    %c0_274 = arith.constant 0 : index
    %1091 = vector.load %arg14[%c0_273, %c0_274] : memref<2x5xf32, #tpu.memory_space<vmem>>, vector<2x5xf32>
    tpu.vector_store %arg14[%c0_273, %c0_274], %1090 {strides = array<i32>} : memref<2x5xf32, #tpu.memory_space<vmem>>, vector<2x5xf32>,
    return
  }
  func.func @transform_0(%arg0: i32) -> (i32, i32) {
    %c0_i32 = arith.constant 0 : i32
    %c0_i32_0 = arith.constant 0 : i32
    %c0_i32_1 = arith.constant 0 : i32
    return %c0_i32, %c0_i32_0 : i32, i32
  }
  func.func @transform_1(%arg0: i32) -> (i32, i32) {
    %c0_i32 = arith.constant 0 : i32
    %c0_i32_0 = arith.constant 0 : i32
    %c0_i32_1 = arith.constant 0 : i32
    return %c0_i32, %c0_i32_0 : i32, i32
  }
  func.func @transform_2(%arg0: i32) -> (i32, i32) {
    %c0_i32 = arith.constant 0 : i32
    %c0_i32_0 = arith.constant 0 : i32
    %c0_i32_1 = arith.constant 0 : i32
    return %c0_i32, %c0_i32_0 : i32, i32
  }
  func.func @transform_3(%arg0: i32) -> (i32, i32) {
    %c0_i32 = arith.constant 0 : i32
    %c0_i32_0 = arith.constant 0 : i32
    %c0_i32_1 = arith.constant 0 : i32
    return %c0_i32, %c0_i32_0 : i32, i32
  }
  func.func @transform_4(%arg0: i32) -> (i32, i32) {
    %c0_i32 = arith.constant 0 : i32
    %c0_i32_0 = arith.constant 0 : i32
    %c0_i32_1 = arith.constant 0 : i32
    return %c0_i32, %c0_i32_0 : i32, i32
  }
  func.func @transform_5(%arg0: i32) -> (i32, i32) {
    %c0_i32 = arith.constant 0 : i32
    %c0_i32_0 = arith.constant 0 : i32
    %c0_i32_1 = arith.constant 0 : i32
    return %c0_i32, %c0_i32_0 : i32, i32
  }
  func.func @transform_6(%arg0: i32) -> (i32, i32) {
    %c0_i32 = arith.constant 0 : i32
    %c0_i32_0 = arith.constant 0 : i32
    %c0_i32_1 = arith.constant 0 : i32
    return %c0_i32, %c0_i32_0 : i32, i32
  }
  func.func @transform_7(%arg0: i32) -> (i32, i32) {
    %c0_i32 = arith.constant 0 : i32
    %c0_i32_0 = arith.constant 0 : i32
    %c0_i32_1 = arith.constant 0 : i32
    return %c0_i32, %c0_i32_0 : i32, i32
  }
  func.func @transform_8(%arg0: i32) -> (i32, i32) {
    %c0_i32 = arith.constant 0 : i32
    %c0_i32_0 = arith.constant 0 : i32
    %c0_i32_1 = arith.constant 0 : i32
    return %c0_i32, %c0_i32_0 : i32, i32
  }
  func.func @transform_9(%arg0: i32) -> (i32, i32) {
    %c0_i32 = arith.constant 0 : i32
    %c0_i32_0 = arith.constant 0 : i32
    %c0_i32_1 = arith.constant 0 : i32
    return %c0_i32, %c0_i32_0 : i32, i32
  }
  func.func @transform_10(%arg0: i32) -> (i32, i32) {
    %c0_i32 = arith.constant 0 : i32
    %c0_i32_0 = arith.constant 0 : i32
    %c0_i32_1 = arith.constant 0 : i32
    return %c0_i32, %c0_i32_0 : i32, i32
  }
  func.func @transform_11(%arg0: i32) -> (i32, i32) {
    %c0_i32 = arith.constant 0 : i32
    %c0_i32_0 = arith.constant 0 : i32
    %c0_i32_1 = arith.constant 0 : i32
    return %c0_i32, %c0_i32_0 : i32, i32
  }
  func.func @transform_12(%arg0: i32) -> (i32, i32) {
    %c0_i32 = arith.constant 0 : i32
    %c0_i32_0 = arith.constant 0 : i32
    %c0_i32_1 = arith.constant 0 : i32
    return %c0_i32, %c0_i32_0 : i32, i32
  }
  func.func @transform_13(%arg0: i32) -> (i32, i32) {
    %c0_i32 = arith.constant 0 : i32
    %c0_i32_0 = arith.constant 0 : i32
    %c0_i32_1 = arith.constant 0 : i32
    return %c0_i32, %c0_i32_0 : i32, i32
  }
}

</mosaic_0001>

<llo_original>
// kernel: gru_bi_forward.1
$region0: #{gru_bi_forward.1}
  #allocation0 [shape = 'u32[]', space=smem, size = 0x4, offset = 0x4, fixed_abs, tag = 'smem constant byte address 0x4 - core index']
  #allocation1 [shape = 'u32[144,128]{1,0:T(1,128)}', space=vmem, size = 0x12000, scoped, tag = 'internal scratch']
  #allocation2 [shape = 'f32[16,192]{1,0:T(8,128)}', space=vmem, size = 0x4000, scoped, tag = 'scratch operand']
  #allocation3 [shape = 'f32[16,64]{1,0:T(8,128)}', space=vmem, size = 0x2000, scoped, tag = 'scratch operand']
  %s0 = inlined_call_operand.vmem [shape: f32[16,16], index: 0, kind: input, shape index: {}]
  %s1 = inlined_call_operand.vmem [shape: f32[1,16], index: 1, kind: input, shape index: {}]
  %s2 = inlined_call_operand.vmem [shape: f32[1,16], index: 2, kind: input, shape index: {}]
  %s3 = inlined_call_operand.vmem [shape: bf16[16,192], index: 3, kind: input, shape index: {}]
  %s4 = inlined_call_operand.vmem [shape: f32[1,192], index: 4, kind: input, shape index: {}]
  %s5 = inlined_call_operand.vmem [shape: bf16[64,192], index: 5, kind: input, shape index: {}]
  %s6 = inlined_call_operand.vmem [shape: f32[1,192], index: 6, kind: input, shape index: {}]
  %s7 = inlined_call_operand.vmem [shape: bf16[64,192], index: 7, kind: input, shape index: {}]
  %s8 = inlined_call_operand.vmem [shape: f32[1,192], index: 8, kind: input, shape index: {}]
  %s9 = inlined_call_operand.vmem [shape: bf16[64,192], index: 9, kind: input, shape index: {}]
  %s10 = inlined_call_operand.vmem [shape: f32[1,192], index: 10, kind: input, shape index: {}]
  %s11 = inlined_call_operand.vmem [shape: bf16[64,5], index: 11, kind: input, shape index: {}]
  %s12 = inlined_call_operand.vmem [shape: f32[1,5], index: 12, kind: input, shape index: {}]
  %s13 = inlined_call_operand.hbm [shape: f32[2,5], index: 13, kind: output, shape index: {}]
  %s14 = sld [smem:[#allocation0]]
  $region62: #{gru_bi_forward.1} parent=0
    _
  %s16 = ssub.s32 1, %s14
  %s17 = scalar_select 0, %s16, %s14
  $region1: #{gru_bi_forward.1} parent=0
    #allocation4 [shape = 'u8[1024]{0}', space=vmem, size = 0x400, scoped, tag = 'output window, operand 0, single buffered']
    #allocation5 [shape = 's32[1]{0}', space=sflag, size = 0x4, scoped, tag = 'scoped memory for gru_bi_forward.1']
    %18 = vsyncpa [#allocation5], 0
    // Predicated region
    $region2: #{gru_bi_forward.1} parent=1 // pred_check
      _
    $region3: #{gru_bi_forward.1} parent=1 // pred_check_branch
      %20 = sbr.rel (0) target = $region5
    $region4: #{gru_bi_forward.1} parent=1 // pred_region
      _
    $region5: #{gru_bi_forward.1} parent=1 // pred_fallthru
      _
    // Predicated region
    $region6: #{gru_bi_forward.1} parent=1 // pred_check
      _
    $region7: #{gru_bi_forward.1} parent=1 // pred_check_branch
      %22 = sbr.rel (0) target = $region9
    $region8: #{gru_bi_forward.1} parent=1 // pred_region
      _
    $region9: #{gru_bi_forward.1} parent=1 // pred_fallthru
      _
    // Predicated region
    $region10: #{gru_bi_forward.1} parent=1 // pred_check
      _
    $region11: #{gru_bi_forward.1} parent=1 // pred_check_branch
      %24 = sbr.rel (0) target = $region13
    $region12: #{gru_bi_forward.1} parent=1 // pred_region
      _
    $region13: #{gru_bi_forward.1} parent=1 // pred_fallthru
      _
    // Predicated region
    $region14: #{gru_bi_forward.1} parent=1 // pred_check
      _
    $region15: #{gru_bi_forward.1} parent=1 // pred_check_branch
      %26 = sbr.rel (0) target = $region17
    $region16: #{gru_bi_forward.1} parent=1 // pred_region
      _
    $region17: #{gru_bi_forward.1} parent=1 // pred_fallthru
      _
    // Predicated region
    $region18: #{gru_bi_forward.1} parent=1 // pred_check
      _
    $region19: #{gru_bi_forward.1} parent=1 // pred_check_branch
      %28 = sbr.rel (0) target = $region21
    $region20: #{gru_bi_forward.1} parent=1 // pred_region
      _
    $region21: #{gru_bi_forward.1} parent=1 // pred_fallthru
      _
    // Predicated region
    $region22: #{gru_bi_forward.1} parent=1 // pred_check
      _
    $region23: #{gru_bi_forward.1} parent=1 // pred_check_branch
      %30 = sbr.rel (0) target = $region25
    $region24: #{gru_bi_forward.1} parent=1 // pred_region
      _
    $region25: #{gru_bi_forward.1} parent=1 // pred_fallthru
      _
    // Predicated region
    $region26: #{gru_bi_forward.1} parent=1 // pred_check
      _
    $region27: #{gru_bi_forward.1} parent=1 // pred_check_branch
      %32 = sbr.rel (0) target = $region29
    $region28: #{gru_bi_forward.1} parent=1 // pred_region
      _
    $region29: #{gru_bi_forward.1} parent=1 // pred_fallthru
      _
    // Predicated region
    $region30: #{gru_bi_forward.1} parent=1 // pred_check
      _
    $region31: #{gru_bi_forward.1} parent=1 // pred_check_branch
      %34 = sbr.rel (0) target = $region33
    $region32: #{gru_bi_forward.1} parent=1 // pred_region
      _
    $region33: #{gru_bi_forward.1} parent=1 // pred_fallthru
      _
    // Predicated region
    $region34: #{gru_bi_forward.1} parent=1 // pred_check
      _
    $region35: #{gru_bi_forward.1} parent=1 // pred_check_branch
      %36 = sbr.rel (0) target = $region37
    $region36: #{gru_bi_forward.1} parent=1 // pred_region
      _
    $region37: #{gru_bi_forward.1} parent=1 // pred_fallthru
      _
    // Predicated region
    $region38: #{gru_bi_forward.1} parent=1 // pred_check
      _
    $region39: #{gru_bi_forward.1} parent=1 // pred_check_branch
      %38 = sbr.rel (0) target = $region41
    $region40: #{gru_bi_forward.1} parent=1 // pred_region
      _
    $region41: #{gru_bi_forward.1} parent=1 // pred_fallthru
      _
    // Predicated region
    $region42: #{gru_bi_forward.1} parent=1 // pred_check
      _
    $region43: #{gru_bi_forward.1} parent=1 // pred_check_branch
      %40 = sbr.rel (0) target = $region45
    $region44: #{gru_bi_forward.1} parent=1 // pred_region
      _
    $region45: #{gru_bi_forward.1} parent=1 // pred_fallthru
      _
    // Predicated region
    $region46: #{gru_bi_forward.1} parent=1 // pred_check
      _
    $region47: #{gru_bi_forward.1} parent=1 // pred_check_branch
      %42 = sbr.rel (0) target = $region49
    $region48: #{gru_bi_forward.1} parent=1 // pred_region
      _
    $region49: #{gru_bi_forward.1} parent=1 // pred_fallthru
      _
    // Predicated region
    $region50: #{gru_bi_forward.1} parent=1 // pred_check
      _
    $region51: #{gru_bi_forward.1} parent=1 // pred_check_branch
      %44 = sbr.rel (0) target = $region53
    $region52: #{gru_bi_forward.1} parent=1 // pred_region
      _
    $region53: #{gru_bi_forward.1} parent=1 // pred_fallthru
      _
    %v46 = vld [vmem:[%s0] sm:$0xff]
    %v47 = vld [vmem:[%s0 + $0x8] sm:$0xff]
    %vm48 = vcmask 130048
    %v49 = vsel %vm48, %v46, 0.0
    %50 = vadd.xlane.f32.xlu0 %v49
    %v51 = vpop.xlane.xlu0 %50
    %v52 = vsel %vm48, %v47, 0.0
    %53 = vadd.xlane.f32.xlu0 %v52
    %v54 = vpop.xlane.xlu0 %53
    %v55 = vrcp.pop 16.0
    %v56 = vmul.f32 %v51, %v55
    %v57 = vmul.f32 %v54, %v55
    %v58 = vsub.f32 %v46, %v56
    %v59 = vsub.f32 %v47, %v57
    %v60 = vmul.f32 %v58, %v58
    %v61 = vmul.f32 %v59, %v59
    %v62 = vsel %vm48, %v60, 0.0
    %63 = vadd.xlane.f32.xlu0 %v62
    %v64 = vpop.xlane.xlu0 %63
    %v65 = vsel %vm48, %v61, 0.0
    %66 = vadd.xlane.f32.xlu0 %v65
    %v67 = vpop.xlane.xlu0 %66
    %v68 = vmul.f32 %v64, %v55
    %v69 = vmul.f32 %v67, %v55
    %v70 = vadd.f32 %v68, 1e-05
    %v71 = vadd.f32 %v69, 1e-05
    %v72 = vrsqrt.pop %v70
    %v73 = vrsqrt.pop %v71
    %v74 = vmul.f32 %v58, %v72
    %v75 = vmul.f32 %v59, %v73
    %v76 = vld [vmem:[%s1] sm:$0x1]
    %v78 = vlaneseq
    %v79 = vshrl.u32 %v78, 7
    %v80 = vsub.s32 0, %v79
    %v81 = vrot.slane %v76, %v80
    %v83 = vmul.f32 %v74, %v81
    %v84 = vmul.f32 %v75, %v81
    %v85 = vld [vmem:[%s2] sm:$0x1]
    %v87 = vlaneseq
    %v88 = vshrl.u32 %v87, 7
    %v89 = vsub.s32 0, %v88
    %v90 = vrot.slane %v85, %v89
    %v92 = vadd.f32 %v83, %v90
    %v93 = vadd.f32 %v84, %v90
    %v94 = vpack.c.bf16 %v93, %v92
    %v95 = vld [vmem:[%s3] sm:$0xff]
    %v96 = vld [vmem:[%s3 + $0x8] sm:$0xff]
    %v97 = vld [vmem:[%s4] sm:$0x3]
    %v99 = vlaneseq
    %v100 = vshrl.u32 %v99, 7
    %v101 = vsub.s32 0, %v100
    %v102 = vrot.slane %v97, %v101
    %v103 = vlaneseq
    %v104 = vshrl.u32 %v103, 7
    %v105 = vsub.s32 1, %v104
    %v106 = vrot.slane %v97, %v105
    %v111 = vunpack.c.l.b16 %v95
    %v112 = vunpack.c.h.b16 %v95
    %v113 = vunpack.c.l.b16 %v96
    %v114 = vunpack.c.h.b16 %v96
    %v115 = vpack.c.b16 %v113, %v111
    %v116 = vpack.c.b16 %v114, %v112
    %v120 = vsel %vm48, %v94, 0
    %122 = vmatprep.subr.bf16.mxu0 0
    %123 = vmatpush1.bf16.msra.mxu0 0
    %124 = vmatprep.subr.bf16.mxu0 0
    %125 = vmatpush1.bf16.msra.mxu0 0
    %126 = vmatprep.subr.bf16.mxu0 0
    %127 = vmatpush1.bf16.msra.mxu0 0
    %128 = vmatprep.subr.bf16.mxu0 0
    %129 = vmatpush1.bf16.msra.mxu0 0
    %130 = vmatprep.subr.bf16.mxu0 0
    %131 = vmatpush1.bf16.msra.mxu0 0
    %132 = vmatprep.subr.bf16.mxu0 0
    %133 = vmatpush1.bf16.msra.mxu0 0
    %134 = vmatprep.subr.bf16.mxu0 0
    %135 = vmatpush1.bf16.msra.mxu0 0
    %136 = vmatprep.subr.bf16.mxu0 %v116
    %137 = vmatpush1.bf16.msra.mxu0 %v115
    %138 = vmatprep.subr.bf16.mxu0 0
    %139 = vmatpush2.bf16.msra.mxu0 0
    %140 = vmatprep.subr.bf16.mxu0 0
    %141 = vmatpush2.bf16.msra.mxu0 0
    %142 = vmatprep.subr.bf16.mxu0 0
    %143 = vmatpush2.bf16.msra.mxu0 0
    %144 = vmatprep.subr.bf16.mxu0 0
    %145 = vmatpush2.bf16.msra.mxu0 0
    %146 = vmatprep.subr.bf16.mxu0 0
    %147 = vmatpush2.bf16.msra.mxu0 0
    %148 = vmatprep.subr.bf16.mxu0 0
    %149 = vmatpush2.bf16.msra.mxu0 0
    %150 = vmatprep.subr.bf16.mxu0 0
    %151 = vmatpush2.bf16.msra.mxu0 0
    %152 = vmatprep.subr.bf16.mxu0 0
    %153 = vmatpush2.bf16.msra.mxu0 0
    %154 = vmatprep.mubr.bf16.mxu0 0
    %155 = vmatmul.mubr.bf16.gmra.mxu0 %v120
    %v156 = vpop.f32.mrf.mxu0
    %v157 = vadd.f32 %v102, %v156
    %v158 = vpop.f32.mrf.mxu0
    %v159 = vadd.f32 %v106, %v158
    %v160 = vpop.f32.mrf.mxu0
    %v161 = vadd.f32 %v102, %v160
    %v162 = vpop.f32.mrf.mxu0
    %v163 = vadd.f32 %v106, %v162
    %164 = vdwg.mxu0
    %165 = vst [vmem:[#allocation2] sm:$0xff] %v157
    %vm166 = vcmask 523264
    %167 = vst.msk [vmem:[#allocation2 + $0x8] sm:$0xff] %vm166, %v159
    %168 = vst [vmem:[#allocation2 + $0x10] sm:$0xff] %v161
    %169 = vst.msk [vmem:[#allocation2 + $0x18] sm:$0xff] %vm166, %v163
    %v170 = vld [vmem:[%s5] sm:$0xff]
    %v171 = vld [vmem:[%s5 + $0x8] sm:$0xff]
    %v172 = vld [vmem:[%s5 + $0x10] sm:$0xff]
    %v173 = vld [vmem:[%s5 + $0x18] sm:$0xff]
    %v174 = vld [vmem:[%s5 + $0x20] sm:$0xff]
    %v175 = vld [vmem:[%s5 + $0x28] sm:$0xff]
    %v176 = vld [vmem:[%s5 + $0x30] sm:$0xff]
    %v177 = vld [vmem:[%s5 + $0x38] sm:$0xff]
    %v178 = vld [vmem:[%s6] sm:$0x3]
    %v180 = vlaneseq
    %v181 = vshrl.u32 %v180, 7
    %v182 = vsub.s32 0, %v181
    %v183 = vrot.slane %v178, %v182
    %v184 = vlaneseq
    %v185 = vshrl.u32 %v184, 7
    %v186 = vsub.s32 1, %v185
    %v187 = vrot.slane %v178, %v186
    %v198 = vunpack.c.l.b16 %v170
    %v199 = vunpack.c.h.b16 %v170
    %v200 = vunpack.c.l.b16 %v171
    %v201 = vunpack.c.h.b16 %v171
    %v202 = vunpack.c.l.b16 %v172
    %v203 = vunpack.c.h.b16 %v172
    %v204 = vunpack.c.l.b16 %v173
    %v205 = vunpack.c.h.b16 %v173
    %v206 = vunpack.c.l.b16 %v174
    %v207 = vunpack.c.h.b16 %v174
    %v208 = vunpack.c.l.b16 %v175
    %v209 = vunpack.c.h.b16 %v175
    %v210 = vunpack.c.l.b16 %v176
    %v211 = vunpack.c.h.b16 %v176
    %v212 = vunpack.c.l.b16 %v177
    %v213 = vunpack.c.h.b16 %v177
    %v214 = vpack.c.b16 %v200, %v198
    %v215 = vpack.c.b16 %v201, %v199
    %v216 = vpack.c.b16 %v204, %v202
    %v217 = vpack.c.b16 %v205, %v203
    %v218 = vpack.c.b16 %v208, %v206
    %v219 = vpack.c.b16 %v209, %v207
    %v220 = vpack.c.b16 %v212, %v210
    %v221 = vpack.c.b16 %v213, %v211
    %v231 = vsel %vm166, 0, 0
    %233 = vmatprep.subr.bf16.mxu0 0
    %234 = vmatpush1.bf16.msra.mxu0 0
    %235 = vmatprep.subr.bf16.mxu0 0
    %236 = vmatpush1.bf16.msra.mxu0 0
    %237 = vmatprep.subr.bf16.mxu0 0
    %238 = vmatpush1.bf16.msra.mxu0 0
    %239 = vmatprep.subr.bf16.mxu0 0
    %240 = vmatpush1.bf16.msra.mxu0 0
    %241 = vmatprep.subr.bf16.mxu0 %v221
    %242 = vmatpush1.bf16.msra.mxu0 %v220
    %243 = vmatprep.subr.bf16.mxu0 %v219
    %244 = vmatpush1.bf16.msra.mxu0 %v218
    %245 = vmatprep.subr.bf16.mxu0 %v217
    %246 = vmatpush1.bf16.msra.mxu0 %v216
    %247 = vmatprep.subr.bf16.mxu0 %v215
    %248 = vmatpush1.bf16.msra.mxu0 %v214
    %249 = vmatprep.subr.bf16.mxu0 0
    %250 = vmatpush2.bf16.msra.mxu0 0
    %251 = vmatprep.subr.bf16.mxu0 0
    %252 = vmatpush2.bf16.msra.mxu0 0
    %253 = vmatprep.subr.bf16.mxu0 0
    %254 = vmatpush2.bf16.msra.mxu0 0
    %255 = vmatprep.subr.bf16.mxu0 0
    %256 = vmatpush2.bf16.msra.mxu0 0
    %257 = vmatprep.subr.bf16.mxu0 0
    %258 = vmatpush2.bf16.msra.mxu0 0
    %259 = vmatprep.subr.bf16.mxu0 0
    %260 = vmatpush2.bf16.msra.mxu0 0
    %261 = vmatprep.subr.bf16.mxu0 0
    %262 = vmatpush2.bf16.msra.mxu0 0
    %263 = vmatprep.subr.bf16.mxu0 0
    %264 = vmatpush2.bf16.msra.mxu0 0
    %265 = vmatprep.mubr.bf16.mxu0 0
    %266 = vmatmul.mubr.bf16.gmra.mxu0 %v231
    %v267 = vpop.f32.mrf.mxu0
    %v268 = vadd.f32 %v183, %v267
    %v269 = vpop.f32.mrf.mxu0
    %v270 = vadd.f32 %v187, %v269
    %v271 = vpop.f32.mrf.mxu0
    %v272 = vpop.f32.mrf.mxu0
    %273 = vdwg.mxu0
    %v274 = vld [vmem:[#allocation2] sm:$0x3]
    %v275 = vld [vmem:[#allocation2 + $0x10] sm:$0xc0]
    %v276 = vld [vmem:[#allocation2 + $0x18] sm:$0xc0]
    %v277 = vadd.f32 %v274, %v268
    %v278 = vxor.u32 %v277, 2147483648
    %v279 = vmul.f32 %v278, 1.442695
    %v280 = vpow.pop %v279
    %v281 = vadd.f32 %v280, 1.0
    %v282 = vrcp.pop %v281
    %v283 = vmul.f32 1.0, %v282
    %285 = vrot.lane.b32.xlu0 %v268, 64
    %v286 = vpop.permute.xlu0 %285
    %v288 = vmul.f32 %v283, %v286
    %290 = vrot.lane.b32.xlu0 %v288, 64
    %v291 = vpop.permute.xlu0 %290
    %v293 = vadd.f32 %v274, %v291
    %v294 = vtanh.pop %v293
    %v295 = vsub.f32 1.0, %v283
    %297 = vrot.lane.b32.xlu0 %v294, 96
    %v298 = vpop.permute.xlu0 %297
    %v300 = vmul.f32 %v295, %v298
    %v301 = vmul.f32 %v283, 0.0
    %v302 = vadd.f32 %v300, %v301
    %v303 = vrot.slane %v268, 2
    %v305 = vadd.f32 %v275, %v303
    %v306 = vxor.u32 %v305, 2147483648
    %v307 = vmul.f32 %v306, 1.442695
    %v308 = vpow.pop %v307
    %v309 = vadd.f32 %v308, 1.0
    %v310 = vrcp.pop %v309
    %v311 = vmul.f32 1.0, %v310
    %v313 = vrot.slane %v270, 2
    %v315 = vadd.f32 %v276, %v313
    %v316 = vxor.u32 %v315, 2147483648
    %v317 = vmul.f32 %v316, 1.442695
    %v318 = vpow.pop %v317
    %v319 = vadd.f32 %v318, 1.0
    %v320 = vrcp.pop %v319
    %v321 = vmul.f32 1.0, %v320
    %322 = vrot.lane.b32.xlu0 %v313, 64
    %v323 = vpop.permute.xlu0 %322
    %v325 = vmul.f32 %v311, %v323
    %327 = vrot.lane.b32.xlu0 %v325, 64
    %v328 = vpop.permute.xlu0 %327
    %v330 = vadd.f32 %v276, %v328
    %v331 = vtanh.pop %v330
    %v332 = vsub.f32 1.0, %v321
    %334 = vrot.lane.b32.xlu0 %v331, 96
    %v335 = vpop.permute.xlu0 %334
    %v337 = vmul.f32 %v332, %v335
    %v338 = vmul.f32 %v321, 0.0
    %v339 = vadd.f32 %v337, %v338
    %341 = vrot.lane.b32.xlu0 %v302, 96
    %v342 = vpop.permute.xlu0 %341
    %vm344 = vcmask 254976
    %345 = vst.msk [vmem:[#allocation3] sm:$0x3] %vm344, %v342
    %347 = vrot.lane.b32.xlu0 %v339, 32
    %v348 = vpop.permute.xlu0 %347
    %vm350 = vcmask 523526
    %351 = vst.msk [vmem:[#allocation3 + $0x8] sm:$0xc0] %vm350, %v348
    %v352 = vrot.slane %v339, 6
    %353 = vrot.lane.b32.xlu0 %v352, 32
    %v354 = vpop.permute.xlu0 %353
    %vm356 = vcmask 261120
    %v357 = vsel %vm356, %v342, %v354
    %v358 = vpack.c.bf16 %v357, %v357
    %v360 = vsel %vm166, %v358, 0
    %362 = vmatprep.subr.bf16.mxu0 0
    %363 = vmatpush1.bf16.msra.mxu0 0
    %364 = vmatprep.subr.bf16.mxu0 0
    %365 = vmatpush1.bf16.msra.mxu0 0
    %366 = vmatprep.subr.bf16.mxu0 0
    %367 = vmatpush1.bf16.msra.mxu0 0
    %368 = vmatprep.subr.bf16.mxu0 0
    %369 = vmatpush1.bf16.msra.mxu0 0
    %370 = vmatprep.subr.bf16.mxu0 %v221
    %371 = vmatpush1.bf16.msra.mxu0 %v220
    %372 = vmatprep.subr.bf16.mxu0 %v219
    %373 = vmatpush1.bf16.msra.mxu0 %v218
    %374 = vmatprep.subr.bf16.mxu0 %v217
    %375 = vmatpush1.bf16.msra.mxu0 %v216
    %376 = vmatprep.subr.bf16.mxu0 %v215
    %377 = vmatpush1.bf16.msra.mxu0 %v214
    %378 = vmatprep.subr.bf16.mxu0 0
    %379 = vmatpush2.bf16.msra.mxu0 0
    %380 = vmatprep.subr.bf16.mxu0 0
    %381 = vmatpush2.bf16.msra.mxu0 0
    %382 = vmatprep.subr.bf16.mxu0 0
    %383 = vmatpush2.bf16.msra.mxu0 0
    %384 = vmatprep.subr.bf16.mxu0 0
    %385 = vmatpush2.bf16.msra.mxu0 0
    %386 = vmatprep.subr.bf16.mxu0 0
    %387 = vmatpush2.bf16.msra.mxu0 0
    %388 = vmatprep.subr.bf16.mxu0 0
    %389 = vmatpush2.bf16.msra.mxu0 0
    %390 = vmatprep.subr.bf16.mxu0 0
    %391 = vmatpush2.bf16.msra.mxu0 0
    %392 = vmatprep.subr.bf16.mxu0 0
    %393 = vmatpush2.bf16.msra.mxu0 0
    %394 = vmatprep.mubr.bf16.mxu0 0
    %395 = vmatmul.mubr.bf16.gmra.mxu0 %v360
    %v396 = vpop.f32.mrf.mxu0
    %v397 = vadd.f32 %v183, %v396
    %v398 = vpop.f32.mrf.mxu0
    %v399 = vadd.f32 %v187, %v398
    %v400 = vpop.f32.mrf.mxu0
    %v401 = vpop.f32.mrf.mxu0
    %402 = vdwg.mxu0
    %v403 = vld [vmem:[#allocation2] sm:$0xc]
    %v404 = vld [vmem:[#allocation2 + $0x10] sm:$0x30]
    %v405 = vld [vmem:[#allocation2 + $0x18] sm:$0x30]
    %v407 = vrot.slane %v397, 6
    %v409 = vadd.f32 %v403, %v407
    %v410 = vxor.u32 %v409, 2147483648
    %v411 = vmul.f32 %v410, 1.442695
    %v412 = vpow.pop %v411
    %v413 = vadd.f32 %v412, 1.0
    %v414 = vrcp.pop %v413
    %v415 = vmul.f32 1.0, %v414
    %416 = vrot.lane.b32.xlu0 %v407, 64
    %v417 = vpop.permute.xlu0 %416
    %v419 = vmul.f32 %v415, %v417
    %421 = vrot.lane.b32.xlu0 %v419, 64
    %v422 = vpop.permute.xlu0 %421
    %v424 = vadd.f32 %v403, %v422
    %v425 = vtanh.pop %v424
    %v426 = vsub.f32 1.0, %v415
    %428 = vrot.lane.b32.xlu0 %v425, 96
    %v429 = vpop.permute.xlu0 %428
    %v431 = vmul.f32 %v426, %v429
    %v433 = vrot.slane %v357, 6
    %434 = vrot.lane.b32.xlu0 %v433, 32
    %v435 = vpop.permute.xlu0 %434
    %v437 = vmul.f32 %v415, %v435
    %v438 = vadd.f32 %v431, %v437
    %v439 = vrot.slane %v397, 4
    %v441 = vadd.f32 %v404, %v439
    %v442 = vxor.u32 %v441, 2147483648
    %v443 = vmul.f32 %v442, 1.442695
    %v444 = vpow.pop %v443
    %v445 = vadd.f32 %v444, 1.0
    %v446 = vrcp.pop %v445
    %v447 = vmul.f32 1.0, %v446
    %v449 = vrot.slane %v399, 4
    %v451 = vadd.f32 %v405, %v449
    %v452 = vxor.u32 %v451, 2147483648
    %v453 = vmul.f32 %v452, 1.442695
    %v454 = vpow.pop %v453
    %v455 = vadd.f32 %v454, 1.0
    %v456 = vrcp.pop %v455
    %v457 = vmul.f32 1.0, %v456
    %458 = vrot.lane.b32.xlu0 %v449, 64
    %v459 = vpop.permute.xlu0 %458
    %v461 = vmul.f32 %v447, %v459
    %463 = vrot.lane.b32.xlu0 %v461, 64
    %v464 = vpop.permute.xlu0 %463
    %v466 = vadd.f32 %v405, %v464
    %v467 = vtanh.pop %v466
    %v468 = vsub.f32 1.0, %v457
    %470 = vrot.lane.b32.xlu0 %v467, 96
    %v471 = vpop.permute.xlu0 %470
    %v473 = vmul.f32 %v468, %v471
    %v474 = vrot.slane %v357, 4
    %475 = vrot.lane.b32.xlu0 %v474, 96
    %v476 = vpop.permute.xlu0 %475
    %v478 = vmul.f32 %v457, %v476
    %v479 = vadd.f32 %v473, %v478
    %481 = vrot.lane.b32.xlu0 %v438, 96
    %v482 = vpop.permute.xlu0 %481
    %vm484 = vcmask 257026
    %485 = vst.msk [vmem:[#allocation3] sm:$0xc] %vm484, %v482
    %487 = vrot.lane.b32.xlu0 %v479, 32
    %v488 = vpop.permute.xlu0 %487
    %vm490 = vcmask 521476
    %491 = vst.msk [vmem:[#allocation3 + $0x8] sm:$0x30] %vm490, %v488
    %v492 = vrot.slane %v479, 2
    %493 = vrot.lane.b32.xlu0 %v492, 32
    %v494 = vpop.permute.xlu0 %493
    %v496 = vsel %vm356, %v482, %v494
    %v497 = vpack.c.bf16 %v496, %v496
    %v499 = vrot.slane %v497, 1
    %v501 = vsel %vm166, %v499, 0
    %503 = vmatprep.subr.bf16.mxu0 0
    %504 = vmatpush1.bf16.msra.mxu0 0
    %505 = vmatprep.subr.bf16.mxu0 0
    %506 = vmatpush1.bf16.msra.mxu0 0
    %507 = vmatprep.subr.bf16.mxu0 0
    %508 = vmatpush1.bf16.msra.mxu0 0
    %509 = vmatprep.subr.bf16.mxu0 0
    %510 = vmatpush1.bf16.msra.mxu0 0
    %511 = vmatprep.subr.bf16.mxu0 %v221
    %512 = vmatpush1.bf16.msra.mxu0 %v220
    %513 = vmatprep.subr.bf16.mxu0 %v219
    %514 = vmatpush1.bf16.msra.mxu0 %v218
    %515 = vmatprep.subr.bf16.mxu0 %v217
    %516 = vmatpush1.bf16.msra.mxu0 %v216
    %517 = vmatprep.subr.bf16.mxu0 %v215
    %518 = vmatpush1.bf16.msra.mxu0 %v214
    %519 = vmatprep.subr.bf16.mxu0 0
    %520 = vmatpush2.bf16.msra.mxu0 0
    %521 = vmatprep.subr.bf16.mxu0 0
    %522 = vmatpush2.bf16.msra.mxu0 0
    %523 = vmatprep.subr.bf16.mxu0 0
    %524 = vmatpush2.bf16.msra.mxu0 0
    %525 = vmatprep.subr.bf16.mxu0 0
    %526 = vmatpush2.bf16.msra.mxu0 0
    %527 = vmatprep.subr.bf16.mxu0 0
    %528 = vmatpush2.bf16.msra.mxu0 0
    %529 = vmatprep.subr.bf16.mxu0 0
    %530 = vmatpush2.bf16.msra.mxu0 0
    %531 = vmatprep.subr.bf16.mxu0 0
    %532 = vmatpush2.bf16.msra.mxu0 0
    %533 = vmatprep.subr.bf16.mxu0 0
    %534 = vmatpush2.bf16.msra.mxu0 0
    %535 = vmatprep.mubr.bf16.mxu0 0
    %536 = vmatmul.mubr.bf16.gmra.mxu0 %v501
    %v537 = vpop.f32.mrf.mxu0
    %v538 = vadd.f32 %v183, %v537
    %v539 = vpop.f32.mrf.mxu0
    %v540 = vadd.f32 %v187, %v539
    %v541 = vpop.f32.mrf.mxu0
    %v542 = vpop.f32.mrf.mxu0
    %543 = vdwg.mxu0
    %v544 = vld [vmem:[#allocation2] sm:$0x30]
    %v545 = vld [vmem:[#allocation2 + $0x10] sm:$0xc]
    %v546 = vld [vmem:[#allocation2 + $0x18] sm:$0xc]
    %v548 = vrot.slane %v538, 4
    %v550 = vadd.f32 %v544, %v548
    %v551 = vxor.u32 %v550, 2147483648
    %v552 = vmul.f32 %v551, 1.442695
    %v553 = vpow.pop %v552
    %v554 = vadd.f32 %v553, 1.0
    %v555 = vrcp.pop %v554
    %v556 = vmul.f32 1.0, %v555
    %557 = vrot.lane.b32.xlu0 %v548, 64
    %v558 = vpop.permute.xlu0 %557
    %v560 = vmul.f32 %v556, %v558
    %562 = vrot.lane.b32.xlu0 %v560, 64
    %v563 = vpop.permute.xlu0 %562
    %v565 = vadd.f32 %v544, %v563
    %v566 = vtanh.pop %v565
    %v567 = vsub.f32 1.0, %v556
    %569 = vrot.lane.b32.xlu0 %v566, 96
    %v570 = vpop.permute.xlu0 %569
    %v572 = vmul.f32 %v567, %v570
    %v574 = vrot.slane %v496, 6
    %575 = vrot.lane.b32.xlu0 %v574, 32
    %v576 = vpop.permute.xlu0 %575
    %v578 = vmul.f32 %v556, %v576
    %v579 = vadd.f32 %v572, %v578
    %v580 = vrot.slane %v538, 6
    %v582 = vadd.f32 %v545, %v580
    %v583 = vxor.u32 %v582, 2147483648
    %v584 = vmul.f32 %v583, 1.442695
    %v585 = vpow.pop %v584
    %v586 = vadd.f32 %v585, 1.0
    %v587 = vrcp.pop %v586
    %v588 = vmul.f32 1.0, %v587
    %v590 = vrot.slane %v540, 6
    %v592 = vadd.f32 %v546, %v590
    %v593 = vxor.u32 %v592, 2147483648
    %v594 = vmul.f32 %v593, 1.442695
    %v595 = vpow.pop %v594
    %v596 = vadd.f32 %v595, 1.0
    %v597 = vrcp.pop %v596
    %v598 = vmul.f32 1.0, %v597
    %599 = vrot.lane.b32.xlu0 %v590, 64
    %v600 = vpop.permute.xlu0 %599
    %v602 = vmul.f32 %v588, %v600
    %604 = vrot.lane.b32.xlu0 %v602, 64
    %v605 = vpop.permute.xlu0 %604
    %v607 = vadd.f32 %v546, %v605
    %v608 = vtanh.pop %v607
    %v609 = vsub.f32 1.0, %v598
    %611 = vrot.lane.b32.xlu0 %v608, 96
    %v612 = vpop.permute.xlu0 %611
    %v614 = vmul.f32 %v609, %v612
    %615 = vrot.lane.b32.xlu0 %v496, 96
    %v616 = vpop.permute.xlu0 %615
    %v618 = vmul.f32 %v598, %v616
    %v619 = vadd.f32 %v614, %v618
    %621 = vrot.lane.b32.xlu0 %v579, 96
    %v622 = vpop.permute.xlu0 %621
    %vm624 = vcmask 259076
    %625 = vst.msk [vmem:[#allocation3] sm:$0x30] %vm624, %v622
    %627 = vrot.lane.b32.xlu0 %v619, 32
    %v628 = vpop.permute.xlu0 %627
    %vm630 = vcmask 519426
    %631 = vst.msk [vmem:[#allocation3 + $0x8] sm:$0xc] %vm630, %v628
    %v632 = vrot.slane %v619, 6
    %633 = vrot.lane.b32.xlu0 %v632, 32
    %v634 = vpop.permute.xlu0 %633
    %v636 = vsel %vm356, %v622, %v634
    %v637 = vpack.c.bf16 %v636, %v636
    %v639 = vrot.slane %v637, 2
    %v641 = vsel %vm166, %v639, 0
    %643 = vmatprep.subr.bf16.mxu0 0
    %644 = vmatpush1.bf16.msra.mxu0 0
    %645 = vmatprep.subr.bf16.mxu0 0
    %646 = vmatpush1.bf16.msra.mxu0 0
    %647 = vmatprep.subr.bf16.mxu0 0
    %648 = vmatpush1.bf16.msra.mxu0 0
    %649 = vmatprep.subr.bf16.mxu0 0
    %650 = vmatpush1.bf16.msra.mxu0 0
    %651 = vmatprep.subr.bf16.mxu0 %v221
    %652 = vmatpush1.bf16.msra.mxu0 %v220
    %653 = vmatprep.subr.bf16.mxu0 %v219
    %654 = vmatpush1.bf16.msra.mxu0 %v218
    %655 = vmatprep.subr.bf16.mxu0 %v217
    %656 = vmatpush1.bf16.msra.mxu0 %v216
    %657 = vmatprep.subr.bf16.mxu0 %v215
    %658 = vmatpush1.bf16.msra.mxu0 %v214
    %659 = vmatprep.subr.bf16.mxu0 0
    %660 = vmatpush2.bf16.msra.mxu0 0
    %661 = vmatprep.subr.bf16.mxu0 0
    %662 = vmatpush2.bf16.msra.mxu0 0
    %663 = vmatprep.subr.bf16.mxu0 0
    %664 = vmatpush2.bf16.msra.mxu0 0
    %665 = vmatprep.subr.bf16.mxu0 0
    %666 = vmatpush2.bf16.msra.mxu0 0
    %667 = vmatprep.subr.bf16.mxu0 0
    %668 = vmatpush2.bf16.msra.mxu0 0
    %669 = vmatprep.subr.bf16.mxu0 0
    %670 = vmatpush2.bf16.msra.mxu0 0
    %671 = vmatprep.subr.bf16.mxu0 0
    %672 = vmatpush2.bf16.msra.mxu0 0
    %673 = vmatprep.subr.bf16.mxu0 0
    %674 = vmatpush2.bf16.msra.mxu0 0
    %675 = vmatprep.mubr.bf16.mxu0 0
    %676 = vmatmul.mubr.bf16.gmra.mxu0 %v641
    %v677 = vpop.f32.mrf.mxu0
    %v678 = vadd.f32 %v183, %v677
    %v679 = vpop.f32.mrf.mxu0
    %v680 = vadd.f32 %v187, %v679
    %v681 = vpop.f32.mrf.mxu0
    %v682 = vpop.f32.mrf.mxu0
    %683 = vdwg.mxu0
    %v684 = vld [vmem:[#allocation2] sm:$0xc0]
    %v685 = vld [vmem:[#allocation2 + $0x10] sm:$0x3]
    %v686 = vld [vmem:[#allocation2 + $0x18] sm:$0x3]
    %v688 = vrot.slane %v678, 2
    %v690 = vadd.f32 %v684, %v688
    %v691 = vxor.u32 %v690, 2147483648
    %v692 = vmul.f32 %v691, 1.442695
    %v693 = vpow.pop %v692
    %v694 = vadd.f32 %v693, 1.0
    %v695 = vrcp.pop %v694
    %v696 = vmul.f32 1.0, %v695
    %697 = vrot.lane.b32.xlu0 %v688, 64
    %v698 = vpop.permute.xlu0 %697
    %v700 = vmul.f32 %v696, %v698
    %702 = vrot.lane.b32.xlu0 %v700, 64
    %v703 = vpop.permute.xlu0 %702
    %v705 = vadd.f32 %v684, %v703
    %v706 = vtanh.pop %v705
    %v707 = vsub.f32 1.0, %v696
    %709 = vrot.lane.b32.xlu0 %v706, 96
    %v710 = vpop.permute.xlu0 %709
    %v712 = vmul.f32 %v707, %v710
    %v714 = vrot.slane %v636, 6
    %715 = vrot.lane.b32.xlu0 %v714, 32
    %v716 = vpop.permute.xlu0 %715
    %v718 = vmul.f32 %v696, %v716
    %v719 = vadd.f32 %v712, %v718
    %v720 = vadd.f32 %v685, %v678
    %v721 = vxor.u32 %v720, 2147483648
    %v722 = vmul.f32 %v721, 1.442695
    %v723 = vpow.pop %v722
    %v724 = vadd.f32 %v723, 1.0
    %v725 = vrcp.pop %v724
    %v726 = vmul.f32 1.0, %v725
    %v727 = vadd.f32 %v686, %v680
    %v728 = vxor.u32 %v727, 2147483648
    %v729 = vmul.f32 %v728, 1.442695
    %v730 = vpow.pop %v729
    %v731 = vadd.f32 %v730, 1.0
    %v732 = vrcp.pop %v731
    %v733 = vmul.f32 1.0, %v732
    %735 = vrot.lane.b32.xlu0 %v680, 64
    %v736 = vpop.permute.xlu0 %735
    %v738 = vmul.f32 %v726, %v736
    %740 = vrot.lane.b32.xlu0 %v738, 64
    %v741 = vpop.permute.xlu0 %740
    %v743 = vadd.f32 %v686, %v741
    %v744 = vtanh.pop %v743
    %v745 = vsub.f32 1.0, %v733
    %747 = vrot.lane.b32.xlu0 %v744, 96
    %v748 = vpop.permute.xlu0 %747
    %v750 = vmul.f32 %v745, %v748
    %v751 = vrot.slane %v636, 4
    %752 = vrot.lane.b32.xlu0 %v751, 96
    %v753 = vpop.permute.xlu0 %752
    %v755 = vmul.f32 %v733, %v753
    %v756 = vadd.f32 %v750, %v755
    %758 = vrot.lane.b32.xlu0 %v719, 96
    %v759 = vpop.permute.xlu0 %758
    %vm761 = vcmask 261126
    %762 = vst.msk [vmem:[#allocation3] sm:$0xc0] %vm761, %v759
    %764 = vrot.lane.b32.xlu0 %v756, 32
    %v765 = vpop.permute.xlu0 %764
    %vm767 = vcmask 517376
    %768 = vst.msk [vmem:[#allocation3 + $0x8] sm:$0x3] %vm767, %v765
    %v769 = vrot.slane %v756, 2
    %770 = vrot.lane.b32.xlu0 %v769, 32
    %v771 = vpop.permute.xlu0 %770
    %v773 = vsel %vm356, %v759, %v771
    %v774 = vpack.c.bf16 %v773, %v773
    %v776 = vrot.slane %v774, 3
    %v778 = vsel %vm166, %v776, 0
    %780 = vmatprep.subr.bf16.mxu0 0
    %781 = vmatpush1.bf16.msra.mxu0 0
    %782 = vmatprep.subr.bf16.mxu0 0
    %783 = vmatpush1.bf16.msra.mxu0 0
    %784 = vmatprep.subr.bf16.mxu0 0
    %785 = vmatpush1.bf16.msra.mxu0 0
    %786 = vmatprep.subr.bf16.mxu0 0
    %787 = vmatpush1.bf16.msra.mxu0 0
    %788 = vmatprep.subr.bf16.mxu0 %v221
    %789 = vmatpush1.bf16.msra.mxu0 %v220
    %790 = vmatprep.subr.bf16.mxu0 %v219
    %791 = vmatpush1.bf16.msra.mxu0 %v218
    %792 = vmatprep.subr.bf16.mxu0 %v217
    %793 = vmatpush1.bf16.msra.mxu0 %v216
    %794 = vmatprep.subr.bf16.mxu0 %v215
    %795 = vmatpush1.bf16.msra.mxu0 %v214
    %796 = vmatprep.subr.bf16.mxu0 0
    %797 = vmatpush2.bf16.msra.mxu0 0
    %798 = vmatprep.subr.bf16.mxu0 0
    %799 = vmatpush2.bf16.msra.mxu0 0
    %800 = vmatprep.subr.bf16.mxu0 0
    %801 = vmatpush2.bf16.msra.mxu0 0
    %802 = vmatprep.subr.bf16.mxu0 0
    %803 = vmatpush2.bf16.msra.mxu0 0
    %804 = vmatprep.subr.bf16.mxu0 0
    %805 = vmatpush2.bf16.msra.mxu0 0
    %806 = vmatprep.subr.bf16.mxu0 0
    %807 = vmatpush2.bf16.msra.mxu0 0
    %808 = vmatprep.subr.bf16.mxu0 0
    %809 = vmatpush2.bf16.msra.mxu0 0
    %810 = vmatprep.subr.bf16.mxu0 0
    %811 = vmatpush2.bf16.msra.mxu0 0
    %812 = vmatprep.mubr.bf16.mxu0 0
    %813 = vmatmul.mubr.bf16.gmra.mxu0 %v778
    %v814 = vpop.f32.mrf.mxu0
    %v815 = vadd.f32 %v183, %v814
    %v816 = vpop.f32.mrf.mxu0
    %v817 = vadd.f32 %v187, %v816
    %v818 = vpop.f32.mrf.mxu0
    %v819 = vpop.f32.mrf.mxu0
    %820 = vdwg.mxu0
    %v821 = vld [vmem:[#allocation2 + $0x10] sm:$0x3]
    %v822 = vld [vmem:[#allocation2] sm:$0xc0]
    %v823 = vld [vmem:[#allocation2 + $0x8] sm:$0xc0]
    %v824 = vadd.f32 %v821, %v815
    %v825 = vxor.u32 %v824, 2147483648
    %v826 = vmul.f32 %v825, 1.442695
    %v827 = vpow.pop %v826
    %v828 = vadd.f32 %v827, 1.0
    %v829 = vrcp.pop %v828
    %v830 = vmul.f32 1.0, %v829
    %832 = vrot.lane.b32.xlu0 %v815, 64
    %v833 = vpop.permute.xlu0 %832
    %v835 = vmul.f32 %v830, %v833
    %837 = vrot.lane.b32.xlu0 %v835, 64
    %v838 = vpop.permute.xlu0 %837
    %v840 = vadd.f32 %v821, %v838
    %v841 = vtanh.pop %v840
    %v842 = vsub.f32 1.0, %v830
    %844 = vrot.lane.b32.xlu0 %v841, 96
    %v845 = vpop.permute.xlu0 %844
    %v847 = vmul.f32 %v842, %v845
    %v849 = vrot.slane %v773, 6
    %850 = vrot.lane.b32.xlu0 %v849, 32
    %v851 = vpop.permute.xlu0 %850
    %v853 = vmul.f32 %v830, %v851
    %v854 = vadd.f32 %v847, %v853
    %v855 = vrot.slane %v815, 2
    %v857 = vadd.f32 %v822, %v855
    %v858 = vxor.u32 %v857, 2147483648
    %v859 = vmul.f32 %v858, 1.442695
    %v860 = vpow.pop %v859
    %v861 = vadd.f32 %v860, 1.0
    %v862 = vrcp.pop %v861
    %v863 = vmul.f32 1.0, %v862
    %v865 = vrot.slane %v817, 2
    %v867 = vadd.f32 %v823, %v865
    %v868 = vxor.u32 %v867, 2147483648
    %v869 = vmul.f32 %v868, 1.442695
    %v870 = vpow.pop %v869
    %v871 = vadd.f32 %v870, 1.0
    %v872 = vrcp.pop %v871
    %v873 = vmul.f32 1.0, %v872
    %874 = vrot.lane.b32.xlu0 %v865, 64
    %v875 = vpop.permute.xlu0 %874
    %v877 = vmul.f32 %v863, %v875
    %879 = vrot.lane.b32.xlu0 %v877, 64
    %v880 = vpop.permute.xlu0 %879
    %v882 = vadd.f32 %v823, %v880
    %v883 = vtanh.pop %v882
    %v884 = vsub.f32 1.0, %v873
    %886 = vrot.lane.b32.xlu0 %v883, 96
    %v887 = vpop.permute.xlu0 %886
    %v889 = vmul.f32 %v884, %v887
    %890 = vrot.lane.b32.xlu0 %v773, 96
    %v891 = vpop.permute.xlu0 %890
    %v893 = vmul.f32 %v873, %v891
    %v894 = vadd.f32 %v889, %v893
    %896 = vrot.lane.b32.xlu0 %v854, 96
    %v897 = vpop.permute.xlu0 %896
    %899 = vst.msk [vmem:[#allocation3 + $0x8] sm:$0x3] %vm344, %v897
    %901 = vrot.lane.b32.xlu0 %v894, 32
    %v902 = vpop.permute.xlu0 %901
    %904 = vst.msk [vmem:[#allocation3] sm:$0xc0] %vm350, %v902
    %v905 = vrot.slane %v894, 6
    %906 = vrot.lane.b32.xlu0 %v905, 32
    %v907 = vpop.permute.xlu0 %906
    %v909 = vsel %vm356, %v897, %v907
    %v910 = vpack.c.bf16 %v909, %v909
    %v912 = vsel %vm166, %v910, 0
    %914 = vmatprep.subr.bf16.mxu0 0
    %915 = vmatpush1.bf16.msra.mxu0 0
    %916 = vmatprep.subr.bf16.mxu0 0
    %917 = vmatpush1.bf16.msra.mxu0 0
    %918 = vmatprep.subr.bf16.mxu0 0
    %919 = vmatpush1.bf16.msra.mxu0 0
    %920 = vmatprep.subr.bf16.mxu0 0
    %921 = vmatpush1.bf16.msra.mxu0 0
    %922 = vmatprep.subr.bf16.mxu0 %v221
    %923 = vmatpush1.bf16.msra.mxu0 %v220
    %924 = vmatprep.subr.bf16.mxu0 %v219
    %925 = vmatpush1.bf16.msra.mxu0 %v218
    %926 = vmatprep.subr.bf16.mxu0 %v217
    %927 = vmatpush1.bf16.msra.mxu0 %v216
    %928 = vmatprep.subr.bf16.mxu0 %v215
    %929 = vmatpush1.bf16.msra.mxu0 %v214
    %930 = vmatprep.subr.bf16.mxu0 0
    %931 = vmatpush2.bf16.msra.mxu0 0
    %932 = vmatprep.subr.bf16.mxu0 0
    %933 = vmatpush2.bf16.msra.mxu0 0
    %934 = vmatprep.subr.bf16.mxu0 0
    %935 = vmatpush2.bf16.msra.mxu0 0
    %936 = vmatprep.subr.bf16.mxu0 0
    %937 = vmatpush2.bf16.msra.mxu0 0
    %938 = vmatprep.subr.bf16.mxu0 0
    %939 = vmatpush2.bf16.msra.mxu0 0
    %940 = vmatprep.subr.bf16.mxu0 0
    %941 = vmatpush2.bf16.msra.mxu0 0
    %942 = vmatprep.subr.bf16.mxu0 0
    %943 = vmatpush2.bf16.msra.mxu0 0
    %944 = vmatprep.subr.bf16.mxu0 0
    %945 = vmatpush2.bf16.msra.mxu0 0
    %946 = vmatprep.mubr.bf16.mxu0 0
    %947 = vmatmul.mubr.bf16.gmra.mxu0 %v912
    %v948 = vpop.f32.mrf.mxu0
    %v949 = vadd.f32 %v183, %v948
    %v950 = vpop.f32.mrf.mxu0
    %v951 = vadd.f32 %v187, %v950
    %v952 = vpop.f32.mrf.mxu0
    %v953 = vpop.f32.mrf.mxu0
    %954 = vdwg.mxu0
    %v955 = vld [vmem:[#allocation2 + $0x10] sm:$0xc]
    %v956 = vld [vmem:[#allocation2] sm:$0x30]
    %v957 = vld [vmem:[#allocation2 + $0x8] sm:$0x30]
    %v959 = vrot.slane %v949, 6
    %v961 = vadd.f32 %v955, %v959
    %v962 = vxor.u32 %v961, 2147483648
    %v963 = vmul.f32 %v962, 1.442695
    %v964 = vpow.pop %v963
    %v965 = vadd.f32 %v964, 1.0
    %v966 = vrcp.pop %v965
    %v967 = vmul.f32 1.0, %v966
    %968 = vrot.lane.b32.xlu0 %v959, 64
    %v969 = vpop.permute.xlu0 %968
    %v971 = vmul.f32 %v967, %v969
    %973 = vrot.lane.b32.xlu0 %v971, 64
    %v974 = vpop.permute.xlu0 %973
    %v976 = vadd.f32 %v955, %v974
    %v977 = vtanh.pop %v976
    %v978 = vsub.f32 1.0, %v967
    %980 = vrot.lane.b32.xlu0 %v977, 96
    %v981 = vpop.permute.xlu0 %980
    %v983 = vmul.f32 %v978, %v981
    %v985 = vrot.slane %v909, 6
    %986 = vrot.lane.b32.xlu0 %v985, 32
    %v987 = vpop.permute.xlu0 %986
    %v989 = vmul.f32 %v967, %v987
    %v990 = vadd.f32 %v983, %v989
    %v991 = vrot.slane %v949, 4
    %v993 = vadd.f32 %v956, %v991
    %v994 = vxor.u32 %v993, 2147483648
    %v995 = vmul.f32 %v994, 1.442695
    %v996 = vpow.pop %v995
    %v997 = vadd.f32 %v996, 1.0
    %v998 = vrcp.pop %v997
    %v999 = vmul.f32 1.0, %v998
    %v1001 = vrot.slane %v951, 4
    %v1003 = vadd.f32 %v957, %v1001
    %v1004 = vxor.u32 %v1003, 2147483648
    %v1005 = vmul.f32 %v1004, 1.442695
    %v1006 = vpow.pop %v1005
    %v1007 = vadd.f32 %v1006, 1.0
    %v1008 = vrcp.pop %v1007
    %v1009 = vmul.f32 1.0, %v1008
    %1010 = vrot.lane.b32.xlu0 %v1001, 64
    %v1011 = vpop.permute.xlu0 %1010
    %v1013 = vmul.f32 %v999, %v1011
    %1015 = vrot.lane.b32.xlu0 %v1013, 64
    %v1016 = vpop.permute.xlu0 %1015
    %v1018 = vadd.f32 %v957, %v1016
    %v1019 = vtanh.pop %v1018
    %v1020 = vsub.f32 1.0, %v1009
    %1022 = vrot.lane.b32.xlu0 %v1019, 96
    %v1023 = vpop.permute.xlu0 %1022
    %v1025 = vmul.f32 %v1020, %v1023
    %v1026 = vrot.slane %v909, 4
    %1027 = vrot.lane.b32.xlu0 %v1026, 96
    %v1028 = vpop.permute.xlu0 %1027
    %v1030 = vmul.f32 %v1009, %v1028
    %v1031 = vadd.f32 %v1025, %v1030
    %1033 = vrot.lane.b32.xlu0 %v990, 96
    %v1034 = vpop.permute.xlu0 %1033
    %1036 = vst.msk [vmem:[#allocation3 + $0x8] sm:$0xc] %vm484, %v1034
    %1038 = vrot.lane.b32.xlu0 %v1031, 32
    %v1039 = vpop.permute.xlu0 %1038
    %1041 = vst.msk [vmem:[#allocation3] sm:$0x30] %vm490, %v1039
    %v1042 = vrot.slane %v1031, 2
    %1043 = vrot.lane.b32.xlu0 %v1042, 32
    %v1044 = vpop.permute.xlu0 %1043
    %v1046 = vsel %vm356, %v1034, %v1044
    %v1047 = vpack.c.bf16 %v1046, %v1046
    %v1049 = vrot.slane %v1047, 1
    %v1051 = vsel %vm166, %v1049, 0
    %1053 = vmatprep.subr.bf16.mxu0 0
    %1054 = vmatpush1.bf16.msra.mxu0 0
    %1055 = vmatprep.subr.bf16.mxu0 0
    %1056 = vmatpush1.bf16.msra.mxu0 0
    %1057 = vmatprep.subr.bf16.mxu0 0
    %1058 = vmatpush1.bf16.msra.mxu0 0
    %1059 = vmatprep.subr.bf16.mxu0 0
    %1060 = vmatpush1.bf16.msra.mxu0 0
    %1061 = vmatprep.subr.bf16.mxu0 %v221
    %1062 = vmatpush1.bf16.msra.mxu0 %v220
    %1063 = vmatprep.subr.bf16.mxu0 %v219
    %1064 = vmatpush1.bf16.msra.mxu0 %v218
    %1065 = vmatprep.subr.bf16.mxu0 %v217
    %1066 = vmatpush1.bf16.msra.mxu0 %v216
    %1067 = vmatprep.subr.bf16.mxu0 %v215
    %1068 = vmatpush1.bf16.msra.mxu0 %v214
    %1069 = vmatprep.subr.bf16.mxu0 0
    %1070 = vmatpush2.bf16.msra.mxu0 0
    %1071 = vmatprep.subr.bf16.mxu0 0
    %1072 = vmatpush2.bf16.msra.mxu0 0
    %1073 = vmatprep.subr.bf16.mxu0 0
    %1074 = vmatpush2.bf16.msra.mxu0 0
    %1075 = vmatprep.subr.bf16.mxu0 0
    %1076 = vmatpush2.bf16.msra.mxu0 0
    %1077 = vmatprep.subr.bf16.mxu0 0
    %1078 = vmatpush2.bf16.msra.mxu0 0
    %1079 = vmatprep.subr.bf16.mxu0 0
    %1080 = vmatpush2.bf16.msra.mxu0 0
    %1081 = vmatprep.subr.bf16.mxu0 0
    %1082 = vmatpush2.bf16.msra.mxu0 0
    %1083 = vmatprep.subr.bf16.mxu0 0
    %1084 = vmatpush2.bf16.msra.mxu0 0
    %1085 = vmatprep.mubr.bf16.mxu0 0
    %1086 = vmatmul.mubr.bf16.gmra.mxu0 %v1051
    %v1087 = vpop.f32.mrf.mxu0
    %v1088 = vadd.f32 %v183, %v1087
    %v1089 = vpop.f32.mrf.mxu0
    %v1090 = vadd.f32 %v187, %v1089
    %v1091 = vpop.f32.mrf.mxu0
    %v1092 = vpop.f32.mrf.mxu0
    %1093 = vdwg.mxu0
    %v1094 = vld [vmem:[#allocation2 + $0x10] sm:$0x30]
    %v1095 = vld [vmem:[#allocation2] sm:$0xc]
    %v1096 = vld [vmem:[#allocation2 + $0x8] sm:$0xc]
    %v1098 = vrot.slane %v1088, 4
    %v1100 = vadd.f32 %v1094, %v1098
    %v1101 = vxor.u32 %v1100, 2147483648
    %v1102 = vmul.f32 %v1101, 1.442695
    %v1103 = vpow.pop %v1102
    %v1104 = vadd.f32 %v1103, 1.0
    %v1105 = vrcp.pop %v1104
    %v1106 = vmul.f32 1.0, %v1105
    %1107 = vrot.lane.b32.xlu0 %v1098, 64
    %v1108 = vpop.permute.xlu0 %1107
    %v1110 = vmul.f32 %v1106, %v1108
    %1112 = vrot.lane.b32.xlu0 %v1110, 64
    %v1113 = vpop.permute.xlu0 %1112
    %v1115 = vadd.f32 %v1094, %v1113
    %v1116 = vtanh.pop %v1115
    %v1117 = vsub.f32 1.0, %v1106
    %1119 = vrot.lane.b32.xlu0 %v1116, 96
    %v1120 = vpop.permute.xlu0 %1119
    %v1122 = vmul.f32 %v1117, %v1120
    %v1124 = vrot.slane %v1046, 6
    %1125 = vrot.lane.b32.xlu0 %v1124, 32
    %v1126 = vpop.permute.xlu0 %1125
    %v1128 = vmul.f32 %v1106, %v1126
    %v1129 = vadd.f32 %v1122, %v1128
    %v1130 = vrot.slane %v1088, 6
    %v1132 = vadd.f32 %v1095, %v1130
    %v1133 = vxor.u32 %v1132, 2147483648
    %v1134 = vmul.f32 %v1133, 1.442695
    %v1135 = vpow.pop %v1134
    %v1136 = vadd.f32 %v1135, 1.0
    %v1137 = vrcp.pop %v1136
    %v1138 = vmul.f32 1.0, %v1137
    %v1140 = vrot.slane %v1090, 6
    %v1142 = vadd.f32 %v1096, %v1140
    %v1143 = vxor.u32 %v1142, 2147483648
    %v1144 = vmul.f32 %v1143, 1.442695
    %v1145 = vpow.pop %v1144
    %v1146 = vadd.f32 %v1145, 1.0
    %v1147 = vrcp.pop %v1146
    %v1148 = vmul.f32 1.0, %v1147
    %1149 = vrot.lane.b32.xlu0 %v1140, 64
    %v1150 = vpop.permute.xlu0 %1149
    %v1152 = vmul.f32 %v1138, %v1150
    %1154 = vrot.lane.b32.xlu0 %v1152, 64
    %v1155 = vpop.permute.xlu0 %1154
    %v1157 = vadd.f32 %v1096, %v1155
    %v1158 = vtanh.pop %v1157
    %v1159 = vsub.f32 1.0, %v1148
    %1161 = vrot.lane.b32.xlu0 %v1158, 96
    %v1162 = vpop.permute.xlu0 %1161
    %v1164 = vmul.f32 %v1159, %v1162
    %1165 = vrot.lane.b32.xlu0 %v1046, 96
    %v1166 = vpop.permute.xlu0 %1165
    %v1168 = vmul.f32 %v1148, %v1166
    %v1169 = vadd.f32 %v1164, %v1168
    %1171 = vrot.lane.b32.xlu0 %v1129, 96
    %v1172 = vpop.permute.xlu0 %1171
    %1174 = vst.msk [vmem:[#allocation3 + $0x8] sm:$0x30] %vm624, %v1172
    %1176 = vrot.lane.b32.xlu0 %v1169, 32
    %v1177 = vpop.permute.xlu0 %1176
    %1179 = vst.msk [vmem:[#allocation3] sm:$0xc] %vm630, %v1177
    %v1180 = vrot.slane %v1169, 6
    %1181 = vrot.lane.b32.xlu0 %v1180, 32
    %v1182 = vpop.permute.xlu0 %1181
    %v1184 = vsel %vm356, %v1172, %v1182
    %v1185 = vpack.c.bf16 %v1184, %v1184
    %v1187 = vrot.slane %v1185, 2
    %v1189 = vsel %vm166, %v1187, 0
    %1191 = vmatprep.subr.bf16.mxu0 0
    %1192 = vmatpush1.bf16.msra.mxu0 0
    %1193 = vmatprep.subr.bf16.mxu0 0
    %1194 = vmatpush1.bf16.msra.mxu0 0
    %1195 = vmatprep.subr.bf16.mxu0 0
    %1196 = vmatpush1.bf16.msra.mxu0 0
    %1197 = vmatprep.subr.bf16.mxu0 0
    %1198 = vmatpush1.bf16.msra.mxu0 0
    %1199 = vmatprep.subr.bf16.mxu0 %v221
    %1200 = vmatpush1.bf16.msra.mxu0 %v220
    %1201 = vmatprep.subr.bf16.mxu0 %v219
    %1202 = vmatpush1.bf16.msra.mxu0 %v218
    %1203 = vmatprep.subr.bf16.mxu0 %v217
    %1204 = vmatpush1.bf16.msra.mxu0 %v216
    %1205 = vmatprep.subr.bf16.mxu0 %v215
    %1206 = vmatpush1.bf16.msra.mxu0 %v214
    %1207 = vmatprep.subr.bf16.mxu0 0
    %1208 = vmatpush2.bf16.msra.mxu0 0
    %1209 = vmatprep.subr.bf16.mxu0 0
    %1210 = vmatpush2.bf16.msra.mxu0 0
    %1211 = vmatprep.subr.bf16.mxu0 0
    %1212 = vmatpush2.bf16.msra.mxu0 0
    %1213 = vmatprep.subr.bf16.mxu0 0
    %1214 = vmatpush2.bf16.msra.mxu0 0
    %1215 = vmatprep.subr.bf16.mxu0 0
    %1216 = vmatpush2.bf16.msra.mxu0 0
    %1217 = vmatprep.subr.bf16.mxu0 0
    %1218 = vmatpush2.bf16.msra.mxu0 0
    %1219 = vmatprep.subr.bf16.mxu0 0
    %1220 = vmatpush2.bf16.msra.mxu0 0
    %1221 = vmatprep.subr.bf16.mxu0 0
    %1222 = vmatpush2.bf16.msra.mxu0 0
    %1223 = vmatprep.mubr.bf16.mxu0 0
    %1224 = vmatmul.mubr.bf16.gmra.mxu0 %v1189
    %v1225 = vpop.f32.mrf.mxu0
    %v1226 = vadd.f32 %v183, %v1225
    %v1227 = vpop.f32.mrf.mxu0
    %v1228 = vadd.f32 %v187, %v1227
    %v1229 = vpop.f32.mrf.mxu0
    %v1230 = vpop.f32.mrf.mxu0
    %1231 = vdwg.mxu0
    %v1232 = vld [vmem:[#allocation2 + $0x10] sm:$0xc0]
    %v1233 = vld [vmem:[#allocation2] sm:$0x3]
    %v1234 = vld [vmem:[#allocation2 + $0x8] sm:$0x3]
    %v1236 = vrot.slane %v1226, 2
    %v1238 = vadd.f32 %v1232, %v1236
    %v1239 = vxor.u32 %v1238, 2147483648
    %v1240 = vmul.f32 %v1239, 1.442695
    %v1241 = vpow.pop %v1240
    %v1242 = vadd.f32 %v1241, 1.0
    %v1243 = vrcp.pop %v1242
    %v1244 = vmul.f32 1.0, %v1243
    %1245 = vrot.lane.b32.xlu0 %v1236, 64
    %v1246 = vpop.permute.xlu0 %1245
    %v1248 = vmul.f32 %v1244, %v1246
    %1250 = vrot.lane.b32.xlu0 %v1248, 64
    %v1251 = vpop.permute.xlu0 %1250
    %v1253 = vadd.f32 %v1232, %v1251
    %v1254 = vtanh.pop %v1253
    %v1255 = vsub.f32 1.0, %v1244
    %1257 = vrot.lane.b32.xlu0 %v1254, 96
    %v1258 = vpop.permute.xlu0 %1257
    %v1260 = vmul.f32 %v1255, %v1258
    %v1262 = vrot.slane %v1184, 6
    %1263 = vrot.lane.b32.xlu0 %v1262, 32
    %v1264 = vpop.permute.xlu0 %1263
    %v1266 = vmul.f32 %v1244, %v1264
    %v1267 = vadd.f32 %v1260, %v1266
    %v1268 = vadd.f32 %v1233, %v1226
    %v1269 = vxor.u32 %v1268, 2147483648
    %v1270 = vmul.f32 %v1269, 1.442695
    %v1271 = vpow.pop %v1270
    %v1272 = vadd.f32 %v1271, 1.0
    %v1273 = vrcp.pop %v1272
    %v1274 = vmul.f32 1.0, %v1273
    %v1275 = vadd.f32 %v1234, %v1228
    %v1276 = vxor.u32 %v1275, 2147483648
    %v1277 = vmul.f32 %v1276, 1.442695
    %v1278 = vpow.pop %v1277
    %v1279 = vadd.f32 %v1278, 1.0
    %v1280 = vrcp.pop %v1279
    %v1281 = vmul.f32 1.0, %v1280
    %1283 = vrot.lane.b32.xlu0 %v1228, 64
    %v1284 = vpop.permute.xlu0 %1283
    %v1286 = vmul.f32 %v1274, %v1284
    %1288 = vrot.lane.b32.xlu0 %v1286, 64
    %v1289 = vpop.permute.xlu0 %1288
    %v1291 = vadd.f32 %v1234, %v1289
    %v1292 = vtanh.pop %v1291
    %v1293 = vsub.f32 1.0, %v1281
    %1295 = vrot.lane.b32.xlu0 %v1292, 96
    %v1296 = vpop.permute.xlu0 %1295
    %v1298 = vmul.f32 %v1293, %v1296
    %v1299 = vrot.slane %v1184, 4
    %1300 = vrot.lane.b32.xlu0 %v1299, 96
    %v1301 = vpop.permute.xlu0 %1300
    %v1303 = vmul.f32 %v1281, %v1301
    %v1304 = vadd.f32 %v1298, %v1303
    %1306 = vrot.lane.b32.xlu0 %v1267, 96
    %v1307 = vpop.permute.xlu0 %1306
    %1309 = vst.msk [vmem:[#allocation3 + $0x8] sm:$0xc0] %vm761, %v1307
    %1311 = vrot.lane.b32.xlu0 %v1304, 32
    %v1312 = vpop.permute.xlu0 %1311
    %1314 = vst.msk [vmem:[#allocation3] sm:$0x3] %vm767, %v1312
    %v1315 = vld [vmem:[#allocation3] sm:$0xff]
    %v1316 = vld [vmem:[#allocation3 + $0x8] sm:$0xff]
    %v1317 = vpack.c.bf16 %v1316, %v1315
    %v1318 = vld [vmem:[%s7] sm:$0xff]
    %v1319 = vld [vmem:[%s7 + $0x8] sm:$0xff]
    %v1320 = vld [vmem:[%s7 + $0x10] sm:$0xff]
    %v1321 = vld [vmem:[%s7 + $0x18] sm:$0xff]
    %v1322 = vld [vmem:[%s7 + $0x20] sm:$0xff]
    %v1323 = vld [vmem:[%s7 + $0x28] sm:$0xff]
    %v1324 = vld [vmem:[%s7 + $0x30] sm:$0xff]
    %v1325 = vld [vmem:[%s7 + $0x38] sm:$0xff]
    %v1326 = vld [vmem:[%s8] sm:$0x3]
    %v1328 = vlaneseq
    %v1329 = vshrl.u32 %v1328, 7
    %v1330 = vsub.s32 0, %v1329
    %v1331 = vrot.slane %v1326, %v1330
    %v1332 = vlaneseq
    %v1333 = vshrl.u32 %v1332, 7
    %v1334 = vsub.s32 1, %v1333
    %v1335 = vrot.slane %v1326, %v1334
    %v1346 = vunpack.c.l.b16 %v1318
    %v1347 = vunpack.c.h.b16 %v1318
    %v1348 = vunpack.c.l.b16 %v1319
    %v1349 = vunpack.c.h.b16 %v1319
    %v1350 = vunpack.c.l.b16 %v1320
    %v1351 = vunpack.c.h.b16 %v1320
    %v1352 = vunpack.c.l.b16 %v1321
    %v1353 = vunpack.c.h.b16 %v1321
    %v1354 = vunpack.c.l.b16 %v1322
    %v1355 = vunpack.c.h.b16 %v1322
    %v1356 = vunpack.c.l.b16 %v1323
    %v1357 = vunpack.c.h.b16 %v1323
    %v1358 = vunpack.c.l.b16 %v1324
    %v1359 = vunpack.c.h.b16 %v1324
    %v1360 = vunpack.c.l.b16 %v1325
    %v1361 = vunpack.c.h.b16 %v1325
    %v1362 = vpack.c.b16 %v1348, %v1346
    %v1363 = vpack.c.b16 %v1349, %v1347
    %v1364 = vpack.c.b16 %v1352, %v1350
    %v1365 = vpack.c.b16 %v1353, %v1351
    %v1366 = vpack.c.b16 %v1356, %v1354
    %v1367 = vpack.c.b16 %v1357, %v1355
    %v1368 = vpack.c.b16 %v1360, %v1358
    %v1369 = vpack.c.b16 %v1361, %v1359
    %v1379 = vsel %vm166, %v1317, 0
    %1381 = vmatprep.subr.bf16.mxu0 0
    %1382 = vmatpush1.bf16.msra.mxu0 0
    %1383 = vmatprep.subr.bf16.mxu0 0
    %1384 = vmatpush1.bf16.msra.mxu0 0
    %1385 = vmatprep.subr.bf16.mxu0 0
    %1386 = vmatpush1.bf16.msra.mxu0 0
    %1387 = vmatprep.subr.bf16.mxu0 0
    %1388 = vmatpush1.bf16.msra.mxu0 0
    %1389 = vmatprep.subr.bf16.mxu0 %v1369
    %1390 = vmatpush1.bf16.msra.mxu0 %v1368
    %1391 = vmatprep.subr.bf16.mxu0 %v1367
    %1392 = vmatpush1.bf16.msra.mxu0 %v1366
    %1393 = vmatprep.subr.bf16.mxu0 %v1365
    %1394 = vmatpush1.bf16.msra.mxu0 %v1364
    %1395 = vmatprep.subr.bf16.mxu0 %v1363
    %1396 = vmatpush1.bf16.msra.mxu0 %v1362
    %1397 = vmatprep.subr.bf16.mxu0 0
    %1398 = vmatpush2.bf16.msra.mxu0 0
    %1399 = vmatprep.subr.bf16.mxu0 0
    %1400 = vmatpush2.bf16.msra.mxu0 0
    %1401 = vmatprep.subr.bf16.mxu0 0
    %1402 = vmatpush2.bf16.msra.mxu0 0
    %1403 = vmatprep.subr.bf16.mxu0 0
    %1404 = vmatpush2.bf16.msra.mxu0 0
    %1405 = vmatprep.subr.bf16.mxu0 0
    %1406 = vmatpush2.bf16.msra.mxu0 0
    %1407 = vmatprep.subr.bf16.mxu0 0
    %1408 = vmatpush2.bf16.msra.mxu0 0
    %1409 = vmatprep.subr.bf16.mxu0 0
    %1410 = vmatpush2.bf16.msra.mxu0 0
    %1411 = vmatprep.subr.bf16.mxu0 0
    %1412 = vmatpush2.bf16.msra.mxu0 0
    %1413 = vmatprep.mubr.bf16.mxu0 0
    %1414 = vmatmul.mubr.bf16.gmra.mxu0 %v1379
    %v1415 = vpop.f32.mrf.mxu0
    %v1416 = vadd.f32 %v1331, %v1415
    %v1417 = vpop.f32.mrf.mxu0
    %v1418 = vadd.f32 %v1335, %v1417
    %v1419 = vpop.f32.mrf.mxu0
    %v1420 = vadd.f32 %v1331, %v1419
    %v1421 = vpop.f32.mrf.mxu0
    %v1422 = vadd.f32 %v1335, %v1421
    %1423 = vdwg.mxu0
    %1424 = vst [vmem:[#allocation2] sm:$0xff] %v1416
    %1425 = vst.msk [vmem:[#allocation2 + $0x8] sm:$0xff] %vm166, %v1418
    %1426 = vst [vmem:[#allocation2 + $0x10] sm:$0xff] %v1420
    %1427 = vst.msk [vmem:[#allocation2 + $0x18] sm:$0xff] %vm166, %v1422
    %v1428 = vld [vmem:[%s9] sm:$0xff]
    %v1429 = vld [vmem:[%s9 + $0x8] sm:$0xff]
    %v1430 = vld [vmem:[%s9 + $0x10] sm:$0xff]
    %v1431 = vld [vmem:[%s9 + $0x18] sm:$0xff]
    %v1432 = vld [vmem:[%s9 + $0x20] sm:$0xff]
    %v1433 = vld [vmem:[%s9 + $0x28] sm:$0xff]
    %v1434 = vld [vmem:[%s9 + $0x30] sm:$0xff]
    %v1435 = vld [vmem:[%s9 + $0x38] sm:$0xff]
    %v1436 = vld [vmem:[%s10] sm:$0x3]
    %v1438 = vlaneseq
    %v1439 = vshrl.u32 %v1438, 7
    %v1440 = vsub.s32 0, %v1439
    %v1441 = vrot.slane %v1436, %v1440
    %v1442 = vlaneseq
    %v1443 = vshrl.u32 %v1442, 7
    %v1444 = vsub.s32 1, %v1443
    %v1445 = vrot.slane %v1436, %v1444
    %v1456 = vunpack.c.l.b16 %v1428
    %v1457 = vunpack.c.h.b16 %v1428
    %v1458 = vunpack.c.l.b16 %v1429
    %v1459 = vunpack.c.h.b16 %v1429
    %v1460 = vunpack.c.l.b16 %v1430
    %v1461 = vunpack.c.h.b16 %v1430
    %v1462 = vunpack.c.l.b16 %v1431
    %v1463 = vunpack.c.h.b16 %v1431
    %v1464 = vunpack.c.l.b16 %v1432
    %v1465 = vunpack.c.h.b16 %v1432
    %v1466 = vunpack.c.l.b16 %v1433
    %v1467 = vunpack.c.h.b16 %v1433
    %v1468 = vunpack.c.l.b16 %v1434
    %v1469 = vunpack.c.h.b16 %v1434
    %v1470 = vunpack.c.l.b16 %v1435
    %v1471 = vunpack.c.h.b16 %v1435
    %v1472 = vpack.c.b16 %v1458, %v1456
    %v1473 = vpack.c.b16 %v1459, %v1457
    %v1474 = vpack.c.b16 %v1462, %v1460
    %v1475 = vpack.c.b16 %v1463, %v1461
    %v1476 = vpack.c.b16 %v1466, %v1464
    %v1477 = vpack.c.b16 %v1467, %v1465
    %v1478 = vpack.c.b16 %v1470, %v1468
    %v1479 = vpack.c.b16 %v1471, %v1469
    %1488 = vmatprep.subr.bf16.mxu0 0
    %1489 = vmatpush1.bf16.msra.mxu0 0
    %1490 = vmatprep.subr.bf16.mxu0 0
    %1491 = vmatpush1.bf16.msra.mxu0 0
    %1492 = vmatprep.subr.bf16.mxu0 0
    %1493 = vmatpush1.bf16.msra.mxu0 0
    %1494 = vmatprep.subr.bf16.mxu0 0
    %1495 = vmatpush1.bf16.msra.mxu0 0
    %1496 = vmatprep.subr.bf16.mxu0 %v1479
    %1497 = vmatpush1.bf16.msra.mxu0 %v1478
    %1498 = vmatprep.subr.bf16.mxu0 %v1477
    %1499 = vmatpush1.bf16.msra.mxu0 %v1476
    %1500 = vmatprep.subr.bf16.mxu0 %v1475
    %1501 = vmatpush1.bf16.msra.mxu0 %v1474
    %1502 = vmatprep.subr.bf16.mxu0 %v1473
    %1503 = vmatpush1.bf16.msra.mxu0 %v1472
    %1504 = vmatprep.subr.bf16.mxu0 0
    %1505 = vmatpush2.bf16.msra.mxu0 0
    %1506 = vmatprep.subr.bf16.mxu0 0
    %1507 = vmatpush2.bf16.msra.mxu0 0
    %1508 = vmatprep.subr.bf16.mxu0 0
    %1509 = vmatpush2.bf16.msra.mxu0 0
    %1510 = vmatprep.subr.bf16.mxu0 0
    %1511 = vmatpush2.bf16.msra.mxu0 0
    %1512 = vmatprep.subr.bf16.mxu0 0
    %1513 = vmatpush2.bf16.msra.mxu0 0
    %1514 = vmatprep.subr.bf16.mxu0 0
    %1515 = vmatpush2.bf16.msra.mxu0 0
    %1516 = vmatprep.subr.bf16.mxu0 0
    %1517 = vmatpush2.bf16.msra.mxu0 0
    %1518 = vmatprep.subr.bf16.mxu0 0
    %1519 = vmatpush2.bf16.msra.mxu0 0
    %1520 = vmatprep.mubr.bf16.mxu0 0
    %1521 = vmatmul.mubr.bf16.gmra.mxu0 %v231
    %v1522 = vpop.f32.mrf.mxu0
    %v1523 = vadd.f32 %v1441, %v1522
    %v1524 = vpop.f32.mrf.mxu0
    %v1525 = vadd.f32 %v1445, %v1524
    %v1526 = vpop.f32.mrf.mxu0
    %v1527 = vpop.f32.mrf.mxu0
    %1528 = vdwg.mxu0
    %v1529 = vld [vmem:[#allocation2] sm:$0x3]
    %v1530 = vld [vmem:[#allocation2 + $0x10] sm:$0xc0]
    %v1531 = vld [vmem:[#allocation2 + $0x18] sm:$0xc0]
    %v1532 = vadd.f32 %v1529, %v1523
    %v1533 = vxor.u32 %v1532, 2147483648
    %v1534 = vmul.f32 %v1533, 1.442695
    %v1535 = vpow.pop %v1534
    %v1536 = vadd.f32 %v1535, 1.0
    %v1537 = vrcp.pop %v1536
    %v1538 = vmul.f32 1.0, %v1537
    %1540 = vrot.lane.b32.xlu0 %v1523, 64
    %v1541 = vpop.permute.xlu0 %1540
    %v1543 = vmul.f32 %v1538, %v1541
    %1545 = vrot.lane.b32.xlu0 %v1543, 64
    %v1546 = vpop.permute.xlu0 %1545
    %v1548 = vadd.f32 %v1529, %v1546
    %v1549 = vtanh.pop %v1548
    %v1550 = vsub.f32 1.0, %v1538
    %1552 = vrot.lane.b32.xlu0 %v1549, 96
    %v1553 = vpop.permute.xlu0 %1552
    %v1555 = vmul.f32 %v1550, %v1553
    %v1556 = vmul.f32 %v1538, 0.0
    %v1557 = vadd.f32 %v1555, %v1556
    %v1558 = vrot.slane %v1523, 2
    %v1560 = vadd.f32 %v1530, %v1558
    %v1561 = vxor.u32 %v1560, 2147483648
    %v1562 = vmul.f32 %v1561, 1.442695
    %v1563 = vpow.pop %v1562
    %v1564 = vadd.f32 %v1563, 1.0
    %v1565 = vrcp.pop %v1564
    %v1566 = vmul.f32 1.0, %v1565
    %v1568 = vrot.slane %v1525, 2
    %v1570 = vadd.f32 %v1531, %v1568
    %v1571 = vxor.u32 %v1570, 2147483648
    %v1572 = vmul.f32 %v1571, 1.442695
    %v1573 = vpow.pop %v1572
    %v1574 = vadd.f32 %v1573, 1.0
    %v1575 = vrcp.pop %v1574
    %v1576 = vmul.f32 1.0, %v1575
    %1577 = vrot.lane.b32.xlu0 %v1568, 64
    %v1578 = vpop.permute.xlu0 %1577
    %v1580 = vmul.f32 %v1566, %v1578
    %1582 = vrot.lane.b32.xlu0 %v1580, 64
    %v1583 = vpop.permute.xlu0 %1582
    %v1585 = vadd.f32 %v1531, %v1583
    %v1586 = vtanh.pop %v1585
    %v1587 = vsub.f32 1.0, %v1576
    %1589 = vrot.lane.b32.xlu0 %v1586, 96
    %v1590 = vpop.permute.xlu0 %1589
    %v1592 = vmul.f32 %v1587, %v1590
    %v1593 = vmul.f32 %v1576, 0.0
    %v1594 = vadd.f32 %v1592, %v1593
    %1596 = vrot.lane.b32.xlu0 %v1557, 96
    %v1597 = vpop.permute.xlu0 %1596
    %1599 = vst.msk [vmem:[#allocation3] sm:$0x3] %vm344, %v1597
    %1601 = vrot.lane.b32.xlu0 %v1594, 32
    %v1602 = vpop.permute.xlu0 %1601
    %1604 = vst.msk [vmem:[#allocation3 + $0x8] sm:$0xc0] %vm350, %v1602
    %v1605 = vrot.slane %v1594, 6
    %1606 = vrot.lane.b32.xlu0 %v1605, 32
    %v1607 = vpop.permute.xlu0 %1606
    %v1609 = vsel %vm356, %v1597, %v1607
    %v1610 = vpack.c.bf16 %v1609, %v1609
    %v1612 = vsel %vm166, %v1610, 0
    %1614 = vmatprep.subr.bf16.mxu0 0
    %1615 = vmatpush1.bf16.msra.mxu0 0
    %1616 = vmatprep.subr.bf16.mxu0 0
    %1617 = vmatpush1.bf16.msra.mxu0 0
    %1618 = vmatprep.subr.bf16.mxu0 0
    %1619 = vmatpush1.bf16.msra.mxu0 0
    %1620 = vmatprep.subr.bf16.mxu0 0
    %1621 = vmatpush1.bf16.msra.mxu0 0
    %1622 = vmatprep.subr.bf16.mxu0 %v1479
    %1623 = vmatpush1.bf16.msra.mxu0 %v1478
    %1624 = vmatprep.subr.bf16.mxu0 %v1477
    %1625 = vmatpush1.bf16.msra.mxu0 %v1476
    %1626 = vmatprep.subr.bf16.mxu0 %v1475
    %1627 = vmatpush1.bf16.msra.mxu0 %v1474
    %1628 = vmatprep.subr.bf16.mxu0 %v1473
    %1629 = vmatpush1.bf16.msra.mxu0 %v1472
    %1630 = vmatprep.subr.bf16.mxu0 0
    %1631 = vmatpush2.bf16.msra.mxu0 0
    %1632 = vmatprep.subr.bf16.mxu0 0
    %1633 = vmatpush2.bf16.msra.mxu0 0
    %1634 = vmatprep.subr.bf16.mxu0 0
    %1635 = vmatpush2.bf16.msra.mxu0 0
    %1636 = vmatprep.subr.bf16.mxu0 0
    %1637 = vmatpush2.bf16.msra.mxu0 0
    %1638 = vmatprep.subr.bf16.mxu0 0
    %1639 = vmatpush2.bf16.msra.mxu0 0
    %1640 = vmatprep.subr.bf16.mxu0 0
    %1641 = vmatpush2.bf16.msra.mxu0 0
    %1642 = vmatprep.subr.bf16.mxu0 0
    %1643 = vmatpush2.bf16.msra.mxu0 0
    %1644 = vmatprep.subr.bf16.mxu0 0
    %1645 = vmatpush2.bf16.msra.mxu0 0
    %1646 = vmatprep.mubr.bf16.mxu0 0
    %1647 = vmatmul.mubr.bf16.gmra.mxu0 %v1612
    %v1648 = vpop.f32.mrf.mxu0
    %v1649 = vadd.f32 %v1441, %v1648
    %v1650 = vpop.f32.mrf.mxu0
    %v1651 = vadd.f32 %v1445, %v1650
    %v1652 = vpop.f32.mrf.mxu0
    %v1653 = vpop.f32.mrf.mxu0
    %1654 = vdwg.mxu0
    %v1655 = vld [vmem:[#allocation2] sm:$0xc]
    %v1656 = vld [vmem:[#allocation2 + $0x10] sm:$0x30]
    %v1657 = vld [vmem:[#allocation2 + $0x18] sm:$0x30]
    %v1659 = vrot.slane %v1649, 6
    %v1661 = vadd.f32 %v1655, %v1659
    %v1662 = vxor.u32 %v1661, 2147483648
    %v1663 = vmul.f32 %v1662, 1.442695
    %v1664 = vpow.pop %v1663
    %v1665 = vadd.f32 %v1664, 1.0
    %v1666 = vrcp.pop %v1665
    %v1667 = vmul.f32 1.0, %v1666
    %1668 = vrot.lane.b32.xlu0 %v1659, 64
    %v1669 = vpop.permute.xlu0 %1668
    %v1671 = vmul.f32 %v1667, %v1669
    %1673 = vrot.lane.b32.xlu0 %v1671, 64
    %v1674 = vpop.permute.xlu0 %1673
    %v1676 = vadd.f32 %v1655, %v1674
    %v1677 = vtanh.pop %v1676
    %v1678 = vsub.f32 1.0, %v1667
    %1680 = vrot.lane.b32.xlu0 %v1677, 96
    %v1681 = vpop.permute.xlu0 %1680
    %v1683 = vmul.f32 %v1678, %v1681
    %v1685 = vrot.slane %v1609, 6
    %1686 = vrot.lane.b32.xlu0 %v1685, 32
    %v1687 = vpop.permute.xlu0 %1686
    %v1689 = vmul.f32 %v1667, %v1687
    %v1690 = vadd.f32 %v1683, %v1689
    %v1691 = vrot.slane %v1649, 4
    %v1693 = vadd.f32 %v1656, %v1691
    %v1694 = vxor.u32 %v1693, 2147483648
    %v1695 = vmul.f32 %v1694, 1.442695
    %v1696 = vpow.pop %v1695
    %v1697 = vadd.f32 %v1696, 1.0
    %v1698 = vrcp.pop %v1697
    %v1699 = vmul.f32 1.0, %v1698
    %v1701 = vrot.slane %v1651, 4
    %v1703 = vadd.f32 %v1657, %v1701
    %v1704 = vxor.u32 %v1703, 2147483648
    %v1705 = vmul.f32 %v1704, 1.442695
    %v1706 = vpow.pop %v1705
    %v1707 = vadd.f32 %v1706, 1.0
    %v1708 = vrcp.pop %v1707
    %v1709 = vmul.f32 1.0, %v1708
    %1710 = vrot.lane.b32.xlu0 %v1701, 64
    %v1711 = vpop.permute.xlu0 %1710
    %v1713 = vmul.f32 %v1699, %v1711
    %1715 = vrot.lane.b32.xlu0 %v1713, 64
    %v1716 = vpop.permute.xlu0 %1715
    %v1718 = vadd.f32 %v1657, %v1716
    %v1719 = vtanh.pop %v1718
    %v1720 = vsub.f32 1.0, %v1709
    %1722 = vrot.lane.b32.xlu0 %v1719, 96
    %v1723 = vpop.permute.xlu0 %1722
    %v1725 = vmul.f32 %v1720, %v1723
    %v1726 = vrot.slane %v1609, 4
    %1727 = vrot.lane.b32.xlu0 %v1726, 96
    %v1728 = vpop.permute.xlu0 %1727
    %v1730 = vmul.f32 %v1709, %v1728
    %v1731 = vadd.f32 %v1725, %v1730
    %1733 = vrot.lane.b32.xlu0 %v1690, 96
    %v1734 = vpop.permute.xlu0 %1733
    %1736 = vst.msk [vmem:[#allocation3] sm:$0xc] %vm484, %v1734
    %1738 = vrot.lane.b32.xlu0 %v1731, 32
    %v1739 = vpop.permute.xlu0 %1738
    %1741 = vst.msk [vmem:[#allocation3 + $0x8] sm:$0x30] %vm490, %v1739
    %v1742 = vrot.slane %v1731, 2
    %1743 = vrot.lane.b32.xlu0 %v1742, 32
    %v1744 = vpop.permute.xlu0 %1743
    %v1746 = vsel %vm356, %v1734, %v1744
    %v1747 = vpack.c.bf16 %v1746, %v1746
    %v1749 = vrot.slane %v1747, 1
    %v1751 = vsel %vm166, %v1749, 0
    %1753 = vmatprep.subr.bf16.mxu0 0
    %1754 = vmatpush1.bf16.msra.mxu0 0
    %1755 = vmatprep.subr.bf16.mxu0 0
    %1756 = vmatpush1.bf16.msra.mxu0 0
    %1757 = vmatprep.subr.bf16.mxu0 0
    %1758 = vmatpush1.bf16.msra.mxu0 0
    %1759 = vmatprep.subr.bf16.mxu0 0
    %1760 = vmatpush1.bf16.msra.mxu0 0
    %1761 = vmatprep.subr.bf16.mxu0 %v1479
    %1762 = vmatpush1.bf16.msra.mxu0 %v1478
    %1763 = vmatprep.subr.bf16.mxu0 %v1477
    %1764 = vmatpush1.bf16.msra.mxu0 %v1476
    %1765 = vmatprep.subr.bf16.mxu0 %v1475
    %1766 = vmatpush1.bf16.msra.mxu0 %v1474
    %1767 = vmatprep.subr.bf16.mxu0 %v1473
    %1768 = vmatpush1.bf16.msra.mxu0 %v1472
    %1769 = vmatprep.subr.bf16.mxu0 0
    %1770 = vmatpush2.bf16.msra.mxu0 0
    %1771 = vmatprep.subr.bf16.mxu0 0
    %1772 = vmatpush2.bf16.msra.mxu0 0
    %1773 = vmatprep.subr.bf16.mxu0 0
    %1774 = vmatpush2.bf16.msra.mxu0 0
    %1775 = vmatprep.subr.bf16.mxu0 0
    %1776 = vmatpush2.bf16.msra.mxu0 0
    %1777 = vmatprep.subr.bf16.mxu0 0
    %1778 = vmatpush2.bf16.msra.mxu0 0
    %1779 = vmatprep.subr.bf16.mxu0 0
    %1780 = vmatpush2.bf16.msra.mxu0 0
    %1781 = vmatprep.subr.bf16.mxu0 0
    %1782 = vmatpush2.bf16.msra.mxu0 0
    %1783 = vmatprep.subr.bf16.mxu0 0
    %1784 = vmatpush2.bf16.msra.mxu0 0
    %1785 = vmatprep.mubr.bf16.mxu0 0
    %1786 = vmatmul.mubr.bf16.gmra.mxu0 %v1751
    %v1787 = vpop.f32.mrf.mxu0
    %v1788 = vadd.f32 %v1441, %v1787
    %v1789 = vpop.f32.mrf.mxu0
    %v1790 = vadd.f32 %v1445, %v1789
    %v1791 = vpop.f32.mrf.mxu0
    %v1792 = vpop.f32.mrf.mxu0
    %1793 = vdwg.mxu0
    %v1794 = vld [vmem:[#allocation2] sm:$0x30]
    %v1795 = vld [vmem:[#allocation2 + $0x10] sm:$0xc]
    %v1796 = vld [vmem:[#allocation2 + $0x18] sm:$0xc]
    %v1798 = vrot.slane %v1788, 4
    %v1800 = vadd.f32 %v1794, %v1798
    %v1801 = vxor.u32 %v1800, 2147483648
    %v1802 = vmul.f32 %v1801, 1.442695
    %v1803 = vpow.pop %v1802
    %v1804 = vadd.f32 %v1803, 1.0
    %v1805 = vrcp.pop %v1804
    %v1806 = vmul.f32 1.0, %v1805
    %1807 = vrot.lane.b32.xlu0 %v1798, 64
    %v1808 = vpop.permute.xlu0 %1807
    %v1810 = vmul.f32 %v1806, %v1808
    %1812 = vrot.lane.b32.xlu0 %v1810, 64
    %v1813 = vpop.permute.xlu0 %1812
    %v1815 = vadd.f32 %v1794, %v1813
    %v1816 = vtanh.pop %v1815
    %v1817 = vsub.f32 1.0, %v1806
    %1819 = vrot.lane.b32.xlu0 %v1816, 96
    %v1820 = vpop.permute.xlu0 %1819
    %v1822 = vmul.f32 %v1817, %v1820
    %v1824 = vrot.slane %v1746, 6
    %1825 = vrot.lane.b32.xlu0 %v1824, 32
    %v1826 = vpop.permute.xlu0 %1825
    %v1828 = vmul.f32 %v1806, %v1826
    %v1829 = vadd.f32 %v1822, %v1828
    %v1830 = vrot.slane %v1788, 6
    %v1832 = vadd.f32 %v1795, %v1830
    %v1833 = vxor.u32 %v1832, 2147483648
    %v1834 = vmul.f32 %v1833, 1.442695
    %v1835 = vpow.pop %v1834
    %v1836 = vadd.f32 %v1835, 1.0
    %v1837 = vrcp.pop %v1836
    %v1838 = vmul.f32 1.0, %v1837
    %v1840 = vrot.slane %v1790, 6
    %v1842 = vadd.f32 %v1796, %v1840
    %v1843 = vxor.u32 %v1842, 2147483648
    %v1844 = vmul.f32 %v1843, 1.442695
    %v1845 = vpow.pop %v1844
    %v1846 = vadd.f32 %v1845, 1.0
    %v1847 = vrcp.pop %v1846
    %v1848 = vmul.f32 1.0, %v1847
    %1849 = vrot.lane.b32.xlu0 %v1840, 64
    %v1850 = vpop.permute.xlu0 %1849
    %v1852 = vmul.f32 %v1838, %v1850
    %1854 = vrot.lane.b32.xlu0 %v1852, 64
    %v1855 = vpop.permute.xlu0 %1854
    %v1857 = vadd.f32 %v1796, %v1855
    %v1858 = vtanh.pop %v1857
    %v1859 = vsub.f32 1.0, %v1848
    %1861 = vrot.lane.b32.xlu0 %v1858, 96
    %v1862 = vpop.permute.xlu0 %1861
    %v1864 = vmul.f32 %v1859, %v1862
    %1865 = vrot.lane.b32.xlu0 %v1746, 96
    %v1866 = vpop.permute.xlu0 %1865
    %v1868 = vmul.f32 %v1848, %v1866
    %v1869 = vadd.f32 %v1864, %v1868
    %1871 = vrot.lane.b32.xlu0 %v1829, 96
    %v1872 = vpop.permute.xlu0 %1871
    %1874 = vst.msk [vmem:[#allocation3] sm:$0x30] %vm624, %v1872
    %1876 = vrot.lane.b32.xlu0 %v1869, 32
    %v1877 = vpop.permute.xlu0 %1876
    %1879 = vst.msk [vmem:[#allocation3 + $0x8] sm:$0xc] %vm630, %v1877
    %v1880 = vrot.slane %v1869, 6
    %1881 = vrot.lane.b32.xlu0 %v1880, 32
    %v1882 = vpop.permute.xlu0 %1881
    %v1884 = vsel %vm356, %v1872, %v1882
    %v1885 = vpack.c.bf16 %v1884, %v1884
    %v1887 = vrot.slane %v1885, 2
    %v1889 = vsel %vm166, %v1887, 0
    %1891 = vmatprep.subr.bf16.mxu0 0
    %1892 = vmatpush1.bf16.msra.mxu0 0
    %1893 = vmatprep.subr.bf16.mxu0 0
    %1894 = vmatpush1.bf16.msra.mxu0 0
    %1895 = vmatprep.subr.bf16.mxu0 0
    %1896 = vmatpush1.bf16.msra.mxu0 0
    %1897 = vmatprep.subr.bf16.mxu0 0
    %1898 = vmatpush1.bf16.msra.mxu0 0
    %1899 = vmatprep.subr.bf16.mxu0 %v1479
    %1900 = vmatpush1.bf16.msra.mxu0 %v1478
    %1901 = vmatprep.subr.bf16.mxu0 %v1477
    %1902 = vmatpush1.bf16.msra.mxu0 %v1476
    %1903 = vmatprep.subr.bf16.mxu0 %v1475
    %1904 = vmatpush1.bf16.msra.mxu0 %v1474
    %1905 = vmatprep.subr.bf16.mxu0 %v1473
    %1906 = vmatpush1.bf16.msra.mxu0 %v1472
    %1907 = vmatprep.subr.bf16.mxu0 0
    %1908 = vmatpush2.bf16.msra.mxu0 0
    %1909 = vmatprep.subr.bf16.mxu0 0
    %1910 = vmatpush2.bf16.msra.mxu0 0
    %1911 = vmatprep.subr.bf16.mxu0 0
    %1912 = vmatpush2.bf16.msra.mxu0 0
    %1913 = vmatprep.subr.bf16.mxu0 0
    %1914 = vmatpush2.bf16.msra.mxu0 0
    %1915 = vmatprep.subr.bf16.mxu0 0
    %1916 = vmatpush2.bf16.msra.mxu0 0
    %1917 = vmatprep.subr.bf16.mxu0 0
    %1918 = vmatpush2.bf16.msra.mxu0 0
    %1919 = vmatprep.subr.bf16.mxu0 0
    %1920 = vmatpush2.bf16.msra.mxu0 0
    %1921 = vmatprep.subr.bf16.mxu0 0
    %1922 = vmatpush2.bf16.msra.mxu0 0
    %1923 = vmatprep.mubr.bf16.mxu0 0
    %1924 = vmatmul.mubr.bf16.gmra.mxu0 %v1889
    %v1925 = vpop.f32.mrf.mxu0
    %v1926 = vadd.f32 %v1441, %v1925
    %v1927 = vpop.f32.mrf.mxu0
    %v1928 = vadd.f32 %v1445, %v1927
    %v1929 = vpop.f32.mrf.mxu0
    %v1930 = vpop.f32.mrf.mxu0
    %1931 = vdwg.mxu0
    %v1932 = vld [vmem:[#allocation2] sm:$0xc0]
    %v1933 = vld [vmem:[#allocation2 + $0x10] sm:$0x3]
    %v1934 = vld [vmem:[#allocation2 + $0x18] sm:$0x3]
    %v1936 = vrot.slane %v1926, 2
    %v1938 = vadd.f32 %v1932, %v1936
    %v1939 = vxor.u32 %v1938, 2147483648
    %v1940 = vmul.f32 %v1939, 1.442695
    %v1941 = vpow.pop %v1940
    %v1942 = vadd.f32 %v1941, 1.0
    %v1943 = vrcp.pop %v1942
    %v1944 = vmul.f32 1.0, %v1943
    %1945 = vrot.lane.b32.xlu0 %v1936, 64
    %v1946 = vpop.permute.xlu0 %1945
    %v1948 = vmul.f32 %v1944, %v1946
    %1950 = vrot.lane.b32.xlu0 %v1948, 64
    %v1951 = vpop.permute.xlu0 %1950
    %v1953 = vadd.f32 %v1932, %v1951
    %v1954 = vtanh.pop %v1953
    %v1955 = vsub.f32 1.0, %v1944
    %1957 = vrot.lane.b32.xlu0 %v1954, 96
    %v1958 = vpop.permute.xlu0 %1957
    %v1960 = vmul.f32 %v1955, %v1958
    %v1962 = vrot.slane %v1884, 6
    %1963 = vrot.lane.b32.xlu0 %v1962, 32
    %v1964 = vpop.permute.xlu0 %1963
    %v1966 = vmul.f32 %v1944, %v1964
    %v1967 = vadd.f32 %v1960, %v1966
    %v1968 = vadd.f32 %v1933, %v1926
    %v1969 = vxor.u32 %v1968, 2147483648
    %v1970 = vmul.f32 %v1969, 1.442695
    %v1971 = vpow.pop %v1970
    %v1972 = vadd.f32 %v1971, 1.0
    %v1973 = vrcp.pop %v1972
    %v1974 = vmul.f32 1.0, %v1973
    %v1975 = vadd.f32 %v1934, %v1928
    %v1976 = vxor.u32 %v1975, 2147483648
    %v1977 = vmul.f32 %v1976, 1.442695
    %v1978 = vpow.pop %v1977
    %v1979 = vadd.f32 %v1978, 1.0
    %v1980 = vrcp.pop %v1979
    %v1981 = vmul.f32 1.0, %v1980
    %1983 = vrot.lane.b32.xlu0 %v1928, 64
    %v1984 = vpop.permute.xlu0 %1983
    %v1986 = vmul.f32 %v1974, %v1984
    %1988 = vrot.lane.b32.xlu0 %v1986, 64
    %v1989 = vpop.permute.xlu0 %1988
    %v1991 = vadd.f32 %v1934, %v1989
    %v1992 = vtanh.pop %v1991
    %v1993 = vsub.f32 1.0, %v1981
    %1995 = vrot.lane.b32.xlu0 %v1992, 96
    %v1996 = vpop.permute.xlu0 %1995
    %v1998 = vmul.f32 %v1993, %v1996
    %v1999 = vrot.slane %v1884, 4
    %2000 = vrot.lane.b32.xlu0 %v1999, 96
    %v2001 = vpop.permute.xlu0 %2000
    %v2003 = vmul.f32 %v1981, %v2001
    %v2004 = vadd.f32 %v1998, %v2003
    %2006 = vrot.lane.b32.xlu0 %v1967, 96
    %v2007 = vpop.permute.xlu0 %2006
    %2009 = vst.msk [vmem:[#allocation3] sm:$0xc0] %vm761, %v2007
    %2011 = vrot.lane.b32.xlu0 %v2004, 32
    %v2012 = vpop.permute.xlu0 %2011
    %2014 = vst.msk [vmem:[#allocation3 + $0x8] sm:$0x3] %vm767, %v2012
    %v2015 = vrot.slane %v2004, 2
    %2016 = vrot.lane.b32.xlu0 %v2015, 32
    %v2017 = vpop.permute.xlu0 %2016
    %v2019 = vsel %vm356, %v2007, %v2017
    %v2020 = vpack.c.bf16 %v2019, %v2019
    %v2022 = vrot.slane %v2020, 3
    %v2024 = vsel %vm166, %v2022, 0
    %2026 = vmatprep.subr.bf16.mxu0 0
    %2027 = vmatpush1.bf16.msra.mxu0 0
    %2028 = vmatprep.subr.bf16.mxu0 0
    %2029 = vmatpush1.bf16.msra.mxu0 0
    %2030 = vmatprep.subr.bf16.mxu0 0
    %2031 = vmatpush1.bf16.msra.mxu0 0
    %2032 = vmatprep.subr.bf16.mxu0 0
    %2033 = vmatpush1.bf16.msra.mxu0 0
    %2034 = vmatprep.subr.bf16.mxu0 %v1479
    %2035 = vmatpush1.bf16.msra.mxu0 %v1478
    %2036 = vmatprep.subr.bf16.mxu0 %v1477
    %2037 = vmatpush1.bf16.msra.mxu0 %v1476
    %2038 = vmatprep.subr.bf16.mxu0 %v1475
    %2039 = vmatpush1.bf16.msra.mxu0 %v1474
    %2040 = vmatprep.subr.bf16.mxu0 %v1473
    %2041 = vmatpush1.bf16.msra.mxu0 %v1472
    %2042 = vmatprep.subr.bf16.mxu0 0
    %2043 = vmatpush2.bf16.msra.mxu0 0
    %2044 = vmatprep.subr.bf16.mxu0 0
    %2045 = vmatpush2.bf16.msra.mxu0 0
    %2046 = vmatprep.subr.bf16.mxu0 0
    %2047 = vmatpush2.bf16.msra.mxu0 0
    %2048 = vmatprep.subr.bf16.mxu0 0
    %2049 = vmatpush2.bf16.msra.mxu0 0
    %2050 = vmatprep.subr.bf16.mxu0 0
    %2051 = vmatpush2.bf16.msra.mxu0 0
    %2052 = vmatprep.subr.bf16.mxu0 0
    %2053 = vmatpush2.bf16.msra.mxu0 0
    %2054 = vmatprep.subr.bf16.mxu0 0
    %2055 = vmatpush2.bf16.msra.mxu0 0
    %2056 = vmatprep.subr.bf16.mxu0 0
    %2057 = vmatpush2.bf16.msra.mxu0 0
    %2058 = vmatprep.mubr.bf16.mxu0 0
    %2059 = vmatmul.mubr.bf16.gmra.mxu0 %v2024
    %v2060 = vpop.f32.mrf.mxu0
    %v2061 = vadd.f32 %v1441, %v2060
    %v2062 = vpop.f32.mrf.mxu0
    %v2063 = vadd.f32 %v1445, %v2062
    %v2064 = vpop.f32.mrf.mxu0
    %v2065 = vpop.f32.mrf.mxu0
    %2066 = vdwg.mxu0
    %v2067 = vld [vmem:[#allocation2 + $0x10] sm:$0x3]
    %v2068 = vld [vmem:[#allocation2] sm:$0xc0]
    %v2069 = vld [vmem:[#allocation2 + $0x8] sm:$0xc0]
    %v2070 = vadd.f32 %v2067, %v2061
    %v2071 = vxor.u32 %v2070, 2147483648
    %v2072 = vmul.f32 %v2071, 1.442695
    %v2073 = vpow.pop %v2072
    %v2074 = vadd.f32 %v2073, 1.0
    %v2075 = vrcp.pop %v2074
    %v2076 = vmul.f32 1.0, %v2075
    %2078 = vrot.lane.b32.xlu0 %v2061, 64
    %v2079 = vpop.permute.xlu0 %2078
    %v2081 = vmul.f32 %v2076, %v2079
    %2083 = vrot.lane.b32.xlu0 %v2081, 64
    %v2084 = vpop.permute.xlu0 %2083
    %v2086 = vadd.f32 %v2067, %v2084
    %v2087 = vtanh.pop %v2086
    %v2088 = vsub.f32 1.0, %v2076
    %2090 = vrot.lane.b32.xlu0 %v2087, 96
    %v2091 = vpop.permute.xlu0 %2090
    %v2093 = vmul.f32 %v2088, %v2091
    %v2095 = vrot.slane %v2019, 6
    %2096 = vrot.lane.b32.xlu0 %v2095, 32
    %v2097 = vpop.permute.xlu0 %2096
    %v2099 = vmul.f32 %v2076, %v2097
    %v2100 = vadd.f32 %v2093, %v2099
    %v2101 = vrot.slane %v2061, 2
    %v2103 = vadd.f32 %v2068, %v2101
    %v2104 = vxor.u32 %v2103, 2147483648
    %v2105 = vmul.f32 %v2104, 1.442695
    %v2106 = vpow.pop %v2105
    %v2107 = vadd.f32 %v2106, 1.0
    %v2108 = vrcp.pop %v2107
    %v2109 = vmul.f32 1.0, %v2108
    %v2111 = vrot.slane %v2063, 2
    %v2113 = vadd.f32 %v2069, %v2111
    %v2114 = vxor.u32 %v2113, 2147483648
    %v2115 = vmul.f32 %v2114, 1.442695
    %v2116 = vpow.pop %v2115
    %v2117 = vadd.f32 %v2116, 1.0
    %v2118 = vrcp.pop %v2117
    %v2119 = vmul.f32 1.0, %v2118
    %2120 = vrot.lane.b32.xlu0 %v2111, 64
    %v2121 = vpop.permute.xlu0 %2120
    %v2123 = vmul.f32 %v2109, %v2121
    %2125 = vrot.lane.b32.xlu0 %v2123, 64
    %v2126 = vpop.permute.xlu0 %2125
    %v2128 = vadd.f32 %v2069, %v2126
    %v2129 = vtanh.pop %v2128
    %v2130 = vsub.f32 1.0, %v2119
    %2132 = vrot.lane.b32.xlu0 %v2129, 96
    %v2133 = vpop.permute.xlu0 %2132
    %v2135 = vmul.f32 %v2130, %v2133
    %2136 = vrot.lane.b32.xlu0 %v2019, 96
    %v2137 = vpop.permute.xlu0 %2136
    %v2139 = vmul.f32 %v2119, %v2137
    %v2140 = vadd.f32 %v2135, %v2139
    %2142 = vrot.lane.b32.xlu0 %v2100, 96
    %v2143 = vpop.permute.xlu0 %2142
    %2145 = vst.msk [vmem:[#allocation3 + $0x8] sm:$0x3] %vm344, %v2143
    %2147 = vrot.lane.b32.xlu0 %v2140, 32
    %v2148 = vpop.permute.xlu0 %2147
    %2150 = vst.msk [vmem:[#allocation3] sm:$0xc0] %vm350, %v2148
    %v2151 = vrot.slane %v2140, 6
    %2152 = vrot.lane.b32.xlu0 %v2151, 32
    %v2153 = vpop.permute.xlu0 %2152
    %v2155 = vsel %vm356, %v2143, %v2153
    %v2156 = vpack.c.bf16 %v2155, %v2155
    %v2158 = vsel %vm166, %v2156, 0
    %2160 = vmatprep.subr.bf16.mxu0 0
    %2161 = vmatpush1.bf16.msra.mxu0 0
    %2162 = vmatprep.subr.bf16.mxu0 0
    %2163 = vmatpush1.bf16.msra.mxu0 0
    %2164 = vmatprep.subr.bf16.mxu0 0
    %2165 = vmatpush1.bf16.msra.mxu0 0
    %2166 = vmatprep.subr.bf16.mxu0 0
    %2167 = vmatpush1.bf16.msra.mxu0 0
    %2168 = vmatprep.subr.bf16.mxu0 %v1479
    %2169 = vmatpush1.bf16.msra.mxu0 %v1478
    %2170 = vmatprep.subr.bf16.mxu0 %v1477
    %2171 = vmatpush1.bf16.msra.mxu0 %v1476
    %2172 = vmatprep.subr.bf16.mxu0 %v1475
    %2173 = vmatpush1.bf16.msra.mxu0 %v1474
    %2174 = vmatprep.subr.bf16.mxu0 %v1473
    %2175 = vmatpush1.bf16.msra.mxu0 %v1472
    %2176 = vmatprep.subr.bf16.mxu0 0
    %2177 = vmatpush2.bf16.msra.mxu0 0
    %2178 = vmatprep.subr.bf16.mxu0 0
    %2179 = vmatpush2.bf16.msra.mxu0 0
    %2180 = vmatprep.subr.bf16.mxu0 0
    %2181 = vmatpush2.bf16.msra.mxu0 0
    %2182 = vmatprep.subr.bf16.mxu0 0
    %2183 = vmatpush2.bf16.msra.mxu0 0
    %2184 = vmatprep.subr.bf16.mxu0 0
    %2185 = vmatpush2.bf16.msra.mxu0 0
    %2186 = vmatprep.subr.bf16.mxu0 0
    %2187 = vmatpush2.bf16.msra.mxu0 0
    %2188 = vmatprep.subr.bf16.mxu0 0
    %2189 = vmatpush2.bf16.msra.mxu0 0
    %2190 = vmatprep.subr.bf16.mxu0 0
    %2191 = vmatpush2.bf16.msra.mxu0 0
    %2192 = vmatprep.mubr.bf16.mxu0 0
    %2193 = vmatmul.mubr.bf16.gmra.mxu0 %v2158
    %v2194 = vpop.f32.mrf.mxu0
    %v2195 = vadd.f32 %v1441, %v2194
    %v2196 = vpop.f32.mrf.mxu0
    %v2197 = vadd.f32 %v1445, %v2196
    %v2198 = vpop.f32.mrf.mxu0
    %v2199 = vpop.f32.mrf.mxu0
    %2200 = vdwg.mxu0
    %v2201 = vld [vmem:[#allocation2 + $0x10] sm:$0xc]
    %v2202 = vld [vmem:[#allocation2] sm:$0x30]
    %v2203 = vld [vmem:[#allocation2 + $0x8] sm:$0x30]
    %v2205 = vrot.slane %v2195, 6
    %v2207 = vadd.f32 %v2201, %v2205
    %v2208 = vxor.u32 %v2207, 2147483648
    %v2209 = vmul.f32 %v2208, 1.442695
    %v2210 = vpow.pop %v2209
    %v2211 = vadd.f32 %v2210, 1.0
    %v2212 = vrcp.pop %v2211
    %v2213 = vmul.f32 1.0, %v2212
    %2214 = vrot.lane.b32.xlu0 %v2205, 64
    %v2215 = vpop.permute.xlu0 %2214
    %v2217 = vmul.f32 %v2213, %v2215
    %2219 = vrot.lane.b32.xlu0 %v2217, 64
    %v2220 = vpop.permute.xlu0 %2219
    %v2222 = vadd.f32 %v2201, %v2220
    %v2223 = vtanh.pop %v2222
    %v2224 = vsub.f32 1.0, %v2213
    %2226 = vrot.lane.b32.xlu0 %v2223, 96
    %v2227 = vpop.permute.xlu0 %2226
    %v2229 = vmul.f32 %v2224, %v2227
    %v2231 = vrot.slane %v2155, 6
    %2232 = vrot.lane.b32.xlu0 %v2231, 32
    %v2233 = vpop.permute.xlu0 %2232
    %v2235 = vmul.f32 %v2213, %v2233
    %v2236 = vadd.f32 %v2229, %v2235
    %v2237 = vrot.slane %v2195, 4
    %v2239 = vadd.f32 %v2202, %v2237
    %v2240 = vxor.u32 %v2239, 2147483648
    %v2241 = vmul.f32 %v2240, 1.442695
    %v2242 = vpow.pop %v2241
    %v2243 = vadd.f32 %v2242, 1.0
    %v2244 = vrcp.pop %v2243
    %v2245 = vmul.f32 1.0, %v2244
    %v2247 = vrot.slane %v2197, 4
    %v2249 = vadd.f32 %v2203, %v2247
    %v2250 = vxor.u32 %v2249, 2147483648
    %v2251 = vmul.f32 %v2250, 1.442695
    %v2252 = vpow.pop %v2251
    %v2253 = vadd.f32 %v2252, 1.0
    %v2254 = vrcp.pop %v2253
    %v2255 = vmul.f32 1.0, %v2254
    %2256 = vrot.lane.b32.xlu0 %v2247, 64
    %v2257 = vpop.permute.xlu0 %2256
    %v2259 = vmul.f32 %v2245, %v2257
    %2261 = vrot.lane.b32.xlu0 %v2259, 64
    %v2262 = vpop.permute.xlu0 %2261
    %v2264 = vadd.f32 %v2203, %v2262
    %v2265 = vtanh.pop %v2264
    %v2266 = vsub.f32 1.0, %v2255
    %2268 = vrot.lane.b32.xlu0 %v2265, 96
    %v2269 = vpop.permute.xlu0 %2268
    %v2271 = vmul.f32 %v2266, %v2269
    %v2272 = vrot.slane %v2155, 4
    %2273 = vrot.lane.b32.xlu0 %v2272, 96
    %v2274 = vpop.permute.xlu0 %2273
    %v2276 = vmul.f32 %v2255, %v2274
    %v2277 = vadd.f32 %v2271, %v2276
    %2279 = vrot.lane.b32.xlu0 %v2236, 96
    %v2280 = vpop.permute.xlu0 %2279
    %2282 = vst.msk [vmem:[#allocation3 + $0x8] sm:$0xc] %vm484, %v2280
    %2284 = vrot.lane.b32.xlu0 %v2277, 32
    %v2285 = vpop.permute.xlu0 %2284
    %2287 = vst.msk [vmem:[#allocation3] sm:$0x30] %vm490, %v2285
    %v2288 = vrot.slane %v2277, 2
    %2289 = vrot.lane.b32.xlu0 %v2288, 32
    %v2290 = vpop.permute.xlu0 %2289
    %v2292 = vsel %vm356, %v2280, %v2290
    %v2293 = vpack.c.bf16 %v2292, %v2292
    %v2295 = vrot.slane %v2293, 1
    %v2297 = vsel %vm166, %v2295, 0
    %2299 = vmatprep.subr.bf16.mxu0 0
    %2300 = vmatpush1.bf16.msra.mxu0 0
    %2301 = vmatprep.subr.bf16.mxu0 0
    %2302 = vmatpush1.bf16.msra.mxu0 0
    %2303 = vmatprep.subr.bf16.mxu0 0
    %2304 = vmatpush1.bf16.msra.mxu0 0
    %2305 = vmatprep.subr.bf16.mxu0 0
    %2306 = vmatpush1.bf16.msra.mxu0 0
    %2307 = vmatprep.subr.bf16.mxu0 %v1479
    %2308 = vmatpush1.bf16.msra.mxu0 %v1478
    %2309 = vmatprep.subr.bf16.mxu0 %v1477
    %2310 = vmatpush1.bf16.msra.mxu0 %v1476
    %2311 = vmatprep.subr.bf16.mxu0 %v1475
    %2312 = vmatpush1.bf16.msra.mxu0 %v1474
    %2313 = vmatprep.subr.bf16.mxu0 %v1473
    %2314 = vmatpush1.bf16.msra.mxu0 %v1472
    %2315 = vmatprep.subr.bf16.mxu0 0
    %2316 = vmatpush2.bf16.msra.mxu0 0
    %2317 = vmatprep.subr.bf16.mxu0 0
    %2318 = vmatpush2.bf16.msra.mxu0 0
    %2319 = vmatprep.subr.bf16.mxu0 0
    %2320 = vmatpush2.bf16.msra.mxu0 0
    %2321 = vmatprep.subr.bf16.mxu0 0
    %2322 = vmatpush2.bf16.msra.mxu0 0
    %2323 = vmatprep.subr.bf16.mxu0 0
    %2324 = vmatpush2.bf16.msra.mxu0 0
    %2325 = vmatprep.subr.bf16.mxu0 0
    %2326 = vmatpush2.bf16.msra.mxu0 0
    %2327 = vmatprep.subr.bf16.mxu0 0
    %2328 = vmatpush2.bf16.msra.mxu0 0
    %2329 = vmatprep.subr.bf16.mxu0 0
    %2330 = vmatpush2.bf16.msra.mxu0 0
    %2331 = vmatprep.mubr.bf16.mxu0 0
    %2332 = vmatmul.mubr.bf16.gmra.mxu0 %v2297
    %v2333 = vpop.f32.mrf.mxu0
    %v2334 = vadd.f32 %v1441, %v2333
    %v2335 = vpop.f32.mrf.mxu0
    %v2336 = vadd.f32 %v1445, %v2335
    %v2337 = vpop.f32.mrf.mxu0
    %v2338 = vpop.f32.mrf.mxu0
    %2339 = vdwg.mxu0
    %v2340 = vld [vmem:[#allocation2 + $0x10] sm:$0x30]
    %v2341 = vld [vmem:[#allocation2] sm:$0xc]
    %v2342 = vld [vmem:[#allocation2 + $0x8] sm:$0xc]
    %v2344 = vrot.slane %v2334, 4
    %v2346 = vadd.f32 %v2340, %v2344
    %v2347 = vxor.u32 %v2346, 2147483648
    %v2348 = vmul.f32 %v2347, 1.442695
    %v2349 = vpow.pop %v2348
    %v2350 = vadd.f32 %v2349, 1.0
    %v2351 = vrcp.pop %v2350
    %v2352 = vmul.f32 1.0, %v2351
    %2353 = vrot.lane.b32.xlu0 %v2344, 64
    %v2354 = vpop.permute.xlu0 %2353
    %v2356 = vmul.f32 %v2352, %v2354
    %2358 = vrot.lane.b32.xlu0 %v2356, 64
    %v2359 = vpop.permute.xlu0 %2358
    %v2361 = vadd.f32 %v2340, %v2359
    %v2362 = vtanh.pop %v2361
    %v2363 = vsub.f32 1.0, %v2352
    %2365 = vrot.lane.b32.xlu0 %v2362, 96
    %v2366 = vpop.permute.xlu0 %2365
    %v2368 = vmul.f32 %v2363, %v2366
    %v2370 = vrot.slane %v2292, 6
    %2371 = vrot.lane.b32.xlu0 %v2370, 32
    %v2372 = vpop.permute.xlu0 %2371
    %v2374 = vmul.f32 %v2352, %v2372
    %v2375 = vadd.f32 %v2368, %v2374
    %v2376 = vrot.slane %v2334, 6
    %v2378 = vadd.f32 %v2341, %v2376
    %v2379 = vxor.u32 %v2378, 2147483648
    %v2380 = vmul.f32 %v2379, 1.442695
    %v2381 = vpow.pop %v2380
    %v2382 = vadd.f32 %v2381, 1.0
    %v2383 = vrcp.pop %v2382
    %v2384 = vmul.f32 1.0, %v2383
    %v2386 = vrot.slane %v2336, 6
    %v2388 = vadd.f32 %v2342, %v2386
    %v2389 = vxor.u32 %v2388, 2147483648
    %v2390 = vmul.f32 %v2389, 1.442695
    %v2391 = vpow.pop %v2390
    %v2392 = vadd.f32 %v2391, 1.0
    %v2393 = vrcp.pop %v2392
    %v2394 = vmul.f32 1.0, %v2393
    %2395 = vrot.lane.b32.xlu0 %v2386, 64
    %v2396 = vpop.permute.xlu0 %2395
    %v2398 = vmul.f32 %v2384, %v2396
    %2400 = vrot.lane.b32.xlu0 %v2398, 64
    %v2401 = vpop.permute.xlu0 %2400
    %v2403 = vadd.f32 %v2342, %v2401
    %v2404 = vtanh.pop %v2403
    %v2405 = vsub.f32 1.0, %v2394
    %2407 = vrot.lane.b32.xlu0 %v2404, 96
    %v2408 = vpop.permute.xlu0 %2407
    %v2410 = vmul.f32 %v2405, %v2408
    %2411 = vrot.lane.b32.xlu0 %v2292, 96
    %v2412 = vpop.permute.xlu0 %2411
    %v2414 = vmul.f32 %v2394, %v2412
    %v2415 = vadd.f32 %v2410, %v2414
    %2417 = vrot.lane.b32.xlu0 %v2375, 96
    %v2418 = vpop.permute.xlu0 %2417
    %2420 = vst.msk [vmem:[#allocation3 + $0x8] sm:$0x30] %vm624, %v2418
    %2422 = vrot.lane.b32.xlu0 %v2415, 32
    %v2423 = vpop.permute.xlu0 %2422
    %2425 = vst.msk [vmem:[#allocation3] sm:$0xc] %vm630, %v2423
    %v2426 = vrot.slane %v2415, 6
    %2427 = vrot.lane.b32.xlu0 %v2426, 32
    %v2428 = vpop.permute.xlu0 %2427
    %v2430 = vsel %vm356, %v2418, %v2428
    %v2431 = vpack.c.bf16 %v2430, %v2430
    %v2433 = vrot.slane %v2431, 2
    %v2435 = vsel %vm166, %v2433, 0
    %2437 = vmatprep.subr.bf16.mxu0 0
    %2438 = vmatpush1.bf16.msra.mxu0 0
    %2439 = vmatprep.subr.bf16.mxu0 0
    %2440 = vmatpush1.bf16.msra.mxu0 0
    %2441 = vmatprep.subr.bf16.mxu0 0
    %2442 = vmatpush1.bf16.msra.mxu0 0
    %2443 = vmatprep.subr.bf16.mxu0 0
    %2444 = vmatpush1.bf16.msra.mxu0 0
    %2445 = vmatprep.subr.bf16.mxu0 %v1479
    %2446 = vmatpush1.bf16.msra.mxu0 %v1478
    %2447 = vmatprep.subr.bf16.mxu0 %v1477
    %2448 = vmatpush1.bf16.msra.mxu0 %v1476
    %2449 = vmatprep.subr.bf16.mxu0 %v1475
    %2450 = vmatpush1.bf16.msra.mxu0 %v1474
    %2451 = vmatprep.subr.bf16.mxu0 %v1473
    %2452 = vmatpush1.bf16.msra.mxu0 %v1472
    %2453 = vmatprep.subr.bf16.mxu0 0
    %2454 = vmatpush2.bf16.msra.mxu0 0
    %2455 = vmatprep.subr.bf16.mxu0 0
    %2456 = vmatpush2.bf16.msra.mxu0 0
    %2457 = vmatprep.subr.bf16.mxu0 0
    %2458 = vmatpush2.bf16.msra.mxu0 0
    %2459 = vmatprep.subr.bf16.mxu0 0
    %2460 = vmatpush2.bf16.msra.mxu0 0
    %2461 = vmatprep.subr.bf16.mxu0 0
    %2462 = vmatpush2.bf16.msra.mxu0 0
    %2463 = vmatprep.subr.bf16.mxu0 0
    %2464 = vmatpush2.bf16.msra.mxu0 0
    %2465 = vmatprep.subr.bf16.mxu0 0
    %2466 = vmatpush2.bf16.msra.mxu0 0
    %2467 = vmatprep.subr.bf16.mxu0 0
    %2468 = vmatpush2.bf16.msra.mxu0 0
    %2469 = vmatprep.mubr.bf16.mxu0 0
    %2470 = vmatmul.mubr.bf16.gmra.mxu0 %v2435
    %v2471 = vpop.f32.mrf.mxu0
    %v2472 = vadd.f32 %v1441, %v2471
    %v2473 = vpop.f32.mrf.mxu0
    %v2474 = vadd.f32 %v1445, %v2473
    %v2475 = vpop.f32.mrf.mxu0
    %v2476 = vpop.f32.mrf.mxu0
    %2477 = vdwg.mxu0
    %v2478 = vld [vmem:[#allocation2 + $0x10] sm:$0xc0]
    %v2479 = vld [vmem:[#allocation2] sm:$0x3]
    %v2480 = vld [vmem:[#allocation2 + $0x8] sm:$0x3]
    %v2482 = vrot.slane %v2472, 2
    %v2484 = vadd.f32 %v2478, %v2482
    %v2485 = vxor.u32 %v2484, 2147483648
    %v2486 = vmul.f32 %v2485, 1.442695
    %v2487 = vpow.pop %v2486
    %v2488 = vadd.f32 %v2487, 1.0
    %v2489 = vrcp.pop %v2488
    %v2490 = vmul.f32 1.0, %v2489
    %2491 = vrot.lane.b32.xlu0 %v2482, 64
    %v2492 = vpop.permute.xlu0 %2491
    %v2494 = vmul.f32 %v2490, %v2492
    %2496 = vrot.lane.b32.xlu0 %v2494, 64
    %v2497 = vpop.permute.xlu0 %2496
    %v2499 = vadd.f32 %v2478, %v2497
    %v2500 = vtanh.pop %v2499
    %v2501 = vsub.f32 1.0, %v2490
    %2503 = vrot.lane.b32.xlu0 %v2500, 96
    %v2504 = vpop.permute.xlu0 %2503
    %v2506 = vmul.f32 %v2501, %v2504
    %v2508 = vrot.slane %v2430, 6
    %2509 = vrot.lane.b32.xlu0 %v2508, 32
    %v2510 = vpop.permute.xlu0 %2509
    %v2512 = vmul.f32 %v2490, %v2510
    %v2513 = vadd.f32 %v2506, %v2512
    %v2514 = vadd.f32 %v2479, %v2472
    %v2515 = vxor.u32 %v2514, 2147483648
    %v2516 = vmul.f32 %v2515, 1.442695
    %v2517 = vpow.pop %v2516
    %v2518 = vadd.f32 %v2517, 1.0
    %v2519 = vrcp.pop %v2518
    %v2520 = vmul.f32 1.0, %v2519
    %v2521 = vadd.f32 %v2480, %v2474
    %v2522 = vxor.u32 %v2521, 2147483648
    %v2523 = vmul.f32 %v2522, 1.442695
    %v2524 = vpow.pop %v2523
    %v2525 = vadd.f32 %v2524, 1.0
    %v2526 = vrcp.pop %v2525
    %v2527 = vmul.f32 1.0, %v2526
    %2529 = vrot.lane.b32.xlu0 %v2474, 64
    %v2530 = vpop.permute.xlu0 %2529
    %v2532 = vmul.f32 %v2520, %v2530
    %2534 = vrot.lane.b32.xlu0 %v2532, 64
    %v2535 = vpop.permute.xlu0 %2534
    %v2537 = vadd.f32 %v2480, %v2535
    %v2538 = vtanh.pop %v2537
    %v2539 = vsub.f32 1.0, %v2527
    %2541 = vrot.lane.b32.xlu0 %v2538, 96
    %v2542 = vpop.permute.xlu0 %2541
    %v2544 = vmul.f32 %v2539, %v2542
    %v2545 = vrot.slane %v2430, 4
    %2546 = vrot.lane.b32.xlu0 %v2545, 96
    %v2547 = vpop.permute.xlu0 %2546
    %v2549 = vmul.f32 %v2527, %v2547
    %v2550 = vadd.f32 %v2544, %v2549
    %2552 = vrot.lane.b32.xlu0 %v2513, 96
    %v2553 = vpop.permute.xlu0 %2552
    %2555 = vst.msk [vmem:[#allocation3 + $0x8] sm:$0xc0] %vm761, %v2553
    %2557 = vrot.lane.b32.xlu0 %v2550, 32
    %v2558 = vpop.permute.xlu0 %2557
    %2560 = vst.msk [vmem:[#allocation3] sm:$0x3] %vm767, %v2558
    %v2561 = vld [vmem:[#allocation3 + $0xe] sm:$0x3]
    %v2562 = vpack.c.bf16 %v2561, %v2561
    %v2563 = vld [vmem:[%s11] sm:$0xf]
    %v2564 = vld [vmem:[%s11 + $0x4] sm:$0xf]
    %v2565 = vld [vmem:[%s11 + $0x8] sm:$0xf]
    %v2566 = vld [vmem:[%s11 + $0xc] sm:$0xf]
    %v2567 = vld [vmem:[%s11 + $0x10] sm:$0xf]
    %v2568 = vld [vmem:[%s11 + $0x14] sm:$0xf]
    %v2569 = vld [vmem:[%s11 + $0x18] sm:$0xf]
    %v2570 = vld [vmem:[%s11 + $0x1c] sm:$0xf]
    %v2571 = vld [vmem:[%s12] sm:$0x1]
    %v2573 = vlaneseq
    %v2574 = vshrl.u32 %v2573, 7
    %v2575 = vsub.s32 0, %v2574
    %v2576 = vrot.slane %v2571, %v2575
    %v2586 = vunpack.c.l.b16 %v2563
    %v2587 = vunpack.c.l.b16 %v2564
    %v2588 = vunpack.c.l.b16 %v2565
    %v2589 = vunpack.c.l.b16 %v2566
    %v2590 = vunpack.c.l.b16 %v2567
    %v2591 = vunpack.c.l.b16 %v2568
    %v2592 = vunpack.c.l.b16 %v2569
    %v2593 = vunpack.c.l.b16 %v2570
    %v2594 = vpack.c.b16 %v2587, %v2586
    %v2595 = vpack.c.b16 %v2589, %v2588
    %v2596 = vpack.c.b16 %v2591, %v2590
    %v2597 = vpack.c.b16 %v2593, %v2592
    %v2603 = vsel %vm166, %v2562, 0
    %2605 = vmatprep.subr.bf16.mxu0 0
    %2606 = vmatpush1.bf16.msra.mxu0 0
    %2607 = vmatprep.subr.bf16.mxu0 0
    %2608 = vmatpush1.bf16.msra.mxu0 0
    %2609 = vmatprep.subr.bf16.mxu0 0
    %2610 = vmatpush1.bf16.msra.mxu0 0
    %2611 = vmatprep.subr.bf16.mxu0 0
    %2612 = vmatpush1.bf16.msra.mxu0 0
    %2613 = vmatprep.subr.bf16.mxu0 0
    %2614 = vmatpush1.bf16.msra.mxu0 %v2597
    %2615 = vmatprep.subr.bf16.mxu0 0
    %2616 = vmatpush1.bf16.msra.mxu0 %v2596
    %2617 = vmatprep.subr.bf16.mxu0 0
    %2618 = vmatpush1.bf16.msra.mxu0 %v2595
    %2619 = vmatprep.subr.bf16.mxu0 0
    %2620 = vmatpush1.bf16.msra.mxu0 %v2594
    %2621 = vmatprep.subr.bf16.mxu0 0
    %2622 = vmatpush2.bf16.msra.mxu0 0
    %2623 = vmatprep.subr.bf16.mxu0 0
    %2624 = vmatpush2.bf16.msra.mxu0 0
    %2625 = vmatprep.subr.bf16.mxu0 0
    %2626 = vmatpush2.bf16.msra.mxu0 0
    %2627 = vmatprep.subr.bf16.mxu0 0
    %2628 = vmatpush2.bf16.msra.mxu0 0
    %2629 = vmatprep.subr.bf16.mxu0 0
    %2630 = vmatpush2.bf16.msra.mxu0 0
    %2631 = vmatprep.subr.bf16.mxu0 0
    %2632 = vmatpush2.bf16.msra.mxu0 0
    %2633 = vmatprep.subr.bf16.mxu0 0
    %2634 = vmatpush2.bf16.msra.mxu0 0
    %2635 = vmatprep.subr.bf16.mxu0 0
    %2636 = vmatpush2.bf16.msra.mxu0 0
    %2637 = vmatprep.mubr.bf16.mxu0 0
    %2638 = vmatmul.mubr.bf16.gmra.mxu0 %v2603
    %v2639 = vpop.f32.mrf.mxu0
    %v2640 = vadd.f32 %v2576, %v2639
    %v2641 = vpop.f32.mrf.mxu0
    %v2642 = vpop.f32.mrf.mxu0
    %v2643 = vpop.f32.mrf.mxu0
    %2644 = vdwg.mxu0
    %vm2645 = vcmask 33792
    %2646 = vst.msk [vmem:[#allocation4] sm:$0x3] %vm2645, %v2640
    // Predicated region
    $region54: #{gru_bi_forward.1} parent=1 // pred_check
      _
    $region55: #{gru_bi_forward.1} parent=1 // pred_check_branch
      %2648 = sbr.rel (0) target = $region57
    $region56: #{gru_bi_forward.1} parent=1 // pred_region
      %s2650 = ssub.s32 32, 32
      %2651 = vsyncadd [#allocation5], %s2650
      %s2653 = sshll.u32 [#allocation4], 4
      %s2654 = int_to_ptr.vmem [resolvable:$true] %s2653
      %2656 = dma.vmem_to_hbm [thread:$0]  %s2654, 32, %s13, [#allocation5]
    $region57: #{gru_bi_forward.1} parent=1 // pred_fallthru
      _
    // Predicated region
    $region58: #{gru_bi_forward.1} parent=1 // pred_check
      _
    $region59: #{gru_bi_forward.1} parent=1 // pred_check_branch
      %2658 = sbr.rel (0) target = $region61
    $region60: #{gru_bi_forward.1} parent=1 // pred_region
      %2659 = dma.done [#allocation5], 32
    $region61: #{gru_bi_forward.1} parent=1 // pred_fallthru
      _
    %2660 = vsyncpa [#allocation5], 1

</llo_original>
